<compile_context>
chip_gen: v6e
topology: v6e:2x2x1
jax: 0.10.0
libtpu: 0.0.40
codegen_flags: <defaults>
</compile_context>

<pallas_src>
import jax
import jax.numpy as jnp
from jax.experimental import pallas as pl
from jax.experimental.pallas import tpu as pltpu


# ============================================================================
# Kernel 1: fused two-layer GCN
#   phase 0:  H1 = relu((A @ X) @ W1 + b1)   (H1 kept resident in VMEM scratch)
#   phase 1:  H2 =      (A @ H1) @ W2 + b2
# Grid = (phase, row-tile i, contraction-tile k).  A streams in (T, T) bf16
# tiles, X in (T, F) bf16 tiles.  The row axis cannot be marked "parallel":
# phase 1 of every row tile reads the phase-0 results of ALL row tiles from the
# shared VMEM scratch (per-core scratch would break on v7x megacore), so all
# grid axes are "arbitrary" here; the edge-head kernel is "parallel".
# ============================================================================
def _gcn2_kernel(a_ref, x_ref, w1_ref, b1_ref, w2_ref, b2_ref,
                 o_ref, acc_ref, h1_ref):
    tile = a_ref.shape[1]
    p = pl.program_id(0)
    i = pl.program_id(1)
    k = pl.program_id(2)
    nk = pl.num_programs(2)

    @pl.when(k == 0)
    def _init():
        acc_ref[...] = jnp.zeros_like(acc_ref)

    @pl.when(p == 0)
    def _acc_layer1():
        # (A @ X) row tile; bf16 MXU products, f32 accumulation.
        acc_ref[...] += jnp.dot(a_ref[...], x_ref[...],
                                preferred_element_type=jnp.float32)

    @pl.when(p == 1)
    def _acc_layer2():
        off = pl.multiple_of(k * tile, tile)
        acc_ref[...] += jnp.dot(a_ref[...], h1_ref[pl.ds(off, tile), :],
                                preferred_element_type=jnp.float32)

    @pl.when((p == 0) & (k == nk - 1))
    def _finalize_layer1():
        h1 = jnp.dot(acc_ref[...].astype(jnp.bfloat16), w1_ref[...],
                     preferred_element_type=jnp.float32) + b1_ref[...]
        h1 = jnp.maximum(h1, 0.0)
        off = pl.multiple_of(i * tile, tile)
        h1_ref[pl.ds(off, tile), :] = h1.astype(jnp.bfloat16)
        o_ref[...] = h1  # deterministic placeholder; overwritten in phase 1

    @pl.when((p == 1) & (k == nk - 1))
    def _finalize_layer2():
        o_ref[...] = (jnp.dot(acc_ref[...].astype(jnp.bfloat16), w2_ref[...],
                              preferred_element_type=jnp.float32)
                      + b2_ref[...]).astype(o_ref.dtype)


def fused_gcn2(a_p, x_p, w1_p, b1_p, w2_p, b2_p, *, tile=128):
    n_pad = a_p.shape[0]
    fp = x_p.shape[1]
    ni = n_pad // tile
    nk = n_pad // tile
    cost = pl.CostEstimate(
        flops=int(2 * 2 * n_pad * n_pad * fp + 2 * 2 * n_pad * fp * fp),
        transcendentals=0,
        bytes_accessed=int(2 * n_pad * n_pad * 2      # A streamed twice (bf16)
                           + n_pad * fp * 2           # X (bf16)
                           + 2 * fp * fp * 2          # W1, W2 (bf16)
                           + n_pad * fp * 4),         # H2 out (f32)
    )
    return pl.pallas_call(
        _gcn2_kernel,
        out_shape=jax.ShapeDtypeStruct((n_pad, fp), jnp.float32),
        grid_spec=pltpu.PrefetchScalarGridSpec(
            num_scalar_prefetch=0,
            grid=(2, ni, nk),
            in_specs=[
                pl.BlockSpec((tile, tile), lambda p, i, k: (i, k)),  # A
                pl.BlockSpec((tile, fp), lambda p, i, k: (k, 0)),    # X
                pl.BlockSpec((fp, fp), lambda p, i, k: (0, 0)),      # W1
                pl.BlockSpec((1, fp), lambda p, i, k: (0, 0)),       # b1
                pl.BlockSpec((fp, fp), lambda p, i, k: (0, 0)),      # W2
                pl.BlockSpec((1, fp), lambda p, i, k: (0, 0)),       # b2
            ],
            out_specs=pl.BlockSpec((tile, fp), lambda p, i, k: (i, 0)),
            scratch_shapes=[
                pltpu.VMEM((tile, fp), jnp.float32),     # row-tile accumulator
                pltpu.VMEM((n_pad, fp), jnp.bfloat16),   # resident H1
            ],
        ),
        compiler_params=pltpu.CompilerParams(
            dimension_semantics=("arbitrary", "arbitrary", "arbitrary"),
            vmem_limit_bytes=48 * 1024 * 1024,
        ),
        cost_estimate=cost,
    )(a_p, x_p, w1_p, b1_p, w2_p, b2_p)


# ============================================================================
# Kernel 2: edge head.  Per 128-edge tile:
#   x_i, x_j   gathered in-kernel from the resident node embeddings via
#              one-hot MXU matmuls (no (E, 2H) concat in HBM),
#   pre        = x_i @ Wa + x_j @ Wb + b_res          (split residual weights)
#   out        = relu(relu(pre) + [x_i | x_j])        (ResidualBlock, in==out)
#   score      = sigmoid(out @ Wf + bf)               (lane-dense (TE,128) out,
#                                                      real logit in lane 0)
# ============================================================================
def _edge_head_kernel(src_ref, dst_ref, h_ref, wa_ref, wb_ref, br_ref,
                      wf_ref, bfin_ref, o_ref):
    te = src_ref.shape[0]
    n_pad, fp = h_ref.shape
    h = h_ref[...]                                           # (n_pad, fp) bf16

    node_ids = jax.lax.broadcasted_iota(jnp.int32, (te, n_pad), 1)
    oh_s = jnp.where(src_ref[...] == node_ids, 1.0, 0.0).astype(jnp.bfloat16)
    oh_d = jnp.where(dst_ref[...] == node_ids, 1.0, 0.0).astype(jnp.bfloat16)

    x_i = jnp.dot(oh_s, h, preferred_element_type=jnp.float32)   # (te, fp)
    x_j = jnp.dot(oh_d, h, preferred_element_type=jnp.float32)

    pre = (jnp.dot(x_i.astype(jnp.bfloat16), wa_ref[...],
                   preferred_element_type=jnp.float32)
           + jnp.dot(x_j.astype(jnp.bfloat16), wb_ref[...],
                     preferred_element_type=jnp.float32)
           + br_ref[...])                                        # (te, 2*fp)
    r = jnp.maximum(pre, 0.0)

    out_l = jnp.maximum(r[:, :fp] + x_i, 0.0)
    out_r = jnp.maximum(r[:, fp:] + x_j, 0.0)

    wf = wf_ref[...]                                             # (2*fp, 128)
    logits = (jnp.dot(out_l.astype(jnp.bfloat16), wf[:fp, :],
                      preferred_element_type=jnp.float32)
              + jnp.dot(out_r.astype(jnp.bfloat16), wf[fp:, :],
                        preferred_element_type=jnp.float32)
              + bfin_ref[...])                                   # (te, 128)
    o_ref[...] = jax.nn.sigmoid(logits)


def edge_head(src_p, dst_p, h_bf, w_a, w_b, b_r, w_f, b_f, *, te=128):
    e_pad = src_p.shape[0]
    n_pad, fp = h_bf.shape
    return pl.pallas_call(
        _edge_head_kernel,
        out_shape=jax.ShapeDtypeStruct((e_pad, 128), jnp.float32),
        grid_spec=pltpu.PrefetchScalarGridSpec(
            num_scalar_prefetch=0,
            grid=(e_pad // te,),
            in_specs=[
                pl.BlockSpec((te, 1), lambda e: (e, 0)),        # src indices
                pl.BlockSpec((te, 1), lambda e: (e, 0)),        # dst indices
                pl.BlockSpec((n_pad, fp), lambda e: (0, 0)),    # node embeddings (resident)
                pl.BlockSpec((fp, 2 * fp), lambda e: (0, 0)),   # W_res (src half)
                pl.BlockSpec((fp, 2 * fp), lambda e: (0, 0)),   # W_res (dst half)
                pl.BlockSpec((1, 2 * fp), lambda e: (0, 0)),    # b_res
                pl.BlockSpec((2 * fp, 128), lambda e: (0, 0)),  # W_final (lane 0)
                pl.BlockSpec((1, 128), lambda e: (0, 0)),       # b_final (lane 0)
            ],
            out_specs=pl.BlockSpec((te, 128), lambda e: (e, 0)),
        ),
        compiler_params=pltpu.CompilerParams(
            dimension_semantics=("parallel",),
            vmem_limit_bytes=48 * 1024 * 1024,
        ),
    )(src_p, dst_p, h_bf, w_a, w_b, b_r, w_f, b_f)


# ----------------------------------------------------------------------------
# Glue: GCN symmetric normalization (dense, with self loops) — matches PyG
# GCNConv (aggregation at dst; duplicate edges are summed, as PyG does).
# ----------------------------------------------------------------------------
def gcn_norm_adj(edge_index, num_nodes):
    src, dst = edge_index
    loop = jnp.arange(num_nodes, dtype=src.dtype)
    src = jnp.concatenate([src, loop])
    dst = jnp.concatenate([dst, loop])
    a = jnp.zeros((num_nodes, num_nodes), jnp.float32).at[dst, src].add(1.0)
    deg = a.sum(axis=1)
    dinv = jnp.where(deg > 0, 1.0 / jnp.sqrt(deg), 0.0)
    return dinv[:, None] * a * dinv[None, :]


def _pad_to(a, shape):
    out = jnp.zeros(shape, a.dtype)
    return out.at[tuple(slice(0, s) for s in a.shape)].set(a)


def _pad_edge_head_params(w_res, b_res, w_final, b_final, h, fp):
    # Repack Linear(2H->2H) + Linear(2H->1) for the padded [x_i | x_j] layout
    # (each half zero-padded H -> fp).  Real final-layer weights live in lane 0.
    w_a = jnp.zeros((fp, 2 * fp), jnp.float32)
    w_a = w_a.at[:h, :h].set(w_res[:h, :h]).at[:h, fp:fp + h].set(w_res[:h, h:])
    w_b = jnp.zeros((fp, 2 * fp), jnp.float32)
    w_b = w_b.at[:h, :h].set(w_res[h:, :h]).at[:h, fp:fp + h].set(w_res[h:, h:])
    b_r = jnp.zeros((1, 2 * fp), jnp.float32)
    b_r = b_r.at[0, :h].set(b_res[:h]).at[0, fp:fp + h].set(b_res[h:])
    w_f = jnp.zeros((2 * fp, 128), jnp.float32)
    w_f = w_f.at[:h, 0].set(w_final[:h, 0]).at[fp:fp + h, 0].set(w_final[h:, 0])
    b_f = jnp.zeros((1, 128), jnp.float32).at[0, 0].set(b_final[0])
    return (w_a.astype(jnp.bfloat16), w_b.astype(jnp.bfloat16), b_r,
            w_f.astype(jnp.bfloat16), b_f)


# ----------------------------------------------------------------------------
# Full forward: LinkPredictor(IN_CH, [H, H], 'GCN', use_both=False)
# ----------------------------------------------------------------------------
def link_predictor_forward(params, x, graph_edge_index, pred_edge_index, *,
                           tile=128):
    n, c = x.shape
    h_dim = params["w_conv1"].shape[1]
    fp = int(pl.cdiv(max(c, h_dim), 128) * 128)   # lane-dense feature width
    n_pad = int(pl.cdiv(n, tile) * tile)

    a = gcn_norm_adj(graph_edge_index, n)
    a_p = _pad_to(a, (n_pad, n_pad)).astype(jnp.bfloat16)
    x_p = _pad_to(x, (n_pad, fp)).astype(jnp.bfloat16)
    w1_p = _pad_to(params["w_conv1"], (fp, fp)).astype(jnp.bfloat16)
    b1_p = _pad_to(params["b_conv1"].reshape(1, -1), (1, fp))
    w2_p = _pad_to(params["w_conv2"], (fp, fp)).astype(jnp.bfloat16)
    b2_p = _pad_to(params["b_conv2"].reshape(1, -1), (1, fp))

    # conv1 -> relu -> conv2, fused (one pallas_call).
    h2 = fused_gcn2(a_p, x_p, w1_p, b1_p, w2_p, b2_p, tile=tile)  # (n_pad, fp) f32

    # Edge head (gather + ResidualBlock + final Linear + sigmoid), fused.
    src, dst = pred_edge_index
    e = src.shape[0]
    e_pad = int(pl.cdiv(max(e, 1), 128) * 128)
    src_p = jnp.zeros((e_pad, 1), jnp.int32).at[:e, 0].set(src.astype(jnp.int32))
    dst_p = jnp.zeros((e_pad, 1), jnp.int32).at[:e, 0].set(dst.astype(jnp.int32))

    w_a, w_b, b_r, w_f, b_f = _pad_edge_head_params(
        params["w_res"], params["b_res"], params["w_final"], params["b_final"],
        h_dim, fp)

    scores = edge_head(src_p, dst_p, h2.astype(jnp.bfloat16),
                       w_a, w_b, b_r, w_f, b_f)                  # (e_pad, 128)
    return scores[:e, 0:1]


# ----------------------------------------------------------------------------
# Pure-JAX reference (mirrors the kernels' bf16 input rounding for a tight check)
# ----------------------------------------------------------------------------
def reference_forward(params, x, graph_edge_index, pred_edge_index):
    bf = lambda t: t.astype(jnp.bfloat16).astype(jnp.float32)
    a = gcn_norm_adj(graph_edge_index, x.shape[0])
    h1 = jnp.maximum(bf(a) @ bf(x) @ bf(params["w_conv1"]) + params["b_conv1"], 0.0)
    h2 = bf(a) @ bf(h1) @ bf(params["w_conv2"]) + params["b_conv2"]
    h2 = bf(h2)
    src, dst = pred_edge_index
    xe = jnp.concatenate([h2[src], h2[dst]], axis=-1)
    z = jnp.maximum(xe @ bf(params["w_res"]) + params["b_res"], 0.0)
    z = jnp.maximum(z + xe, 0.0)
    logits = bf(z) @ bf(params["w_final"]) + params["b_final"]
    return jax.nn.sigmoid(logits)


# ----------------------------------------------------------------------------
# Main
# ----------------------------------------------------------------------------
if __name__ == "__main__":
    key = jax.random.PRNGKey(0)
    N = 200          # nodes  (padded to 256 -> 2x2 A-tile grid)
    IN_CH = 4        # in_channels
    H = 16           # layer_sizes = [16, 16] -> ResidualBlock(32, 32), Linear(32, 1)
    E_GRAPH = 600    # message-passing edges
    E_PRED = 300     # candidate edges to score (padded to 384 -> 3 edge tiles)

    keys = jax.random.split(key, 10)
    x = jax.random.normal(keys[0], (N, IN_CH), jnp.float32)
    graph_edge_index = jnp.stack([
        jax.random.randint(keys[1], (E_GRAPH,), 0, N),
        jax.random.randint(keys[2], (E_GRAPH,), 0, N)])           # (2, E_GRAPH)
    pred_edge_index = jnp.stack([
        jax.random.randint(keys[3], (E_PRED,), 0, N),
        jax.random.randint(keys[4], (E_PRED,), 0, N)])            # (2, E_PRED)

    def glorot(k, shape):
        fan_in, fan_out = shape
        s = jnp.sqrt(6.0 / (fan_in + fan_out))
        return jax.random.uniform(k, shape, jnp.float32, -s, s)

    params = {
        "w_conv1": glorot(keys[5], (IN_CH, H)),
        "b_conv1": jnp.zeros((H,), jnp.float32),
        "w_conv2": glorot(keys[6], (H, H)),
        "b_conv2": jnp.zeros((H,), jnp.float32),
        "w_res":   glorot(keys[7], (2 * H, 2 * H)),
        "b_res":   0.01 * jnp.ones((2 * H,), jnp.float32),
        "w_final": glorot(keys[8], (2 * H, 1)),
        "b_final": jnp.zeros((1,), jnp.float32),
    }

    fwd = jax.jit(link_predictor_forward)
    out = jax.block_until_ready(fwd(params, x, graph_edge_index, pred_edge_index))

    assert out.shape == (E_PRED, 1), out.shape
    assert bool(jnp.all((out >= 0.0) & (out <= 1.0)))

    ref = reference_forward(params, x, graph_edge_index, pred_edge_index)
    max_err = float(jnp.max(jnp.abs(out - ref)))
    assert max_err < 2e-2, f"max |kernel - reference| = {max_err}"

    print("KERNEL_OK")
</pallas_src>

<mosaic_0001>
module attributes {stable_mosaic.version = 11 : i64} {
  func.func private @main(%arg0: i32) attributes {dimension_semantics = [#tpu.dimension_semantics<core_parallel>], iteration_bounds = array<i64: 2>, tpu.core_type = #tpu.core_type<sc_scalar_subcore>, window_params = []} {
    return
  }
}

module attributes {stable_mosaic.version = 11 : i64} {
  func.func private @main(%arg0: i32) attributes {dimension_semantics = [#tpu.dimension_semantics<core_parallel>], iteration_bounds = array<i64: 2>, tpu.core_type = #tpu.core_type<sc_scalar_subcore>, window_params = []} {
    return
  }
}

module attributes {stable_mosaic.version = 11 : i64} {
  func.func @_gcn2_kernel(%arg0: i32, %arg1: i32, %arg2: i32, %arg3: memref<128x128xbf16, #tpu.memory_space<vmem>>, %arg4: memref<128x128xbf16, #tpu.memory_space<vmem>>, %arg5: memref<128x128xbf16, #tpu.memory_space<vmem>>, %arg6: memref<1x128xf32, #tpu.memory_space<vmem>>, %arg7: memref<128x128xbf16, #tpu.memory_space<vmem>>, %arg8: memref<1x128xf32, #tpu.memory_space<vmem>>, %arg9: memref<128x128xf32, #tpu.memory_space<vmem>>, %arg10: memref<128x128xf32, #tpu.memory_space<vmem>>, %arg11: memref<256x128xbf16, #tpu.memory_space<vmem>>) attributes {dimension_semantics = [#tpu.dimension_semantics<arbitrary>, #tpu.dimension_semantics<arbitrary>, #tpu.dimension_semantics<arbitrary>], iteration_bounds = array<i64: 2, 2, 2>, scalar_prefetch = 0 : i64, scratch_operands = 2 : i64, tpu.core_type = #tpu.core_type<tc>, window_params = [{transform_indices = @transform_0, window_bounds = array<i64: 128, 128>}, {transform_indices = @transform_1, window_bounds = array<i64: 128, 128>}, {pipeline_mode = #tpu.pipeline_mode<synchronous>, transform_indices = @transform_2, window_bounds = array<i64: 128, 128>}, {pipeline_mode = #tpu.pipeline_mode<synchronous>, transform_indices = @transform_3, window_bounds = array<i64: 1, 128>}, {pipeline_mode = #tpu.pipeline_mode<synchronous>, transform_indices = @transform_4, window_bounds = array<i64: 128, 128>}, {pipeline_mode = #tpu.pipeline_mode<synchronous>, transform_indices = @transform_5, window_bounds = array<i64: 1, 128>}, {transform_indices = @transform_6, window_bounds = array<i64: 128, 128>}]} {
    %c0_i32 = arith.constant 0 : i32
    %0 = arith.cmpi eq, %arg2, %c0_i32 : i32
    %1 = arith.extui %0 : i1 to i32
    %c0_i32_0 = arith.constant 0 : i32
    %2 = arith.cmpi ne, %1, %c0_i32_0 : i32
    scf.if %2 {
      %cst = arith.constant 0.000000e+00 : f32
      %19 = vector.broadcast %cst : f32 to vector<128x128xf32>
      %c0 = arith.constant 0 : index
      %c0_10 = arith.constant 0 : index
      %20 = vector.load %arg10[%c0, %c0_10] : memref<128x128xf32, #tpu.memory_space<vmem>>, vector<128x128xf32>
      tpu.vector_store %arg10[%c0, %c0_10], %19 {strides = array<i32>} : memref<128x128xf32, #tpu.memory_space<vmem>>, vector<128x128xf32>,
    } else {
    }
    %c0_i32_1 = arith.constant 0 : i32
    %3 = arith.cmpi eq, %arg0, %c0_i32_1 : i32
    %4 = arith.extui %3 : i1 to i32
    %c0_i32_2 = arith.constant 0 : i32
    %5 = arith.cmpi ne, %4, %c0_i32_2 : i32
    scf.if %5 {
      %c0 = arith.constant 0 : index
      %c0_10 = arith.constant 0 : index
      %19 = vector.load %arg10[%c0, %c0_10] : memref<128x128xf32, #tpu.memory_space<vmem>>, vector<128x128xf32>
      %c0_11 = arith.constant 0 : index
      %c0_12 = arith.constant 0 : index
      %20 = vector.load %arg3[%c0_11, %c0_12] : memref<128x128xbf16, #tpu.memory_space<vmem>>, vector<128x128xbf16>
      %c0_13 = arith.constant 0 : index
      %c0_14 = arith.constant 0 : index
      %21 = vector.load %arg4[%c0_13, %c0_14] : memref<128x128xbf16, #tpu.memory_space<vmem>>, vector<128x128xbf16>
      %cst = arith.constant dense<0.000000e+00> : vector<128x128xf32>
      %22 = tpu.matmul %20, %21, %cst {dimension_numbers = #tpu.dot_dimension_numbers<[1], [0], [0], [1], [0, 0, 1, 1], [], []>} : vector<128x128xbf16>, vector<128x128xbf16>, vector<128x128xf32> -> vector<128x128xf32>
      %23 = arith.addf %19, %22 : vector<128x128xf32>
      %c0_15 = arith.constant 0 : index
      %c0_16 = arith.constant 0 : index
      %24 = vector.load %arg10[%c0_15, %c0_16] : memref<128x128xf32, #tpu.memory_space<vmem>>, vector<128x128xf32>
      tpu.vector_store %arg10[%c0_15, %c0_16], %23 {strides = array<i32>} : memref<128x128xf32, #tpu.memory_space<vmem>>, vector<128x128xf32>,
    } else {
    }
    %c1_i32 = arith.constant 1 : i32
    %6 = arith.cmpi eq, %arg0, %c1_i32 : i32
    %7 = arith.extui %6 : i1 to i32
    %c0_i32_3 = arith.constant 0 : i32
    %8 = arith.cmpi ne, %7, %c0_i32_3 : i32
    scf.if %8 {
      %c128_i32 = arith.constant 128 : i32
      %19 = arith.muli %arg2, %c128_i32 : i32
      %20 = tpu.assume_multiple %19, 128 : i32
      %c0 = arith.constant 0 : index
      %c0_10 = arith.constant 0 : index
      %21 = vector.load %arg10[%c0, %c0_10] : memref<128x128xf32, #tpu.memory_space<vmem>>, vector<128x128xf32>
      %c0_11 = arith.constant 0 : index
      %c0_12 = arith.constant 0 : index
      %22 = vector.load %arg3[%c0_11, %c0_12] : memref<128x128xbf16, #tpu.memory_space<vmem>>, vector<128x128xbf16>
      %23 = arith.index_cast %20 : i32 to index
      %c0_13 = arith.constant 0 : index
      %24 = vector.load %arg11[%23, %c0_13] : memref<256x128xbf16, #tpu.memory_space<vmem>>, vector<128x128xbf16>
      %cst = arith.constant dense<0.000000e+00> : vector<128x128xf32>
      %25 = tpu.matmul %22, %24, %cst {dimension_numbers = #tpu.dot_dimension_numbers<[1], [0], [0], [1], [0, 0, 1, 1], [], []>} : vector<128x128xbf16>, vector<128x128xbf16>, vector<128x128xf32> -> vector<128x128xf32>
      %26 = arith.addf %21, %25 : vector<128x128xf32>
      %c0_14 = arith.constant 0 : index
      %c0_15 = arith.constant 0 : index
      %27 = vector.load %arg10[%c0_14, %c0_15] : memref<128x128xf32, #tpu.memory_space<vmem>>, vector<128x128xf32>
      tpu.vector_store %arg10[%c0_14, %c0_15], %26 {strides = array<i32>} : memref<128x128xf32, #tpu.memory_space<vmem>>, vector<128x128xf32>,
    } else {
    }
    %c0_i32_4 = arith.constant 0 : i32
    %9 = arith.cmpi eq, %arg0, %c0_i32_4 : i32
    %c1_i32_5 = arith.constant 1 : i32
    %10 = arith.cmpi eq, %arg2, %c1_i32_5 : i32
    %11 = arith.andi %9, %10 : i1
    %12 = arith.extui %11 : i1 to i32
    %c0_i32_6 = arith.constant 0 : i32
    %13 = arith.cmpi ne, %12, %c0_i32_6 : i32
    scf.if %13 {
      %c0 = arith.constant 0 : index
      %c0_10 = arith.constant 0 : index
      %19 = vector.load %arg10[%c0, %c0_10] : memref<128x128xf32, #tpu.memory_space<vmem>>, vector<128x128xf32>
      %20 = arith.truncf %19 : vector<128x128xf32> to vector<128x128xbf16>
      %c0_11 = arith.constant 0 : index
      %c0_12 = arith.constant 0 : index
      %21 = vector.load %arg5[%c0_11, %c0_12] : memref<128x128xbf16, #tpu.memory_space<vmem>>, vector<128x128xbf16>
      %cst = arith.constant dense<0.000000e+00> : vector<128x128xf32>
      %22 = tpu.matmul %20, %21, %cst {dimension_numbers = #tpu.dot_dimension_numbers<[1], [0], [0], [1], [0, 0, 1, 1], [], []>} : vector<128x128xbf16>, vector<128x128xbf16>, vector<128x128xf32> -> vector<128x128xf32>
      %c0_13 = arith.constant 0 : index
      %c0_14 = arith.constant 0 : index
      %23 = vector.load %arg6[%c0_13, %c0_14] : memref<1x128xf32, #tpu.memory_space<vmem>>, vector<1x128xf32>
      %24 = vector.broadcast %23 : vector<1x128xf32> to vector<128x128xf32>
      %25 = arith.addf %22, %24 : vector<128x128xf32>
      %cst_15 = arith.constant 0.000000e+00 : f32
      %26 = vector.broadcast %cst_15 : f32 to vector<128x128xf32>
      %27 = arith.maximumf %25, %26 : vector<128x128xf32>
      %c128_i32 = arith.constant 128 : i32
      %28 = arith.muli %arg1, %c128_i32 : i32
      %29 = tpu.assume_multiple %28, 128 : i32
      %30 = arith.truncf %27 : vector<128x128xf32> to vector<128x128xbf16>
      %31 = arith.index_cast %29 : i32 to index
      %c0_16 = arith.constant 0 : index
      %32 = vector.load %arg11[%31, %c0_16] : memref<256x128xbf16, #tpu.memory_space<vmem>>, vector<128x128xbf16>
      tpu.vector_store %arg11[%31, %c0_16], %30 {strides = array<i32>} : memref<256x128xbf16, #tpu.memory_space<vmem>>, vector<128x128xbf16>,
      %c0_17 = arith.constant 0 : index
      %c0_18 = arith.constant 0 : index
      %33 = vector.load %arg9[%c0_17, %c0_18] : memref<128x128xf32, #tpu.memory_space<vmem>>, vector<128x128xf32>
      tpu.vector_store %arg9[%c0_17, %c0_18], %27 {strides = array<i32>} : memref<128x128xf32, #tpu.memory_space<vmem>>, vector<128x128xf32>,
    } else {
    }
    %c1_i32_7 = arith.constant 1 : i32
    %14 = arith.cmpi eq, %arg0, %c1_i32_7 : i32
    %c1_i32_8 = arith.constant 1 : i32
    %15 = arith.cmpi eq, %arg2, %c1_i32_8 : i32
    %16 = arith.andi %14, %15 : i1
    %17 = arith.extui %16 : i1 to i32
    %c0_i32_9 = arith.constant 0 : i32
    %18 = arith.cmpi ne, %17, %c0_i32_9 : i32
    scf.if %18 {
      %c0 = arith.constant 0 : index
      %c0_10 = arith.constant 0 : index
      %19 = vector.load %arg10[%c0, %c0_10] : memref<128x128xf32, #tpu.memory_space<vmem>>, vector<128x128xf32>
      %20 = arith.truncf %19 : vector<128x128xf32> to vector<128x128xbf16>
      %c0_11 = arith.constant 0 : index
      %c0_12 = arith.constant 0 : index
      %21 = vector.load %arg7[%c0_11, %c0_12] : memref<128x128xbf16, #tpu.memory_space<vmem>>, vector<128x128xbf16>
      %cst = arith.constant dense<0.000000e+00> : vector<128x128xf32>
      %22 = tpu.matmul %20, %21, %cst {dimension_numbers = #tpu.dot_dimension_numbers<[1], [0], [0], [1], [0, 0, 1, 1], [], []>} : vector<128x128xbf16>, vector<128x128xbf16>, vector<128x128xf32> -> vector<128x128xf32>
      %c0_13 = arith.constant 0 : index
      %c0_14 = arith.constant 0 : index
      %23 = vector.load %arg8[%c0_13, %c0_14] : memref<1x128xf32, #tpu.memory_space<vmem>>, vector<1x128xf32>
      %24 = vector.broadcast %23 : vector<1x128xf32> to vector<128x128xf32>
      %25 = arith.addf %22, %24 : vector<128x128xf32>
      %c0_15 = arith.constant 0 : index
      %c0_16 = arith.constant 0 : index
      %26 = vector.load %arg9[%c0_15, %c0_16] : memref<128x128xf32, #tpu.memory_space<vmem>>, vector<128x128xf32>
      tpu.vector_store %arg9[%c0_15, %c0_16], %25 {strides = array<i32>} : memref<128x128xf32, #tpu.memory_space<vmem>>, vector<128x128xf32>,
    } else {
    }
    return
  }
  func.func @transform_0(%arg0: i32, %arg1: i32, %arg2: i32) -> (i32, i32) {
    %c0_i32 = arith.constant 0 : i32
    return %arg1, %arg2 : i32, i32
  }
  func.func @transform_1(%arg0: i32, %arg1: i32, %arg2: i32) -> (i32, i32) {
    %c0_i32 = arith.constant 0 : i32
    %c0_i32_0 = arith.constant 0 : i32
    return %arg2, %c0_i32 : i32, i32
  }
  func.func @transform_2(%arg0: i32, %arg1: i32, %arg2: i32) -> (i32, i32) {
    %c0_i32 = arith.constant 0 : i32
    %c0_i32_0 = arith.constant 0 : i32
    %c0_i32_1 = arith.constant 0 : i32
    return %c0_i32, %c0_i32_0 : i32, i32
  }
  func.func @transform_3(%arg0: i32, %arg1: i32, %arg2: i32) -> (i32, i32) {
    %c0_i32 = arith.constant 0 : i32
    %c0_i32_0 = arith.constant 0 : i32
    %c0_i32_1 = arith.constant 0 : i32
    return %c0_i32, %c0_i32_0 : i32, i32
  }
  func.func @transform_4(%arg0: i32, %arg1: i32, %arg2: i32) -> (i32, i32) {
    %c0_i32 = arith.constant 0 : i32
    %c0_i32_0 = arith.constant 0 : i32
    %c0_i32_1 = arith.constant 0 : i32
    return %c0_i32, %c0_i32_0 : i32, i32
  }
  func.func @transform_5(%arg0: i32, %arg1: i32, %arg2: i32) -> (i32, i32) {
    %c0_i32 = arith.constant 0 : i32
    %c0_i32_0 = arith.constant 0 : i32
    %c0_i32_1 = arith.constant 0 : i32
    return %c0_i32, %c0_i32_0 : i32, i32
  }
  func.func @transform_6(%arg0: i32, %arg1: i32, %arg2: i32) -> (i32, i32) {
    %c0_i32 = arith.constant 0 : i32
    %c0_i32_0 = arith.constant 0 : i32
    return %arg1, %c0_i32 : i32, i32
  }
}

module attributes {stable_mosaic.version = 11 : i64} {
  func.func @_edge_head_kernel(%arg0: i32, %arg1: memref<128x1xi32, #tpu.memory_space<vmem>>, %arg2: memref<128x1xi32, #tpu.memory_space<vmem>>, %arg3: memref<256x128xbf16, #tpu.memory_space<vmem>>, %arg4: memref<128x256xbf16, #tpu.memory_space<vmem>>, %arg5: memref<128x256xbf16, #tpu.memory_space<vmem>>, %arg6: memref<1x256xf32, #tpu.memory_space<vmem>>, %arg7: memref<256x128xbf16, #tpu.memory_space<vmem>>, %arg8: memref<1x128xf32, #tpu.memory_space<vmem>>, %arg9: memref<128x128xf32, #tpu.memory_space<vmem>>) attributes {dimension_semantics = [#tpu.dimension_semantics<parallel>], iteration_bounds = array<i64: 3>, scalar_prefetch = 0 : i64, scratch_operands = 0 : i64, tpu.core_type = #tpu.core_type<tc>, window_params = [{transform_indices = @transform_0, window_bounds = array<i64: 128, 1>}, {transform_indices = @transform_1, window_bounds = array<i64: 128, 1>}, {pipeline_mode = #tpu.pipeline_mode<synchronous>, transform_indices = @transform_2, window_bounds = array<i64: 256, 128>}, {pipeline_mode = #tpu.pipeline_mode<synchronous>, transform_indices = @transform_3, window_bounds = array<i64: 128, 256>}, {pipeline_mode = #tpu.pipeline_mode<synchronous>, transform_indices = @transform_4, window_bounds = array<i64: 128, 256>}, {pipeline_mode = #tpu.pipeline_mode<synchronous>, transform_indices = @transform_5, window_bounds = array<i64: 1, 256>}, {pipeline_mode = #tpu.pipeline_mode<synchronous>, transform_indices = @transform_6, window_bounds = array<i64: 256, 128>}, {pipeline_mode = #tpu.pipeline_mode<synchronous>, transform_indices = @transform_7, window_bounds = array<i64: 1, 128>}, {transform_indices = @transform_8, window_bounds = array<i64: 128, 128>}]} {
    %c0 = arith.constant 0 : index
    %c0_0 = arith.constant 0 : index
    %0 = vector.load %arg3[%c0, %c0_0] : memref<256x128xbf16, #tpu.memory_space<vmem>>, vector<256x128xbf16>
    %1 = tpu.iota {dimensions = array<i32: 1>} : vector<128x256xi32>
    %c0_1 = arith.constant 0 : index
    %c0_2 = arith.constant 0 : index
    %2 = vector.load %arg1[%c0_1, %c0_2] : memref<128x1xi32, #tpu.memory_space<vmem>>, vector<128x1xi32>
    %3 = vector.broadcast %2 : vector<128x1xi32> to vector<128x256xi32>
    %4 = arith.cmpi eq, %3, %1 : vector<128x256xi32>
    %cst = arith.constant 1.000000e+00 : f32
    %cst_3 = arith.constant 0.000000e+00 : f32
    %5 = vector.broadcast %cst : f32 to vector<128x256xf32>
    %6 = vector.broadcast %cst_3 : f32 to vector<128x256xf32>
    %7 = arith.select %4, %5, %6 : vector<128x256xi1>, vector<128x256xf32>
    %8 = arith.truncf %7 : vector<128x256xf32> to vector<128x256xbf16>
    %c0_4 = arith.constant 0 : index
    %c0_5 = arith.constant 0 : index
    %9 = vector.load %arg2[%c0_4, %c0_5] : memref<128x1xi32, #tpu.memory_space<vmem>>, vector<128x1xi32>
    %10 = vector.broadcast %9 : vector<128x1xi32> to vector<128x256xi32>
    %11 = arith.cmpi eq, %10, %1 : vector<128x256xi32>
    %cst_6 = arith.constant 1.000000e+00 : f32
    %cst_7 = arith.constant 0.000000e+00 : f32
    %12 = vector.broadcast %cst_6 : f32 to vector<128x256xf32>
    %13 = vector.broadcast %cst_7 : f32 to vector<128x256xf32>
    %14 = arith.select %11, %12, %13 : vector<128x256xi1>, vector<128x256xf32>
    %15 = arith.truncf %14 : vector<128x256xf32> to vector<128x256xbf16>
    %cst_8 = arith.constant dense<0.000000e+00> : vector<128x128xf32>
    %16 = tpu.matmul %8, %0, %cst_8 {dimension_numbers = #tpu.dot_dimension_numbers<[1], [0], [0], [1], [0, 0, 1, 1], [], []>} : vector<128x256xbf16>, vector<256x128xbf16>, vector<128x128xf32> -> vector<128x128xf32>
    %cst_9 = arith.constant dense<0.000000e+00> : vector<128x128xf32>
    %17 = tpu.matmul %15, %0, %cst_9 {dimension_numbers = #tpu.dot_dimension_numbers<[1], [0], [0], [1], [0, 0, 1, 1], [], []>} : vector<128x256xbf16>, vector<256x128xbf16>, vector<128x128xf32> -> vector<128x128xf32>
    %18 = arith.truncf %16 : vector<128x128xf32> to vector<128x128xbf16>
    %c0_10 = arith.constant 0 : index
    %c0_11 = arith.constant 0 : index
    %19 = vector.load %arg4[%c0_10, %c0_11] : memref<128x256xbf16, #tpu.memory_space<vmem>>, vector<128x256xbf16>
    %cst_12 = arith.constant dense<0.000000e+00> : vector<128x256xf32>
    %20 = tpu.matmul %18, %19, %cst_12 {dimension_numbers = #tpu.dot_dimension_numbers<[1], [0], [0], [1], [0, 0, 1, 1], [], []>} : vector<128x128xbf16>, vector<128x256xbf16>, vector<128x256xf32> -> vector<128x256xf32>
    %21 = arith.truncf %17 : vector<128x128xf32> to vector<128x128xbf16>
    %c0_13 = arith.constant 0 : index
    %c0_14 = arith.constant 0 : index
    %22 = vector.load %arg5[%c0_13, %c0_14] : memref<128x256xbf16, #tpu.memory_space<vmem>>, vector<128x256xbf16>
    %cst_15 = arith.constant dense<0.000000e+00> : vector<128x256xf32>
    %23 = tpu.matmul %21, %22, %cst_15 {dimension_numbers = #tpu.dot_dimension_numbers<[1], [0], [0], [1], [0, 0, 1, 1], [], []>} : vector<128x128xbf16>, vector<128x256xbf16>, vector<128x256xf32> -> vector<128x256xf32>
    %24 = arith.addf %20, %23 : vector<128x256xf32>
    %c0_16 = arith.constant 0 : index
    %c0_17 = arith.constant 0 : index
    %25 = vector.load %arg6[%c0_16, %c0_17] : memref<1x256xf32, #tpu.memory_space<vmem>>, vector<1x256xf32>
    %26 = vector.broadcast %25 : vector<1x256xf32> to vector<128x256xf32>
    %27 = arith.addf %24, %26 : vector<128x256xf32>
    %cst_18 = arith.constant 0.000000e+00 : f32
    %28 = vector.broadcast %cst_18 : f32 to vector<128x256xf32>
    %29 = arith.maximumf %27, %28 : vector<128x256xf32>
    %30 = vector.extract_strided_slice %29 {offsets = [0, 0], sizes = [128, 128], strides = [1, 1]} : vector<128x256xf32> to vector<128x128xf32>
    %31 = arith.addf %30, %16 : vector<128x128xf32>
    %cst_19 = arith.constant 0.000000e+00 : f32
    %32 = vector.broadcast %cst_19 : f32 to vector<128x128xf32>
    %33 = arith.maximumf %31, %32 : vector<128x128xf32>
    %34 = vector.extract_strided_slice %29 {offsets = [0, 128], sizes = [128, 128], strides = [1, 1]} : vector<128x256xf32> to vector<128x128xf32>
    %35 = arith.addf %34, %17 : vector<128x128xf32>
    %cst_20 = arith.constant 0.000000e+00 : f32
    %36 = vector.broadcast %cst_20 : f32 to vector<128x128xf32>
    %37 = arith.maximumf %35, %36 : vector<128x128xf32>
    %c0_21 = arith.constant 0 : index
    %c0_22 = arith.constant 0 : index
    %38 = vector.load %arg7[%c0_21, %c0_22] : memref<256x128xbf16, #tpu.memory_space<vmem>>, vector<256x128xbf16>
    %39 = arith.truncf %33 : vector<128x128xf32> to vector<128x128xbf16>
    %40 = vector.extract_strided_slice %38 {offsets = [0, 0], sizes = [128, 128], strides = [1, 1]} : vector<256x128xbf16> to vector<128x128xbf16>
    %cst_23 = arith.constant dense<0.000000e+00> : vector<128x128xf32>
    %41 = tpu.matmul %39, %40, %cst_23 {dimension_numbers = #tpu.dot_dimension_numbers<[1], [0], [0], [1], [0, 0, 1, 1], [], []>} : vector<128x128xbf16>, vector<128x128xbf16>, vector<128x128xf32> -> vector<128x128xf32>
    %42 = arith.truncf %37 : vector<128x128xf32> to vector<128x128xbf16>
    %43 = vector.extract_strided_slice %38 {offsets = [128, 0], sizes = [128, 128], strides = [1, 1]} : vector<256x128xbf16> to vector<128x128xbf16>
    %cst_24 = arith.constant dense<0.000000e+00> : vector<128x128xf32>
    %44 = tpu.matmul %42, %43, %cst_24 {dimension_numbers = #tpu.dot_dimension_numbers<[1], [0], [0], [1], [0, 0, 1, 1], [], []>} : vector<128x128xbf16>, vector<128x128xbf16>, vector<128x128xf32> -> vector<128x128xf32>
    %45 = arith.addf %41, %44 : vector<128x128xf32>
    %c0_25 = arith.constant 0 : index
    %c0_26 = arith.constant 0 : index
    %46 = vector.load %arg8[%c0_25, %c0_26] : memref<1x128xf32, #tpu.memory_space<vmem>>, vector<1x128xf32>
    %47 = vector.broadcast %46 : vector<1x128xf32> to vector<128x128xf32>
    %48 = arith.addf %45, %47 : vector<128x128xf32>
    %49 = arith.negf %48 : vector<128x128xf32>
    %50 = math.exp %49 : vector<128x128xf32>
    %cst_27 = arith.constant 1.000000e+00 : f32
    %51 = vector.broadcast %cst_27 : f32 to vector<128x128xf32>
    %52 = arith.addf %51, %50 : vector<128x128xf32>
    %53 = arith.divf %51, %52 : vector<128x128xf32>
    %c0_28 = arith.constant 0 : index
    %c0_29 = arith.constant 0 : index
    %54 = vector.load %arg9[%c0_28, %c0_29] : memref<128x128xf32, #tpu.memory_space<vmem>>, vector<128x128xf32>
    tpu.vector_store %arg9[%c0_28, %c0_29], %53 {strides = array<i32>} : memref<128x128xf32, #tpu.memory_space<vmem>>, vector<128x128xf32>,
    return
  }
  func.func @transform_0(%arg0: i32) -> (i32, i32) {
    %c0_i32 = arith.constant 0 : i32
    %c0_i32_0 = arith.constant 0 : i32
    return %arg0, %c0_i32 : i32, i32
  }
  func.func @transform_1(%arg0: i32) -> (i32, i32) {
    %c0_i32 = arith.constant 0 : i32
    %c0_i32_0 = arith.constant 0 : i32
    return %arg0, %c0_i32 : i32, i32
  }
  func.func @transform_2(%arg0: i32) -> (i32, i32) {
    %c0_i32 = arith.constant 0 : i32
    %c0_i32_0 = arith.constant 0 : i32
    %c0_i32_1 = arith.constant 0 : i32
    return %c0_i32, %c0_i32_0 : i32, i32
  }
  func.func @transform_3(%arg0: i32) -> (i32, i32) {
    %c0_i32 = arith.constant 0 : i32
    %c0_i32_0 = arith.constant 0 : i32
    %c0_i32_1 = arith.constant 0 : i32
    return %c0_i32, %c0_i32_0 : i32, i32
  }
  func.func @transform_4(%arg0: i32) -> (i32, i32) {
    %c0_i32 = arith.constant 0 : i32
    %c0_i32_0 = arith.constant 0 : i32
    %c0_i32_1 = arith.constant 0 : i32
    return %c0_i32, %c0_i32_0 : i32, i32
  }
  func.func @transform_5(%arg0: i32) -> (i32, i32) {
    %c0_i32 = arith.constant 0 : i32
    %c0_i32_0 = arith.constant 0 : i32
    %c0_i32_1 = arith.constant 0 : i32
    return %c0_i32, %c0_i32_0 : i32, i32
  }
  func.func @transform_6(%arg0: i32) -> (i32, i32) {
    %c0_i32 = arith.constant 0 : i32
    %c0_i32_0 = arith.constant 0 : i32
    %c0_i32_1 = arith.constant 0 : i32
    return %c0_i32, %c0_i32_0 : i32, i32
  }
  func.func @transform_7(%arg0: i32) -> (i32, i32) {
    %c0_i32 = arith.constant 0 : i32
    %c0_i32_0 = arith.constant 0 : i32
    %c0_i32_1 = arith.constant 0 : i32
    return %c0_i32, %c0_i32_0 : i32, i32
  }
  func.func @transform_8(%arg0: i32) -> (i32, i32) {
    %c0_i32 = arith.constant 0 : i32
    %c0_i32_0 = arith.constant 0 : i32
    return %arg0, %c0_i32 : i32, i32
  }
}

</mosaic_0001>

<llo_original>
// kernel: link_predictor_forward.2
$region0: #{link_predictor_forward.2}
  #allocation0 [shape = 'u32[]', space=smem, size = 0x4, offset = 0x4, fixed_abs, tag = 'smem constant byte address 0x4 - core index']
  #allocation1 [shape = 'u32[144,128]{1,0:T(1,128)}', space=vmem, size = 0x12000, scoped, tag = 'internal scratch']
  #allocation2 [shape = 'f32[128,128]{1,0:T(8,128)}', space=vmem, size = 0x10000, scoped, tag = 'scratch operand']
  #allocation3 [shape = 'bf16[256,128]{1,0:T(8,128)(2,1)}', space=vmem, size = 0x10000, scoped, tag = 'scratch operand']
  %s0 = inlined_call_operand.vmem [shape: bf16[256,256], index: 0, kind: input, shape index: {}]
  %s1 = inlined_call_operand.vmem [shape: bf16[256,128], index: 1, kind: input, shape index: {}]
  %s2 = inlined_call_operand.vmem [shape: bf16[128,128], index: 2, kind: input, shape index: {}]
  %s3 = inlined_call_operand.vmem [shape: f32[1,128], index: 3, kind: input, shape index: {}]
  %s4 = inlined_call_operand.vmem [shape: bf16[128,128], index: 4, kind: input, shape index: {}]
  %s5 = inlined_call_operand.vmem [shape: f32[1,128], index: 5, kind: input, shape index: {}]
  %s6 = inlined_call_operand.vmem [shape: f32[256,128], index: 6, kind: output, shape index: {}]
  %s7 = sld [smem:[#allocation0]]
  $region118: #{link_predictor_forward.2} parent=0
    _
  %s9 = ssub.s32 1, %s7
  %s10 = scalar_select 0, %s9, %s7
  $region1: #{link_predictor_forward.2} parent=0
    #allocation4 [shape = 'u8[65536]{0}', space=vmem, size = 0x10000, scoped, tag = 'input window, operand 0']
    loop: start=0, step=1, limit=10
    $region2: #{link_predictor_forward.2} parent=1 // loop_pre_header
      _
    $region3: #{link_predictor_forward.2} parent=1 // loop_header
      %s12 = sphi 0, %s16
      %p13 = scmp.ge.s32.totalorder %s12, 10
      %s19 = sphi 0, %s38
      %s20 = sphi 0, %s34
      %s21 = sphi 0, %s30
      %s22 = sphi 0, %s19
      %s23 = sphi 0, %s20
      %s24 = sphi 0, %s21
      %s25 = sphi 0, %s22
      %s26 = sphi 0, %s23
      %s27 = sphi 0, %s24
      %s43 = sphi 0, %s45
      %s46 = sphi 0, %s43
      %s47 = sphi 0, %s46
      %s63 = sphi 0, %s47
      %s69 = sphi 0, %s71
      %s72 = sphi 0, %s69
      %s73 = sphi 0, %s72
      %s89 = sphi 0, %s73
      %s93 = sphi 0, %s93
      %s95 = sphi 0, %s93
      %s96 = sphi 0, %s95
      %s110 = sphi 0, %s96
      %s114 = sphi 0, %s114
      %s116 = sphi 0, %s114
      %s117 = sphi 0, %s116
      %s131 = sphi 0, %s117
      %s135 = sphi 0, %s135
      %s137 = sphi 0, %s135
      %s138 = sphi 0, %s137
      %s152 = sphi 0, %s138
      %s156 = sphi 0, %s156
      %s158 = sphi 0, %s156
      %s159 = sphi 0, %s158
      %s173 = sphi 0, %s159
      %s179 = sphi 0, %s181
      %s182 = sphi 0, %s179
      %s183 = sphi 0, %s182
      %s199 = sphi 0, %s183
    $region4: #{link_predictor_forward.2} parent=1 // loop_header_branch
      %15 = sbr.rel (%p13) target = $region8
    $region5: #{link_predictor_forward.2} parent=1 // loop_body
      %s17 = ssub.s32 %s12, 1
      %s18 = ssub.s32 %s12, 2
      %s28 = sadd.s32 1, %s21
      %p29 = scmp.ge.s32.totalorder %s28, 2
      %s30 = scalar_select %p29, 0, %s28
      %s31 = sadd.s32 1, %s20
      %s32 = scalar_select %p29, %s31, %s20
      %p33 = scmp.ge.s32.totalorder %s32, 2
      %s34 = scalar_select %p33, 0, %s32
      %s35 = sadd.s32 1, %s19
      %s36 = scalar_select %p33, %s35, %s19
      %p37 = scmp.ge.s32.totalorder %s36, 2
      %s38 = scalar_select %p37, 0, %s36
      %s39 = ssub.s32 %s20, %s34
      %s40 = ssub.s32 %s21, %s30
      %s41 = sor.u32 %s39, %s40
      %p42 = scmp.eq.s32.totalorder %s41, 0
      %s44 = sadd.s32 %s43, 1
      %s45 = scalar_select %p42, %s43, %s44
      %p48 = pneg %p42
      %p49 = scmp.eq.s32.totalorder %s12, 7
      %p50 = por %p48, %p49
      %p51 = scmp.ne.s32.totalorder %s43, %s46
      %p52 = scmp.eq.s32.totalorder %s12, 0
      %p53 = por %p51, %p52
      %p54 = scmp.ne.s32.totalorder %s43, %s46
      %p55 = scmp.eq.s32.totalorder %s17, 7
      %p56 = por %p54, %p55
      %p57 = scmp.ne.s32.totalorder %s46, %s47
      %p58 = scmp.eq.s32.totalorder %s17, 0
      %p59 = por %p57, %p58
      %p60 = scmp.ne.s32.totalorder %s46, %s47
      %p61 = scmp.eq.s32.totalorder %s18, 7
      %p62 = por %p60, %p61
      %p64 = scmp.ne.s32.totalorder %s47, %s63
      %p65 = scmp.eq.s32.totalorder %s18, 0
      %p66 = por %p64, %p65
      %s67 = ssub.s32 %s21, %s30
      %p68 = scmp.eq.s32.totalorder %s67, 0
      %s70 = sadd.s32 %s69, 1
      %s71 = scalar_select %p68, %s69, %s70
      %p74 = pneg %p68
      %p75 = scmp.eq.s32.totalorder %s12, 7
      %p76 = por %p74, %p75
      %p77 = scmp.ne.s32.totalorder %s69, %s72
      %p78 = scmp.eq.s32.totalorder %s12, 0
      %p79 = por %p77, %p78
      %p80 = scmp.ne.s32.totalorder %s69, %s72
      %p81 = scmp.eq.s32.totalorder %s17, 7
      %p82 = por %p80, %p81
      %p83 = scmp.ne.s32.totalorder %s72, %s73
      %p84 = scmp.eq.s32.totalorder %s17, 0
      %p85 = por %p83, %p84
      %p86 = scmp.ne.s32.totalorder %s72, %s73
      %p87 = scmp.eq.s32.totalorder %s18, 7
      %p88 = por %p86, %p87
      %p90 = scmp.ne.s32.totalorder %s73, %s89
      %p91 = scmp.eq.s32.totalorder %s18, 0
      %p92 = por %p90, %p91
      %s94 = sadd.s32 %s93, 1
      %p97 = scmp.eq.s32.totalorder %s12, 7
      %p98 = scmp.ne.s32.totalorder %s93, %s95
      %p99 = scmp.eq.s32.totalorder %s12, 0
      %p100 = por %p98, %p99
      %p101 = scmp.ne.s32.totalorder %s93, %s95
      %p102 = scmp.eq.s32.totalorder %s17, 7
      %p103 = por %p101, %p102
      %p104 = scmp.ne.s32.totalorder %s95, %s96
      %p105 = scmp.eq.s32.totalorder %s17, 0
      %p106 = por %p104, %p105
      %p107 = scmp.ne.s32.totalorder %s95, %s96
      %p108 = scmp.eq.s32.totalorder %s18, 7
      %p109 = por %p107, %p108
      %p111 = scmp.ne.s32.totalorder %s96, %s110
      %p112 = scmp.eq.s32.totalorder %s18, 0
      %p113 = por %p111, %p112
      %s115 = sadd.s32 %s114, 1
      %p118 = scmp.eq.s32.totalorder %s12, 7
      %p119 = scmp.ne.s32.totalorder %s114, %s116
      %p120 = scmp.eq.s32.totalorder %s12, 0
      %p121 = por %p119, %p120
      %p122 = scmp.ne.s32.totalorder %s114, %s116
      %p123 = scmp.eq.s32.totalorder %s17, 7
      %p124 = por %p122, %p123
      %p125 = scmp.ne.s32.totalorder %s116, %s117
      %p126 = scmp.eq.s32.totalorder %s17, 0
      %p127 = por %p125, %p126
      %p128 = scmp.ne.s32.totalorder %s116, %s117
      %p129 = scmp.eq.s32.totalorder %s18, 7
      %p130 = por %p128, %p129
      %p132 = scmp.ne.s32.totalorder %s117, %s131
      %p133 = scmp.eq.s32.totalorder %s18, 0
      %p134 = por %p132, %p133
      %s136 = sadd.s32 %s135, 1
      %p139 = scmp.eq.s32.totalorder %s12, 7
      %p140 = scmp.ne.s32.totalorder %s135, %s137
      %p141 = scmp.eq.s32.totalorder %s12, 0
      %p142 = por %p140, %p141
      %p143 = scmp.ne.s32.totalorder %s135, %s137
      %p144 = scmp.eq.s32.totalorder %s17, 7
      %p145 = por %p143, %p144
      %p146 = scmp.ne.s32.totalorder %s137, %s138
      %p147 = scmp.eq.s32.totalorder %s17, 0
      %p148 = por %p146, %p147
      %p149 = scmp.ne.s32.totalorder %s137, %s138
      %p150 = scmp.eq.s32.totalorder %s18, 7
      %p151 = por %p149, %p150
      %p153 = scmp.ne.s32.totalorder %s138, %s152
      %p154 = scmp.eq.s32.totalorder %s18, 0
      %p155 = por %p153, %p154
      %s157 = sadd.s32 %s156, 1
      %p160 = scmp.eq.s32.totalorder %s12, 7
      %p161 = scmp.ne.s32.totalorder %s156, %s158
      %p162 = scmp.eq.s32.totalorder %s12, 0
      %p163 = por %p161, %p162
      %p164 = scmp.ne.s32.totalorder %s156, %s158
      %p165 = scmp.eq.s32.totalorder %s17, 7
      %p166 = por %p164, %p165
      %p167 = scmp.ne.s32.totalorder %s158, %s159
      %p168 = scmp.eq.s32.totalorder %s17, 0
      %p169 = por %p167, %p168
      %p170 = scmp.ne.s32.totalorder %s158, %s159
      %p171 = scmp.eq.s32.totalorder %s18, 7
      %p172 = por %p170, %p171
      %p174 = scmp.ne.s32.totalorder %s159, %s173
      %p175 = scmp.eq.s32.totalorder %s18, 0
      %p176 = por %p174, %p175
      %s177 = ssub.s32 %s20, %s34
      %p178 = scmp.eq.s32.totalorder %s177, 0
      %s180 = sadd.s32 %s179, 1
      %s181 = scalar_select %p178, %s179, %s180
      %p184 = pneg %p178
      %p185 = scmp.eq.s32.totalorder %s12, 7
      %p186 = por %p184, %p185
      %p187 = scmp.ne.s32.totalorder %s179, %s182
      %p188 = scmp.eq.s32.totalorder %s12, 0
      %p189 = por %p187, %p188
      %p190 = scmp.ne.s32.totalorder %s179, %s182
      %p191 = scmp.eq.s32.totalorder %s17, 7
      %p192 = por %p190, %p191
      %p193 = scmp.ne.s32.totalorder %s182, %s183
      %p194 = scmp.eq.s32.totalorder %s17, 0
      %p195 = por %p193, %p194
      %p196 = scmp.ne.s32.totalorder %s182, %s183
      %p197 = scmp.eq.s32.totalorder %s18, 7
      %p198 = por %p196, %p197
      %p200 = scmp.ne.s32.totalorder %s183, %s199
      %p201 = scmp.eq.s32.totalorder %s18, 0
      %p202 = por %p200, %p201
      %p203 = scmp.le.s32.totalorder 1, %s12
      %p204 = scmp.lt.s32.totalorder %s12, 9
      %p205 = pnand %p203, %p204
      %p206 = pneg %p205
      // Predicated region
      $region9: #{link_predictor_forward.2} parent=5 // pred_check
        _
      $region10: #{link_predictor_forward.2} parent=5 // pred_check_branch
        %208 = sbr.rel (%p205) target = $region12
      $region11: #{link_predictor_forward.2} parent=5 // pred_region
        %s209 = ssub.s32 %s12, 1
        // Predicated region
        $region13: #{link_predictor_forward.2} parent=11 // pred_check
          %p210 = pneg %p106
        $region14: #{link_predictor_forward.2} parent=11 // pred_check_branch
          %212 = sbr.rel (%p210) target = $region16
        $region15: #{link_predictor_forward.2} parent=11 // pred_region
          _
        $region16: #{link_predictor_forward.2} parent=11 // pred_fallthru
          _
        // Predicated region
        $region17: #{link_predictor_forward.2} parent=11 // pred_check
          %p213 = pneg %p127
        $region18: #{link_predictor_forward.2} parent=11 // pred_check_branch
          %215 = sbr.rel (%p213) target = $region20
        $region19: #{link_predictor_forward.2} parent=11 // pred_region
          _
        $region20: #{link_predictor_forward.2} parent=11 // pred_fallthru
          _
        // Predicated region
        $region21: #{link_predictor_forward.2} parent=11 // pred_check
          %p216 = pneg %p148
        $region22: #{link_predictor_forward.2} parent=11 // pred_check_branch
          %218 = sbr.rel (%p216) target = $region24
        $region23: #{link_predictor_forward.2} parent=11 // pred_region
          _
        $region24: #{link_predictor_forward.2} parent=11 // pred_fallthru
          _
        // Predicated region
        $region25: #{link_predictor_forward.2} parent=11 // pred_check
          %p219 = pneg %p169
        $region26: #{link_predictor_forward.2} parent=11 // pred_check_branch
          %221 = sbr.rel (%p219) target = $region28
        $region27: #{link_predictor_forward.2} parent=11 // pred_region
          _
        $region28: #{link_predictor_forward.2} parent=11 // pred_fallthru
          _
      $region12: #{link_predictor_forward.2} parent=5 // pred_fallthru
        _
      %p222 = scmp.lt.s32.totalorder %s12, 8
      // Predicated region
      $region29: #{link_predictor_forward.2} parent=5 // pred_check
        %p223 = pneg %p222
      $region30: #{link_predictor_forward.2} parent=5 // pred_check_branch
        %225 = sbr.rel (%p223) target = $region32
      $region31: #{link_predictor_forward.2} parent=5 // pred_region
        // Predicated region
        $region33: #{link_predictor_forward.2} parent=31 // pred_check
          %p226 = pneg %p53
        $region34: #{link_predictor_forward.2} parent=31 // pred_check_branch
          %228 = sbr.rel (%p226) target = $region36
        $region35: #{link_predictor_forward.2} parent=31 // pred_region
          %s229 = sand.u32 %s43, 1
          %s230 = sand.u32 %s43, 1
          %s231 = smul.addr %s230, 64
          %s232 = scalar_lea.vmem [#allocation4], %s231
          %s233 = smul.u32 16, %s20
          %s234 = smul.addr %s233, 2
          %s235 = sadd.s32 %s21, %s234
          %s236 = smul.addr %s235, 4
          %s237 = scalar_lea.vmem %s0, %s236
          // Predicated region
          $region37: #{link_predictor_forward.2} parent=35 // pred_check
            _
          $region38: #{link_predictor_forward.2} parent=35 // pred_check_branch
            %239 = sbr.rel (0) target = $region40
          $region39: #{link_predictor_forward.2} parent=35 // pred_region
            // Predicated region
            $region41: #{link_predictor_forward.2} parent=39 // pred_check
              _
            $region42: #{link_predictor_forward.2} parent=39 // pred_check_branch
              %241 = sbr.rel target = $region44
            $region43: #{link_predictor_forward.2} parent=39 // pred_region
              // Predicated region
              $region56: #{link_predictor_forward.2} parent=43 // pred_check
                _
              $region57: #{link_predictor_forward.2} parent=43 // pred_check_branch
                %287 = sbr.rel (0) target = $region59
              $region58: #{link_predictor_forward.2} parent=43 // pred_region
                loop: start=0, step=1, limit=1
                $region60: #{link_predictor_forward.2} parent=58 // loop_pre_header
                  _
                $region61: #{link_predictor_forward.2} parent=58 // loop_header
                  %s289 = sphi 0, %s293
                  %p290 = scmp.ge.s32.totalorder %s289, 1
                  %s294 = sphi %s237, %s237
                  %s295 = sphi %s232, %s232
                $region62: #{link_predictor_forward.2} parent=58 // loop_header_branch
                  %292 = sbr.rel (%p290) target = $region66
                $region63: #{link_predictor_forward.2} parent=58 // loop_body
                  _
                $region64: #{link_predictor_forward.2} parent=58 // loop_footer
                  %s293 = sadd.s32 1, %s289
                $region65: #{link_predictor_forward.2} parent=58 // loop_footer_branch
                  %288 = sbr.rel target = $region61
                $region66: #{link_predictor_forward.2} parent=58 // loop_exit
                  _
                %s297 = ssub.s32 16, 1
                loop: start=0, step=1, limit=1
                $region67: #{link_predictor_forward.2} parent=58 // loop_pre_header
                  _
                $region68: #{link_predictor_forward.2} parent=58 // loop_header
                  %s299 = sphi 0, %s303
                  %p300 = scmp.ge.s32.totalorder %s299, 1
                  %s304 = sphi %s237, %s237
                  %s305 = sphi %s232, %s232
                $region69: #{link_predictor_forward.2} parent=58 // loop_header_branch
                  %302 = sbr.rel (%p300) target = $region73
                $region70: #{link_predictor_forward.2} parent=58 // loop_body
                  %v306 = vld [vmem:[%s304] sm:%s297]
                  %307 = vst [vmem:[%s305] sm:%s297] %v306
                  %v308 = vld [vmem:[%s304 + $0x8] sm:%s297]
                  %309 = vst [vmem:[%s305 + $0x4] sm:%s297] %v308
                  %v310 = vld [vmem:[%s304 + $0x10] sm:%s297]
                  %311 = vst [vmem:[%s305 + $0x8] sm:%s297] %v310
                  %v312 = vld [vmem:[%s304 + $0x18] sm:%s297]
                  %313 = vst [vmem:[%s305 + $0xc] sm:%s297] %v312
                  %v314 = vld [vmem:[%s304 + $0x20] sm:%s297]
                  %315 = vst [vmem:[%s305 + $0x10] sm:%s297] %v314
                  %v316 = vld [vmem:[%s304 + $0x28] sm:%s297]
                  %317 = vst [vmem:[%s305 + $0x14] sm:%s297] %v316
                  %v318 = vld [vmem:[%s304 + $0x30] sm:%s297]
                  %319 = vst [vmem:[%s305 + $0x18] sm:%s297] %v318
                  %v320 = vld [vmem:[%s304 + $0x38] sm:%s297]
                  %321 = vst [vmem:[%s305 + $0x1c] sm:%s297] %v320
                  %v322 = vld [vmem:[%s304 + $0x40] sm:%s297]
                  %323 = vst [vmem:[%s305 + $0x20] sm:%s297] %v322
                  %v324 = vld [vmem:[%s304 + $0x48] sm:%s297]
                  %325 = vst [vmem:[%s305 + $0x24] sm:%s297] %v324
                  %v326 = vld [vmem:[%s304 + $0x50] sm:%s297]
                  %327 = vst [vmem:[%s305 + $0x28] sm:%s297] %v326
                  %v328 = vld [vmem:[%s304 + $0x58] sm:%s297]
                  %329 = vst [vmem:[%s305 + $0x2c] sm:%s297] %v328
                  %v330 = vld [vmem:[%s304 + $0x60] sm:%s297]
                  %331 = vst [vmem:[%s305 + $0x30] sm:%s297] %v330
                  %v332 = vld [vmem:[%s304 + $0x68] sm:%s297]
                  %333 = vst [vmem:[%s305 + $0x34] sm:%s297] %v332
                  %v334 = vld [vmem:[%s304 + $0x70] sm:%s297]
                  %335 = vst [vmem:[%s305 + $0x38] sm:%s297] %v334
                  %v336 = vld [vmem:[%s304 + $0x78] sm:%s297]
                  %337 = vst [vmem:[%s305 + $0x3c] sm:%s297] %v336
                $region71: #{link_predictor_forward.2} parent=58 // loop_footer
                  %s303 = sadd.s32 1, %s299
                $region72: #{link_predictor_forward.2} parent=58 // loop_footer_branch
                  %298 = sbr.rel target = $region68
                $region73: #{link_predictor_forward.2} parent=58 // loop_exit
                  _
              $region59: #{link_predictor_forward.2} parent=43 // pred_fallthru
                _
            $region44: #{link_predictor_forward.2} parent=39 // pred_fallthru
              _
            // Predicated region
            $region45: #{link_predictor_forward.2} parent=39 // pred_check
              _
            $region46: #{link_predictor_forward.2} parent=39 // pred_check_branch
              %243 = sbr.rel (0) target = $region48
            $region47: #{link_predictor_forward.2} parent=39 // pred_region
              %s245 = ssub.s32 16, 1
              loop: start=0, step=1, limit=1
              $region49: #{link_predictor_forward.2} parent=47 // loop_pre_header
                _
              $region50: #{link_predictor_forward.2} parent=47 // loop_header
                %s247 = sphi 0, %s251
                %p248 = scmp.ge.s32.totalorder %s247, 1
                %s252 = sphi %s237, %s237
                %s253 = sphi %s232, %s232
              $region51: #{link_predictor_forward.2} parent=47 // loop_header_branch
                %250 = sbr.rel (%p248) target = $region55
              $region52: #{link_predictor_forward.2} parent=47 // loop_body
                %v254 = vld [vmem:[%s252] sm:%s245]
                %255 = vst [vmem:[%s253] sm:%s245] %v254
                %v256 = vld [vmem:[%s252 + $0x8] sm:%s245]
                %257 = vst [vmem:[%s253 + $0x4] sm:%s245] %v256
                %v258 = vld [vmem:[%s252 + $0x10] sm:%s245]
                %259 = vst [vmem:[%s253 + $0x8] sm:%s245] %v258
                %v260 = vld [vmem:[%s252 + $0x18] sm:%s245]
                %261 = vst [vmem:[%s253 + $0xc] sm:%s245] %v260
                %v262 = vld [vmem:[%s252 + $0x20] sm:%s245]
                %263 = vst [vmem:[%s253 + $0x10] sm:%s245] %v262
                %v264 = vld [vmem:[%s252 + $0x28] sm:%s245]
                %265 = vst [vmem:[%s253 + $0x14] sm:%s245] %v264
                %v266 = vld [vmem:[%s252 + $0x30] sm:%s245]
                %267 = vst [vmem:[%s253 + $0x18] sm:%s245] %v266
                %v268 = vld [vmem:[%s252 + $0x38] sm:%s245]
                %269 = vst [vmem:[%s253 + $0x1c] sm:%s245] %v268
                %v270 = vld [vmem:[%s252 + $0x40] sm:%s245]
                %271 = vst [vmem:[%s253 + $0x20] sm:%s245] %v270
                %v272 = vld [vmem:[%s252 + $0x48] sm:%s245]
                %273 = vst [vmem:[%s253 + $0x24] sm:%s245] %v272
                %v274 = vld [vmem:[%s252 + $0x50] sm:%s245]
                %275 = vst [vmem:[%s253 + $0x28] sm:%s245] %v274
                %v276 = vld [vmem:[%s252 + $0x58] sm:%s245]
                %277 = vst [vmem:[%s253 + $0x2c] sm:%s245] %v276
                %v278 = vld [vmem:[%s252 + $0x60] sm:%s245]
                %279 = vst [vmem:[%s253 + $0x30] sm:%s245] %v278
                %v280 = vld [vmem:[%s252 + $0x68] sm:%s245]
                %281 = vst [vmem:[%s253 + $0x34] sm:%s245] %v280
                %v282 = vld [vmem:[%s252 + $0x70] sm:%s245]
                %283 = vst [vmem:[%s253 + $0x38] sm:%s245] %v282
                %v284 = vld [vmem:[%s252 + $0x78] sm:%s245]
                %285 = vst [vmem:[%s253 + $0x3c] sm:%s245] %v284
              $region53: #{link_predictor_forward.2} parent=47 // loop_footer
                %s251 = sadd.s32 1, %s247
              $region54: #{link_predictor_forward.2} parent=47 // loop_footer_branch
                %246 = sbr.rel target = $region50
              $region55: #{link_predictor_forward.2} parent=47 // loop_exit
                _
            $region48: #{link_predictor_forward.2} parent=39 // pred_fallthru
              _
          $region40: #{link_predictor_forward.2} parent=35 // pred_fallthru
            _
          %338 = vnop
        $region36: #{link_predictor_forward.2} parent=31 // pred_fallthru
          _
        // Predicated region
        $region74: #{link_predictor_forward.2} parent=31 // pred_check
          %p339 = pneg %p79
        $region75: #{link_predictor_forward.2} parent=31 // pred_check_branch
          %341 = sbr.rel (%p339) target = $region77
        $region76: #{link_predictor_forward.2} parent=31 // pred_region
          %s342 = smul.u32 16, %s21
          %p343 = scmp.lt.s32.totalorder %s342, 31
          %s344 = scalar_select %p343, %s342, 31
          %s345 = smul.addr %s344, 4
          %s346 = scalar_lea.vmem %s1, %s345
          %s347 = smul.u32 16, %s21
        $region77: #{link_predictor_forward.2} parent=31 // pred_fallthru
          _
      $region32: #{link_predictor_forward.2} parent=5 // pred_fallthru
        _
      %p348 = scmp.le.s32.totalorder 1, %s12
      %p349 = scmp.lt.s32.totalorder %s12, 9
      %p350 = pnand %p348, %p349
      %p351 = pneg %p350
      // Predicated region
      $region78: #{link_predictor_forward.2} parent=5 // pred_check
        _
      $region79: #{link_predictor_forward.2} parent=5 // pred_check_branch
        %353 = sbr.rel (%p350) target = $region81
      $region80: #{link_predictor_forward.2} parent=5 // pred_region
        %s354 = ssub.s32 %s12, 1
        %s355 = sand.u32 %s46, 1
        %s356 = sand.u32 %s46, 1
        %s357 = smul.addr %s356, 64
        %s358 = scalar_lea.vmem [#allocation4], %s357
        // Predicated region
        $region82: #{link_predictor_forward.2} parent=80 // pred_check
          %p359 = pneg %p59
        $region83: #{link_predictor_forward.2} parent=80 // pred_check_branch
          %361 = sbr.rel (%p359) target = $region85
        $region84: #{link_predictor_forward.2} parent=80 // pred_region
          _
        $region85: #{link_predictor_forward.2} parent=80 // pred_fallthru
          _
        %s362 = sand.u32 %s46, 1
        %s363 = sand.u32 %s46, 1
        %s364 = smul.addr %s363, 64
        %s365 = scalar_lea.vmem [#allocation4], %s364
        %p366 = pneg %p59
        %p367 = pneg %p56
        %s368 = smul.u32 16, %s24
        %p369 = scmp.lt.s32.totalorder %s368, 31
        %s370 = scalar_select %p369, %s368, 31
        %s371 = smul.addr %s370, 4
        %s372 = scalar_lea.vmem %s1, %s371
        %p373 = pneg %p85
        %p374 = pneg %p82
        %p375 = pneg %p106
        %p376 = pneg %p103
        %p377 = pneg %p127
        %p378 = pneg %p124
        %p379 = pneg %p148
        %p380 = pneg %p145
        %p381 = pneg %p169
        %p382 = pneg %p166
        %p383 = pneg %p195
        %p384 = pneg %p192
        %s385 = smul.u32 16, %s23
        %p386 = scmp.lt.s32.totalorder %s385, 31
        %s387 = scalar_select %p386, %s385, 31
        %s388 = smul.addr %s387, 8
        %s389 = scalar_lea.vmem %s6, %s388
        %s390 = smul.u32 16, %s23
        %s391 = smul.u32 16, %s24
        %p392 = scmp.lt.s32.totalorder %s391, 31
        %s393 = scalar_select %p392, %s391, 31
        %s394 = smul.addr %s393, 4
        %s395 = scalar_lea.vmem %s1, %s394
        %s396 = smul.u32 16, %s24
        %s397 = smul.u32 16, %s23
        %p398 = scmp.lt.s32.totalorder %s397, 31
        %s399 = scalar_select %p398, %s397, 31
        %s400 = smul.addr %s399, 8
        %s401 = scalar_lea.vmem %s6, %s400
        %s402 = smul.u32 16, %s23
        %p404 = scmp.eq.s32.totalorder %s24, 0
        // Predicated region
        $region86: #{link_predictor_forward.2} parent=80 // pred_check
          %p405 = pneg %p404
        $region87: #{link_predictor_forward.2} parent=80 // pred_check_branch
          %407 = sbr.rel (%p405) target = $region89
        $region88: #{link_predictor_forward.2} parent=80 // pred_region
          %408 = vst [vmem:[#allocation2] sm:$0xff] 0.0
          %409 = vst [vmem:[#allocation2 + $0x8] sm:$0xff] 0.0
          %410 = vst [vmem:[#allocation2 + $0x10] sm:$0xff] 0.0
          %411 = vst [vmem:[#allocation2 + $0x18] sm:$0xff] 0.0
          %412 = vst [vmem:[#allocation2 + $0x20] sm:$0xff] 0.0
          %413 = vst [vmem:[#allocation2 + $0x28] sm:$0xff] 0.0
          %414 = vst [vmem:[#allocation2 + $0x30] sm:$0xff] 0.0
          %415 = vst [vmem:[#allocation2 + $0x38] sm:$0xff] 0.0
          %416 = vst [vmem:[#allocation2 + $0x40] sm:$0xff] 0.0
          %417 = vst [vmem:[#allocation2 + $0x48] sm:$0xff] 0.0
          %418 = vst [vmem:[#allocation2 + $0x50] sm:$0xff] 0.0
          %419 = vst [vmem:[#allocation2 + $0x58] sm:$0xff] 0.0
          %420 = vst [vmem:[#allocation2 + $0x60] sm:$0xff] 0.0
          %421 = vst [vmem:[#allocation2 + $0x68] sm:$0xff] 0.0
          %422 = vst [vmem:[#allocation2 + $0x70] sm:$0xff] 0.0
          %423 = vst [vmem:[#allocation2 + $0x78] sm:$0xff] 0.0
        $region89: #{link_predictor_forward.2} parent=80 // pred_fallthru
          _
        %p424 = scmp.eq.s32.totalorder %s22, 0
        // Predicated region
        $region90: #{link_predictor_forward.2} parent=80 // pred_check
          %p425 = pneg %p424
        $region91: #{link_predictor_forward.2} parent=80 // pred_check_branch
          %427 = sbr.rel (%p425) target = $region93
        $region92: #{link_predictor_forward.2} parent=80 // pred_region
          %v428 = vld [vmem:[#allocation2] sm:$0xff]
          %v429 = vld [vmem:[#allocation2 + $0x8] sm:$0xff]
          %v430 = vld [vmem:[#allocation2 + $0x10] sm:$0xff]
          %v431 = vld [vmem:[#allocation2 + $0x18] sm:$0xff]
          %v432 = vld [vmem:[#allocation2 + $0x20] sm:$0xff]
          %v433 = vld [vmem:[#allocation2 + $0x28] sm:$0xff]
          %v434 = vld [vmem:[#allocation2 + $0x30] sm:$0xff]
          %v435 = vld [vmem:[#allocation2 + $0x38] sm:$0xff]
          %v436 = vld [vmem:[#allocation2 + $0x40] sm:$0xff]
          %v437 = vld [vmem:[#allocation2 + $0x48] sm:$0xff]
          %v438 = vld [vmem:[#allocation2 + $0x50] sm:$0xff]
          %v439 = vld [vmem:[#allocation2 + $0x58] sm:$0xff]
          %v440 = vld [vmem:[#allocation2 + $0x60] sm:$0xff]
          %v441 = vld [vmem:[#allocation2 + $0x68] sm:$0xff]
          %v442 = vld [vmem:[#allocation2 + $0x70] sm:$0xff]
          %v443 = vld [vmem:[#allocation2 + $0x78] sm:$0xff]
          %v444 = vld [vmem:[%s358] sm:$0xf]
          %v445 = vld [vmem:[%s358 + $0x4] sm:$0xf]
          %v446 = vld [vmem:[%s358 + $0x8] sm:$0xf]
          %v447 = vld [vmem:[%s358 + $0xc] sm:$0xf]
          %v448 = vld [vmem:[%s358 + $0x10] sm:$0xf]
          %v449 = vld [vmem:[%s358 + $0x14] sm:$0xf]
          %v450 = vld [vmem:[%s358 + $0x18] sm:$0xf]
          %v451 = vld [vmem:[%s358 + $0x1c] sm:$0xf]
          %v452 = vld [vmem:[%s358 + $0x20] sm:$0xf]
          %v453 = vld [vmem:[%s358 + $0x24] sm:$0xf]
          %v454 = vld [vmem:[%s358 + $0x28] sm:$0xf]
          %v455 = vld [vmem:[%s358 + $0x2c] sm:$0xf]
          %v456 = vld [vmem:[%s358 + $0x30] sm:$0xf]
          %v457 = vld [vmem:[%s358 + $0x34] sm:$0xf]
          %v458 = vld [vmem:[%s358 + $0x38] sm:$0xf]
          %v459 = vld [vmem:[%s358 + $0x3c] sm:$0xf]
          %v460 = vld [vmem:[%s395] sm:$0xf]
          %v461 = vld [vmem:[%s395 + $0x4] sm:$0xf]
          %v462 = vld [vmem:[%s395 + $0x8] sm:$0xf]
          %v463 = vld [vmem:[%s395 + $0xc] sm:$0xf]
          %v464 = vld [vmem:[%s395 + $0x10] sm:$0xf]
          %v465 = vld [vmem:[%s395 + $0x14] sm:$0xf]
          %v466 = vld [vmem:[%s395 + $0x18] sm:$0xf]
          %v467 = vld [vmem:[%s395 + $0x1c] sm:$0xf]
          %v468 = vld [vmem:[%s395 + $0x20] sm:$0xf]
          %v469 = vld [vmem:[%s395 + $0x24] sm:$0xf]
          %v470 = vld [vmem:[%s395 + $0x28] sm:$0xf]
          %v471 = vld [vmem:[%s395 + $0x2c] sm:$0xf]
          %v472 = vld [vmem:[%s395 + $0x30] sm:$0xf]
          %v473 = vld [vmem:[%s395 + $0x34] sm:$0xf]
          %v474 = vld [vmem:[%s395 + $0x38] sm:$0xf]
          %v475 = vld [vmem:[%s395 + $0x3c] sm:$0xf]
          %v492 = vunpack.c.l.b16 %v444
          %v493 = vunpack.c.l.b16 %v445
          %v494 = vunpack.c.l.b16 %v446
          %v495 = vunpack.c.l.b16 %v447
          %v496 = vunpack.c.l.b16 %v448
          %v497 = vunpack.c.l.b16 %v449
          %v498 = vunpack.c.l.b16 %v450
          %v499 = vunpack.c.l.b16 %v451
          %v500 = vunpack.c.l.b16 %v452
          %v501 = vunpack.c.l.b16 %v453
          %v502 = vunpack.c.l.b16 %v454
          %v503 = vunpack.c.l.b16 %v455
          %v504 = vunpack.c.l.b16 %v456
          %v505 = vunpack.c.l.b16 %v457
          %v506 = vunpack.c.l.b16 %v458
          %v507 = vunpack.c.l.b16 %v459
          %v508 = vpack.c.b16 %v493, %v492
          %v509 = vpack.c.b16 %v495, %v494
          %v510 = vpack.c.b16 %v497, %v496
          %v511 = vpack.c.b16 %v499, %v498
          %v512 = vpack.c.b16 %v501, %v500
          %v513 = vpack.c.b16 %v503, %v502
          %v514 = vpack.c.b16 %v505, %v504
          %v515 = vpack.c.b16 %v507, %v506
          %v540 = vunpack.c.l.b16 %v460
          %v541 = vunpack.c.l.b16 %v461
          %v542 = vunpack.c.l.b16 %v462
          %v543 = vunpack.c.l.b16 %v463
          %v544 = vunpack.c.l.b16 %v464
          %v545 = vunpack.c.l.b16 %v465
          %v546 = vunpack.c.l.b16 %v466
          %v547 = vunpack.c.l.b16 %v467
          %v548 = vunpack.c.l.b16 %v468
          %v549 = vunpack.c.l.b16 %v469
          %v550 = vunpack.c.l.b16 %v470
          %v551 = vunpack.c.l.b16 %v471
          %v552 = vunpack.c.l.b16 %v472
          %v553 = vunpack.c.l.b16 %v473
          %v554 = vunpack.c.l.b16 %v474
          %v555 = vunpack.c.l.b16 %v475
          %v556 = vpack.c.b16 %v541, %v540
          %v557 = vpack.c.b16 %v543, %v542
          %v558 = vpack.c.b16 %v545, %v544
          %v559 = vpack.c.b16 %v547, %v546
          %v560 = vpack.c.b16 %v549, %v548
          %v561 = vpack.c.b16 %v551, %v550
          %v562 = vpack.c.b16 %v553, %v552
          %v563 = vpack.c.b16 %v555, %v554
          %572 = vmatprep.subr.bf16.mxu0 0
          %573 = vmatpush1.bf16.msra.mxu0 %v563
          %574 = vmatprep.subr.bf16.mxu0 0
          %575 = vmatpush1.bf16.msra.mxu0 %v562
          %576 = vmatprep.subr.bf16.mxu0 0
          %577 = vmatpush1.bf16.msra.mxu0 %v561
          %578 = vmatprep.subr.bf16.mxu0 0
          %579 = vmatpush1.bf16.msra.mxu0 %v560
          %580 = vmatprep.subr.bf16.mxu0 0
          %581 = vmatpush1.bf16.msra.mxu0 %v559
          %582 = vmatprep.subr.bf16.mxu0 0
          %583 = vmatpush1.bf16.msra.mxu0 %v558
          %584 = vmatprep.subr.bf16.mxu0 0
          %585 = vmatpush1.bf16.msra.mxu0 %v557
          %586 = vmatprep.subr.bf16.mxu0 0
          %587 = vmatpush1.bf16.msra.mxu0 %v556
          %588 = vmatprep.subr.bf16.mxu0 0
          %589 = vmatpush2.bf16.msra.mxu0 0
          %590 = vmatprep.subr.bf16.mxu0 0
          %591 = vmatpush2.bf16.msra.mxu0 0
          %592 = vmatprep.subr.bf16.mxu0 0
          %593 = vmatpush2.bf16.msra.mxu0 0
          %594 = vmatprep.subr.bf16.mxu0 0
          %595 = vmatpush2.bf16.msra.mxu0 0
          %596 = vmatprep.subr.bf16.mxu0 0
          %597 = vmatpush2.bf16.msra.mxu0 0
          %598 = vmatprep.subr.bf16.mxu0 0
          %599 = vmatpush2.bf16.msra.mxu0 0
          %600 = vmatprep.subr.bf16.mxu0 0
          %601 = vmatpush2.bf16.msra.mxu0 0
          %602 = vmatprep.subr.bf16.mxu0 0
          %603 = vmatpush2.bf16.msra.mxu0 0
          %604 = vmatprep.mubr.bf16.mxu0 0
          %605 = vmatmul.mubr.bf16.gmra.mxu0 %v508
          %v606 = vpop.f32.mrf.mxu0
          %v607 = vadd.f32 0.0, %v606
          %v608 = vpop.f32.mrf.mxu0
          %v609 = vpop.f32.mrf.mxu0
          %v610 = vadd.f32 0.0, %v609
          %v611 = vpop.f32.mrf.mxu0
          %612 = vmatprep.mubr.bf16.mxu0 0
          %613 = vmatmul.mubr.bf16.gmra.mxu0 %v509
          %v614 = vpop.f32.mrf.mxu0
          %v615 = vadd.f32 0.0, %v614
          %v616 = vpop.f32.mrf.mxu0
          %v617 = vpop.f32.mrf.mxu0
          %v618 = vadd.f32 0.0, %v617
          %v619 = vpop.f32.mrf.mxu0
          %620 = vmatprep.mubr.bf16.mxu0 0
          %621 = vmatmul.mubr.bf16.gmra.mxu0 %v510
          %v622 = vpop.f32.mrf.mxu0
          %v623 = vadd.f32 0.0, %v622
          %v624 = vpop.f32.mrf.mxu0
          %v625 = vpop.f32.mrf.mxu0
          %v626 = vadd.f32 0.0, %v625
          %v627 = vpop.f32.mrf.mxu0
          %628 = vmatprep.mubr.bf16.mxu0 0
          %629 = vmatmul.mubr.bf16.gmra.mxu0 %v511
          %v630 = vpop.f32.mrf.mxu0
          %v631 = vadd.f32 0.0, %v630
          %v632 = vpop.f32.mrf.mxu0
          %v633 = vpop.f32.mrf.mxu0
          %v634 = vadd.f32 0.0, %v633
          %v635 = vpop.f32.mrf.mxu0
          %636 = vmatprep.mubr.bf16.mxu0 0
          %637 = vmatmul.mubr.bf16.gmra.mxu0 %v512
          %v638 = vpop.f32.mrf.mxu0
          %v639 = vadd.f32 0.0, %v638
          %v640 = vpop.f32.mrf.mxu0
          %v641 = vpop.f32.mrf.mxu0
          %v642 = vadd.f32 0.0, %v641
          %v643 = vpop.f32.mrf.mxu0
          %644 = vmatprep.mubr.bf16.mxu0 0
          %645 = vmatmul.mubr.bf16.gmra.mxu0 %v513
          %v646 = vpop.f32.mrf.mxu0
          %v647 = vadd.f32 0.0, %v646
          %v648 = vpop.f32.mrf.mxu0
          %v649 = vpop.f32.mrf.mxu0
          %v650 = vadd.f32 0.0, %v649
          %v651 = vpop.f32.mrf.mxu0
          %652 = vmatprep.mubr.bf16.mxu0 0
          %653 = vmatmul.mubr.bf16.gmra.mxu0 %v514
          %v654 = vpop.f32.mrf.mxu0
          %v655 = vadd.f32 0.0, %v654
          %v656 = vpop.f32.mrf.mxu0
          %v657 = vpop.f32.mrf.mxu0
          %v658 = vadd.f32 0.0, %v657
          %v659 = vpop.f32.mrf.mxu0
          %660 = vmatprep.mubr.bf16.mxu0 0
          %661 = vmatmul.mubr.bf16.gmra.mxu0 %v515
          %v662 = vpop.f32.mrf.mxu0
          %v663 = vadd.f32 0.0, %v662
          %v664 = vpop.f32.mrf.mxu0
          %v665 = vpop.f32.mrf.mxu0
          %v666 = vadd.f32 0.0, %v665
          %v667 = vpop.f32.mrf.mxu0
          %668 = vdwg.mxu0
          %v669 = vadd.f32 %v428, %v607
          %v670 = vadd.f32 %v429, %v610
          %v671 = vadd.f32 %v430, %v615
          %v672 = vadd.f32 %v431, %v618
          %v673 = vadd.f32 %v432, %v623
          %v674 = vadd.f32 %v433, %v626
          %v675 = vadd.f32 %v434, %v631
          %v676 = vadd.f32 %v435, %v634
          %v677 = vadd.f32 %v436, %v639
          %v678 = vadd.f32 %v437, %v642
          %v679 = vadd.f32 %v438, %v647
          %v680 = vadd.f32 %v439, %v650
          %v681 = vadd.f32 %v440, %v655
          %v682 = vadd.f32 %v441, %v658
          %v683 = vadd.f32 %v442, %v663
          %v684 = vadd.f32 %v443, %v666
          %685 = vst [vmem:[#allocation2] sm:$0xff] %v669
          %686 = vst [vmem:[#allocation2 + $0x8] sm:$0xff] %v670
          %687 = vst [vmem:[#allocation2 + $0x10] sm:$0xff] %v671
          %688 = vst [vmem:[#allocation2 + $0x18] sm:$0xff] %v672
          %689 = vst [vmem:[#allocation2 + $0x20] sm:$0xff] %v673
          %690 = vst [vmem:[#allocation2 + $0x28] sm:$0xff] %v674
          %691 = vst [vmem:[#allocation2 + $0x30] sm:$0xff] %v675
          %692 = vst [vmem:[#allocation2 + $0x38] sm:$0xff] %v676
          %693 = vst [vmem:[#allocation2 + $0x40] sm:$0xff] %v677
          %694 = vst [vmem:[#allocation2 + $0x48] sm:$0xff] %v678
          %695 = vst [vmem:[#allocation2 + $0x50] sm:$0xff] %v679
          %696 = vst [vmem:[#allocation2 + $0x58] sm:$0xff] %v680
          %697 = vst [vmem:[#allocation2 + $0x60] sm:$0xff] %v681
          %698 = vst [vmem:[#allocation2 + $0x68] sm:$0xff] %v682
          %699 = vst [vmem:[#allocation2 + $0x70] sm:$0xff] %v683
          %700 = vst [vmem:[#allocation2 + $0x78] sm:$0xff] %v684
        $region93: #{link_predictor_forward.2} parent=80 // pred_fallthru
          _
        %p701 = scmp.eq.s32.totalorder %s22, 1
        // Predicated region
        $region94: #{link_predictor_forward.2} parent=80 // pred_check
          %p702 = pneg %p701
        $region95: #{link_predictor_forward.2} parent=80 // pred_check_branch
          %704 = sbr.rel (%p702) target = $region97
        $region96: #{link_predictor_forward.2} parent=80 // pred_region
          %s705 = smul.u32 %s24, 128
          %v706 = vld [vmem:[#allocation2] sm:$0xff]
          %v707 = vld [vmem:[#allocation2 + $0x8] sm:$0xff]
          %v708 = vld [vmem:[#allocation2 + $0x10] sm:$0xff]
          %v709 = vld [vmem:[#allocation2 + $0x18] sm:$0xff]
          %v710 = vld [vmem:[#allocation2 + $0x20] sm:$0xff]
          %v711 = vld [vmem:[#allocation2 + $0x28] sm:$0xff]
          %v712 = vld [vmem:[#allocation2 + $0x30] sm:$0xff]
          %v713 = vld [vmem:[#allocation2 + $0x38] sm:$0xff]
          %v714 = vld [vmem:[#allocation2 + $0x40] sm:$0xff]
          %v715 = vld [vmem:[#allocation2 + $0x48] sm:$0xff]
          %v716 = vld [vmem:[#allocation2 + $0x50] sm:$0xff]
          %v717 = vld [vmem:[#allocation2 + $0x58] sm:$0xff]
          %v718 = vld [vmem:[#allocation2 + $0x60] sm:$0xff]
          %v719 = vld [vmem:[#allocation2 + $0x68] sm:$0xff]
          %v720 = vld [vmem:[#allocation2 + $0x70] sm:$0xff]
          %v721 = vld [vmem:[#allocation2 + $0x78] sm:$0xff]
          %v722 = vld [vmem:[%s358] sm:$0xf]
          %v723 = vld [vmem:[%s358 + $0x4] sm:$0xf]
          %v724 = vld [vmem:[%s358 + $0x8] sm:$0xf]
          %v725 = vld [vmem:[%s358 + $0xc] sm:$0xf]
          %v726 = vld [vmem:[%s358 + $0x10] sm:$0xf]
          %v727 = vld [vmem:[%s358 + $0x14] sm:$0xf]
          %v728 = vld [vmem:[%s358 + $0x18] sm:$0xf]
          %v729 = vld [vmem:[%s358 + $0x1c] sm:$0xf]
          %v730 = vld [vmem:[%s358 + $0x20] sm:$0xf]
          %v731 = vld [vmem:[%s358 + $0x24] sm:$0xf]
          %v732 = vld [vmem:[%s358 + $0x28] sm:$0xf]
          %v733 = vld [vmem:[%s358 + $0x2c] sm:$0xf]
          %v734 = vld [vmem:[%s358 + $0x30] sm:$0xf]
          %v735 = vld [vmem:[%s358 + $0x34] sm:$0xf]
          %v736 = vld [vmem:[%s358 + $0x38] sm:$0xf]
          %v737 = vld [vmem:[%s358 + $0x3c] sm:$0xf]
          %s738 = sshra.s32 %s705, 3
          %s739 = sand.u32 %s705, 7
          %s740 = smul.addr %s738, 4
          %s741 = scalar_lea.vmem [#allocation3], %s740
          %v742 = vld [vmem:[%s741] sm:$0xf]
          %v743 = vld [vmem:[%s741 + $0x4] sm:$0xf]
          %v744 = vld [vmem:[%s741 + $0x8] sm:$0xf]
          %v745 = vld [vmem:[%s741 + $0xc] sm:$0xf]
          %v746 = vld [vmem:[%s741 + $0x10] sm:$0xf]
          %v747 = vld [vmem:[%s741 + $0x14] sm:$0xf]
          %v748 = vld [vmem:[%s741 + $0x18] sm:$0xf]
          %v749 = vld [vmem:[%s741 + $0x1c] sm:$0xf]
          %v750 = vld [vmem:[%s741 + $0x20] sm:$0xf]
          %v751 = vld [vmem:[%s741 + $0x24] sm:$0xf]
          %v752 = vld [vmem:[%s741 + $0x28] sm:$0xf]
          %v753 = vld [vmem:[%s741 + $0x2c] sm:$0xf]
          %v754 = vld [vmem:[%s741 + $0x30] sm:$0xf]
          %v755 = vld [vmem:[%s741 + $0x34] sm:$0xf]
          %v756 = vld [vmem:[%s741 + $0x38] sm:$0xf]
          %v757 = vld [vmem:[%s741 + $0x3c] sm:$0xf]
          %v774 = vunpack.c.l.b16 %v722
          %v775 = vunpack.c.l.b16 %v723
          %v776 = vunpack.c.l.b16 %v724
          %v777 = vunpack.c.l.b16 %v725
          %v778 = vunpack.c.l.b16 %v726
          %v779 = vunpack.c.l.b16 %v727
          %v780 = vunpack.c.l.b16 %v728
          %v781 = vunpack.c.l.b16 %v729
          %v782 = vunpack.c.l.b16 %v730
          %v783 = vunpack.c.l.b16 %v731
          %v784 = vunpack.c.l.b16 %v732
          %v785 = vunpack.c.l.b16 %v733
          %v786 = vunpack.c.l.b16 %v734
          %v787 = vunpack.c.l.b16 %v735
          %v788 = vunpack.c.l.b16 %v736
          %v789 = vunpack.c.l.b16 %v737
          %v790 = vpack.c.b16 %v775, %v774
          %v791 = vpack.c.b16 %v777, %v776
          %v792 = vpack.c.b16 %v779, %v778
          %v793 = vpack.c.b16 %v781, %v780
          %v794 = vpack.c.b16 %v783, %v782
          %v795 = vpack.c.b16 %v785, %v784
          %v796 = vpack.c.b16 %v787, %v786
          %v797 = vpack.c.b16 %v789, %v788
          %v822 = vunpack.c.l.b16 %v742
          %v823 = vunpack.c.l.b16 %v743
          %v824 = vunpack.c.l.b16 %v744
          %v825 = vunpack.c.l.b16 %v745
          %v826 = vunpack.c.l.b16 %v746
          %v827 = vunpack.c.l.b16 %v747
          %v828 = vunpack.c.l.b16 %v748
          %v829 = vunpack.c.l.b16 %v749
          %v830 = vunpack.c.l.b16 %v750
          %v831 = vunpack.c.l.b16 %v751
          %v832 = vunpack.c.l.b16 %v752
          %v833 = vunpack.c.l.b16 %v753
          %v834 = vunpack.c.l.b16 %v754
          %v835 = vunpack.c.l.b16 %v755
          %v836 = vunpack.c.l.b16 %v756
          %v837 = vunpack.c.l.b16 %v757
          %v838 = vpack.c.b16 %v823, %v822
          %v839 = vpack.c.b16 %v825, %v824
          %v840 = vpack.c.b16 %v827, %v826
          %v841 = vpack.c.b16 %v829, %v828
          %v842 = vpack.c.b16 %v831, %v830
          %v843 = vpack.c.b16 %v833, %v832
          %v844 = vpack.c.b16 %v835, %v834
          %v845 = vpack.c.b16 %v837, %v836
          %854 = vmatprep.subr.bf16.mxu0 0
          %855 = vmatpush1.bf16.msra.mxu0 %v845
          %856 = vmatprep.subr.bf16.mxu0 0
          %857 = vmatpush1.bf16.msra.mxu0 %v844
          %858 = vmatprep.subr.bf16.mxu0 0
          %859 = vmatpush1.bf16.msra.mxu0 %v843
          %860 = vmatprep.subr.bf16.mxu0 0
          %861 = vmatpush1.bf16.msra.mxu0 %v842
          %862 = vmatprep.subr.bf16.mxu0 0
          %863 = vmatpush1.bf16.msra.mxu0 %v841
          %864 = vmatprep.subr.bf16.mxu0 0
          %865 = vmatpush1.bf16.msra.mxu0 %v840
          %866 = vmatprep.subr.bf16.mxu0 0
          %867 = vmatpush1.bf16.msra.mxu0 %v839
          %868 = vmatprep.subr.bf16.mxu0 0
          %869 = vmatpush1.bf16.msra.mxu0 %v838
          %870 = vmatprep.subr.bf16.mxu0 0
          %871 = vmatpush2.bf16.msra.mxu0 0
          %872 = vmatprep.subr.bf16.mxu0 0
          %873 = vmatpush2.bf16.msra.mxu0 0
          %874 = vmatprep.subr.bf16.mxu0 0
          %875 = vmatpush2.bf16.msra.mxu0 0
          %876 = vmatprep.subr.bf16.mxu0 0
          %877 = vmatpush2.bf16.msra.mxu0 0
          %878 = vmatprep.subr.bf16.mxu0 0
          %879 = vmatpush2.bf16.msra.mxu0 0
          %880 = vmatprep.subr.bf16.mxu0 0
          %881 = vmatpush2.bf16.msra.mxu0 0
          %882 = vmatprep.subr.bf16.mxu0 0
          %883 = vmatpush2.bf16.msra.mxu0 0
          %884 = vmatprep.subr.bf16.mxu0 0
          %885 = vmatpush2.bf16.msra.mxu0 0
          %886 = vmatprep.mubr.bf16.mxu0 0
          %887 = vmatmul.mubr.bf16.gmra.mxu0 %v790
          %v888 = vpop.f32.mrf.mxu0
          %v889 = vadd.f32 0.0, %v888
          %v890 = vpop.f32.mrf.mxu0
          %v891 = vpop.f32.mrf.mxu0
          %v892 = vadd.f32 0.0, %v891
          %v893 = vpop.f32.mrf.mxu0
          %894 = vmatprep.mubr.bf16.mxu0 0
          %895 = vmatmul.mubr.bf16.gmra.mxu0 %v791
          %v896 = vpop.f32.mrf.mxu0
          %v897 = vadd.f32 0.0, %v896
          %v898 = vpop.f32.mrf.mxu0
          %v899 = vpop.f32.mrf.mxu0
          %v900 = vadd.f32 0.0, %v899
          %v901 = vpop.f32.mrf.mxu0
          %902 = vmatprep.mubr.bf16.mxu0 0
          %903 = vmatmul.mubr.bf16.gmra.mxu0 %v792
          %v904 = vpop.f32.mrf.mxu0
          %v905 = vadd.f32 0.0, %v904
          %v906 = vpop.f32.mrf.mxu0
          %v907 = vpop.f32.mrf.mxu0
          %v908 = vadd.f32 0.0, %v907
          %v909 = vpop.f32.mrf.mxu0
          %910 = vmatprep.mubr.bf16.mxu0 0
          %911 = vmatmul.mubr.bf16.gmra.mxu0 %v793
          %v912 = vpop.f32.mrf.mxu0
          %v913 = vadd.f32 0.0, %v912
          %v914 = vpop.f32.mrf.mxu0
          %v915 = vpop.f32.mrf.mxu0
          %v916 = vadd.f32 0.0, %v915
          %v917 = vpop.f32.mrf.mxu0
          %918 = vmatprep.mubr.bf16.mxu0 0
          %919 = vmatmul.mubr.bf16.gmra.mxu0 %v794
          %v920 = vpop.f32.mrf.mxu0
          %v921 = vadd.f32 0.0, %v920
          %v922 = vpop.f32.mrf.mxu0
          %v923 = vpop.f32.mrf.mxu0
          %v924 = vadd.f32 0.0, %v923
          %v925 = vpop.f32.mrf.mxu0
          %926 = vmatprep.mubr.bf16.mxu0 0
          %927 = vmatmul.mubr.bf16.gmra.mxu0 %v795
          %v928 = vpop.f32.mrf.mxu0
          %v929 = vadd.f32 0.0, %v928
          %v930 = vpop.f32.mrf.mxu0
          %v931 = vpop.f32.mrf.mxu0
          %v932 = vadd.f32 0.0, %v931
          %v933 = vpop.f32.mrf.mxu0
          %934 = vmatprep.mubr.bf16.mxu0 0
          %935 = vmatmul.mubr.bf16.gmra.mxu0 %v796
          %v936 = vpop.f32.mrf.mxu0
          %v937 = vadd.f32 0.0, %v936
          %v938 = vpop.f32.mrf.mxu0
          %v939 = vpop.f32.mrf.mxu0
          %v940 = vadd.f32 0.0, %v939
          %v941 = vpop.f32.mrf.mxu0
          %942 = vmatprep.mubr.bf16.mxu0 0
          %943 = vmatmul.mubr.bf16.gmra.mxu0 %v797
          %v944 = vpop.f32.mrf.mxu0
          %v945 = vadd.f32 0.0, %v944
          %v946 = vpop.f32.mrf.mxu0
          %v947 = vpop.f32.mrf.mxu0
          %v948 = vadd.f32 0.0, %v947
          %v949 = vpop.f32.mrf.mxu0
          %950 = vdwg.mxu0
          %v951 = vadd.f32 %v706, %v889
          %v952 = vadd.f32 %v707, %v892
          %v953 = vadd.f32 %v708, %v897
          %v954 = vadd.f32 %v709, %v900
          %v955 = vadd.f32 %v710, %v905
          %v956 = vadd.f32 %v711, %v908
          %v957 = vadd.f32 %v712, %v913
          %v958 = vadd.f32 %v713, %v916
          %v959 = vadd.f32 %v714, %v921
          %v960 = vadd.f32 %v715, %v924
          %v961 = vadd.f32 %v716, %v929
          %v962 = vadd.f32 %v717, %v932
          %v963 = vadd.f32 %v718, %v937
          %v964 = vadd.f32 %v719, %v940
          %v965 = vadd.f32 %v720, %v945
          %v966 = vadd.f32 %v721, %v948
          %967 = vst [vmem:[#allocation2] sm:$0xff] %v951
          %968 = vst [vmem:[#allocation2 + $0x8] sm:$0xff] %v952
          %969 = vst [vmem:[#allocation2 + $0x10] sm:$0xff] %v953
          %970 = vst [vmem:[#allocation2 + $0x18] sm:$0xff] %v954
          %971 = vst [vmem:[#allocation2 + $0x20] sm:$0xff] %v955
          %972 = vst [vmem:[#allocation2 + $0x28] sm:$0xff] %v956
          %973 = vst [vmem:[#allocation2 + $0x30] sm:$0xff] %v957
          %974 = vst [vmem:[#allocation2 + $0x38] sm:$0xff] %v958
          %975 = vst [vmem:[#allocation2 + $0x40] sm:$0xff] %v959
          %976 = vst [vmem:[#allocation2 + $0x48] sm:$0xff] %v960
          %977 = vst [vmem:[#allocation2 + $0x50] sm:$0xff] %v961
          %978 = vst [vmem:[#allocation2 + $0x58] sm:$0xff] %v962
          %979 = vst [vmem:[#allocation2 + $0x60] sm:$0xff] %v963
          %980 = vst [vmem:[#allocation2 + $0x68] sm:$0xff] %v964
          %981 = vst [vmem:[#allocation2 + $0x70] sm:$0xff] %v965
          %982 = vst [vmem:[#allocation2 + $0x78] sm:$0xff] %v966
        $region97: #{link_predictor_forward.2} parent=80 // pred_fallthru
          _
        %p983 = scmp.eq.s32.totalorder %s24, 1
        %p984 = pnand %p424, %p983
        %p985 = pneg %p984
        // Predicated region
        $region98: #{link_predictor_forward.2} parent=80 // pred_check
          _
        $region99: #{link_predictor_forward.2} parent=80 // pred_check_branch
          %987 = sbr.rel (%p984) target = $region101
        $region100: #{link_predictor_forward.2} parent=80 // pred_region
          %v988 = vld [vmem:[#allocation2] sm:$0xff]
          %v989 = vld [vmem:[#allocation2 + $0x8] sm:$0xff]
          %v990 = vld [vmem:[#allocation2 + $0x10] sm:$0xff]
          %v991 = vld [vmem:[#allocation2 + $0x18] sm:$0xff]
          %v992 = vld [vmem:[#allocation2 + $0x20] sm:$0xff]
          %v993 = vld [vmem:[#allocation2 + $0x28] sm:$0xff]
          %v994 = vld [vmem:[#allocation2 + $0x30] sm:$0xff]
          %v995 = vld [vmem:[#allocation2 + $0x38] sm:$0xff]
          %v996 = vld [vmem:[#allocation2 + $0x40] sm:$0xff]
          %v997 = vld [vmem:[#allocation2 + $0x48] sm:$0xff]
          %v998 = vld [vmem:[#allocation2 + $0x50] sm:$0xff]
          %v999 = vld [vmem:[#allocation2 + $0x58] sm:$0xff]
          %v1000 = vld [vmem:[#allocation2 + $0x60] sm:$0xff]
          %v1001 = vld [vmem:[#allocation2 + $0x68] sm:$0xff]
          %v1002 = vld [vmem:[#allocation2 + $0x70] sm:$0xff]
          %v1003 = vld [vmem:[#allocation2 + $0x78] sm:$0xff]
          %v1004 = vpack.c.bf16 %v989, %v988
          %v1005 = vpack.c.bf16 %v991, %v990
          %v1006 = vpack.c.bf16 %v993, %v992
          %v1007 = vpack.c.bf16 %v995, %v994
          %v1008 = vpack.c.bf16 %v997, %v996
          %v1009 = vpack.c.bf16 %v999, %v998
          %v1010 = vpack.c.bf16 %v1001, %v1000
          %v1011 = vpack.c.bf16 %v1003, %v1002
          %v1012 = vld [vmem:[%s2] sm:$0xf]
          %v1013 = vld [vmem:[%s2 + $0x4] sm:$0xf]
          %v1014 = vld [vmem:[%s2 + $0x8] sm:$0xf]
          %v1015 = vld [vmem:[%s2 + $0xc] sm:$0xf]
          %v1016 = vld [vmem:[%s2 + $0x10] sm:$0xf]
          %v1017 = vld [vmem:[%s2 + $0x14] sm:$0xf]
          %v1018 = vld [vmem:[%s2 + $0x18] sm:$0xf]
          %v1019 = vld [vmem:[%s2 + $0x1c] sm:$0xf]
          %v1020 = vld [vmem:[%s2 + $0x20] sm:$0xf]
          %v1021 = vld [vmem:[%s2 + $0x24] sm:$0xf]
          %v1022 = vld [vmem:[%s2 + $0x28] sm:$0xf]
          %v1023 = vld [vmem:[%s2 + $0x2c] sm:$0xf]
          %v1024 = vld [vmem:[%s2 + $0x30] sm:$0xf]
          %v1025 = vld [vmem:[%s2 + $0x34] sm:$0xf]
          %v1026 = vld [vmem:[%s2 + $0x38] sm:$0xf]
          %v1027 = vld [vmem:[%s2 + $0x3c] sm:$0xf]
          %v1028 = vld [vmem:[%s3] sm:$0x1]
          %v1030 = vlaneseq
          %v1031 = vshrl.u32 %v1030, 7
          %v1032 = vsub.s32 0, %v1031
          %v1033 = vrot.slane %v1028, %v1032
          %v1051 = vunpack.c.l.b16 %v1012
          %v1052 = vunpack.c.l.b16 %v1013
          %v1053 = vunpack.c.l.b16 %v1014
          %v1054 = vunpack.c.l.b16 %v1015
          %v1055 = vunpack.c.l.b16 %v1016
          %v1056 = vunpack.c.l.b16 %v1017
          %v1057 = vunpack.c.l.b16 %v1018
          %v1058 = vunpack.c.l.b16 %v1019
          %v1059 = vunpack.c.l.b16 %v1020
          %v1060 = vunpack.c.l.b16 %v1021
          %v1061 = vunpack.c.l.b16 %v1022
          %v1062 = vunpack.c.l.b16 %v1023
          %v1063 = vunpack.c.l.b16 %v1024
          %v1064 = vunpack.c.l.b16 %v1025
          %v1065 = vunpack.c.l.b16 %v1026
          %v1066 = vunpack.c.l.b16 %v1027
          %v1067 = vpack.c.b16 %v1052, %v1051
          %v1068 = vpack.c.b16 %v1054, %v1053
          %v1069 = vpack.c.b16 %v1056, %v1055
          %v1070 = vpack.c.b16 %v1058, %v1057
          %v1071 = vpack.c.b16 %v1060, %v1059
          %v1072 = vpack.c.b16 %v1062, %v1061
          %v1073 = vpack.c.b16 %v1064, %v1063
          %v1074 = vpack.c.b16 %v1066, %v1065
          %1083 = vmatprep.subr.bf16.mxu0 0
          %1084 = vmatpush1.bf16.msra.mxu0 %v1074
          %1085 = vmatprep.subr.bf16.mxu0 0
          %1086 = vmatpush1.bf16.msra.mxu0 %v1073
          %1087 = vmatprep.subr.bf16.mxu0 0
          %1088 = vmatpush1.bf16.msra.mxu0 %v1072
          %1089 = vmatprep.subr.bf16.mxu0 0
          %1090 = vmatpush1.bf16.msra.mxu0 %v1071
          %1091 = vmatprep.subr.bf16.mxu0 0
          %1092 = vmatpush1.bf16.msra.mxu0 %v1070
          %1093 = vmatprep.subr.bf16.mxu0 0
          %1094 = vmatpush1.bf16.msra.mxu0 %v1069
          %1095 = vmatprep.subr.bf16.mxu0 0
          %1096 = vmatpush1.bf16.msra.mxu0 %v1068
          %1097 = vmatprep.subr.bf16.mxu0 0
          %1098 = vmatpush1.bf16.msra.mxu0 %v1067
          %1099 = vmatprep.subr.bf16.mxu0 0
          %1100 = vmatpush2.bf16.msra.mxu0 0
          %1101 = vmatprep.subr.bf16.mxu0 0
          %1102 = vmatpush2.bf16.msra.mxu0 0
          %1103 = vmatprep.subr.bf16.mxu0 0
          %1104 = vmatpush2.bf16.msra.mxu0 0
          %1105 = vmatprep.subr.bf16.mxu0 0
          %1106 = vmatpush2.bf16.msra.mxu0 0
          %1107 = vmatprep.subr.bf16.mxu0 0
          %1108 = vmatpush2.bf16.msra.mxu0 0
          %1109 = vmatprep.subr.bf16.mxu0 0
          %1110 = vmatpush2.bf16.msra.mxu0 0
          %1111 = vmatprep.subr.bf16.mxu0 0
          %1112 = vmatpush2.bf16.msra.mxu0 0
          %1113 = vmatprep.subr.bf16.mxu0 0
          %1114 = vmatpush2.bf16.msra.mxu0 0
          %1115 = vmatprep.mubr.bf16.mxu0 0
          %1116 = vmatmul.mubr.bf16.gmra.mxu0 %v1004
          %v1117 = vpop.f32.mrf.mxu0
          %v1118 = vadd.f32 %v1033, %v1117
          %v1119 = vpop.f32.mrf.mxu0
          %v1120 = vpop.f32.mrf.mxu0
          %v1121 = vadd.f32 %v1033, %v1120
          %v1122 = vpop.f32.mrf.mxu0
          %1123 = vmatprep.mubr.bf16.mxu0 0
          %1124 = vmatmul.mubr.bf16.gmra.mxu0 %v1005
          %v1125 = vpop.f32.mrf.mxu0
          %v1126 = vadd.f32 %v1033, %v1125
          %v1127 = vpop.f32.mrf.mxu0
          %v1128 = vpop.f32.mrf.mxu0
          %v1129 = vadd.f32 %v1033, %v1128
          %v1130 = vpop.f32.mrf.mxu0
          %1131 = vmatprep.mubr.bf16.mxu0 0
          %1132 = vmatmul.mubr.bf16.gmra.mxu0 %v1006
          %v1133 = vpop.f32.mrf.mxu0
          %v1134 = vadd.f32 %v1033, %v1133
          %v1135 = vpop.f32.mrf.mxu0
          %v1136 = vpop.f32.mrf.mxu0
          %v1137 = vadd.f32 %v1033, %v1136
          %v1138 = vpop.f32.mrf.mxu0
          %1139 = vmatprep.mubr.bf16.mxu0 0
          %1140 = vmatmul.mubr.bf16.gmra.mxu0 %v1007
          %v1141 = vpop.f32.mrf.mxu0
          %v1142 = vadd.f32 %v1033, %v1141
          %v1143 = vpop.f32.mrf.mxu0
          %v1144 = vpop.f32.mrf.mxu0
          %v1145 = vadd.f32 %v1033, %v1144
          %v1146 = vpop.f32.mrf.mxu0
          %1147 = vmatprep.mubr.bf16.mxu0 0
          %1148 = vmatmul.mubr.bf16.gmra.mxu0 %v1008
          %v1149 = vpop.f32.mrf.mxu0
          %v1150 = vadd.f32 %v1033, %v1149
          %v1151 = vpop.f32.mrf.mxu0
          %v1152 = vpop.f32.mrf.mxu0
          %v1153 = vadd.f32 %v1033, %v1152
          %v1154 = vpop.f32.mrf.mxu0
          %1155 = vmatprep.mubr.bf16.mxu0 0
          %1156 = vmatmul.mubr.bf16.gmra.mxu0 %v1009
          %v1157 = vpop.f32.mrf.mxu0
          %v1158 = vadd.f32 %v1033, %v1157
          %v1159 = vpop.f32.mrf.mxu0
          %v1160 = vpop.f32.mrf.mxu0
          %v1161 = vadd.f32 %v1033, %v1160
          %v1162 = vpop.f32.mrf.mxu0
          %1163 = vmatprep.mubr.bf16.mxu0 0
          %1164 = vmatmul.mubr.bf16.gmra.mxu0 %v1010
          %v1165 = vpop.f32.mrf.mxu0
          %v1166 = vadd.f32 %v1033, %v1165
          %v1167 = vpop.f32.mrf.mxu0
          %v1168 = vpop.f32.mrf.mxu0
          %v1169 = vadd.f32 %v1033, %v1168
          %v1170 = vpop.f32.mrf.mxu0
          %1171 = vmatprep.mubr.bf16.mxu0 0
          %1172 = vmatmul.mubr.bf16.gmra.mxu0 %v1011
          %v1173 = vpop.f32.mrf.mxu0
          %v1174 = vadd.f32 %v1033, %v1173
          %v1175 = vpop.f32.mrf.mxu0
          %v1176 = vpop.f32.mrf.mxu0
          %v1177 = vadd.f32 %v1033, %v1176
          %v1178 = vpop.f32.mrf.mxu0
          %1179 = vdwg.mxu0
          %v1180 = vmax.f32 %v1118, 0.0
          %v1181 = vmax.f32 %v1121, 0.0
          %v1182 = vmax.f32 %v1126, 0.0
          %v1183 = vmax.f32 %v1129, 0.0
          %v1184 = vmax.f32 %v1134, 0.0
          %v1185 = vmax.f32 %v1137, 0.0
          %v1186 = vmax.f32 %v1142, 0.0
          %v1187 = vmax.f32 %v1145, 0.0
          %v1188 = vmax.f32 %v1150, 0.0
          %v1189 = vmax.f32 %v1153, 0.0
          %v1190 = vmax.f32 %v1158, 0.0
          %v1191 = vmax.f32 %v1161, 0.0
          %v1192 = vmax.f32 %v1166, 0.0
          %v1193 = vmax.f32 %v1169, 0.0
          %v1194 = vmax.f32 %v1174, 0.0
          %v1195 = vmax.f32 %v1177, 0.0
          %s1196 = smul.u32 %s23, 128
          %v1197 = vpack.c.bf16 %v1181, %v1180
          %v1198 = vpack.c.bf16 %v1183, %v1182
          %v1199 = vpack.c.bf16 %v1185, %v1184
          %v1200 = vpack.c.bf16 %v1187, %v1186
          %v1201 = vpack.c.bf16 %v1189, %v1188
          %v1202 = vpack.c.bf16 %v1191, %v1190
          %v1203 = vpack.c.bf16 %v1193, %v1192
          %v1204 = vpack.c.bf16 %v1195, %v1194
          %v1213 = vunpack.c.l.b16 %v1197
          %v1214 = vunpack.c.h.b16 %v1197
          %v1215 = vunpack.c.l.b16 %v1198
          %v1216 = vunpack.c.h.b16 %v1198
          %v1217 = vunpack.c.l.b16 %v1199
          %v1218 = vunpack.c.h.b16 %v1199
          %v1219 = vunpack.c.l.b16 %v1200
          %v1220 = vunpack.c.h.b16 %v1200
          %v1221 = vunpack.c.l.b16 %v1201
          %v1222 = vunpack.c.h.b16 %v1201
          %v1223 = vunpack.c.l.b16 %v1202
          %v1224 = vunpack.c.h.b16 %v1202
          %v1225 = vunpack.c.l.b16 %v1203
          %v1226 = vunpack.c.h.b16 %v1203
          %v1227 = vunpack.c.l.b16 %v1204
          %v1228 = vunpack.c.h.b16 %v1204
          %v1229 = vpack.c.b16 %v1213, %v1213
          %v1230 = vpack.c.b16 %v1214, %v1214
          %v1231 = vpack.c.b16 %v1215, %v1215
          %v1232 = vpack.c.b16 %v1216, %v1216
          %v1233 = vpack.c.b16 %v1217, %v1217
          %v1234 = vpack.c.b16 %v1218, %v1218
          %v1235 = vpack.c.b16 %v1219, %v1219
          %v1236 = vpack.c.b16 %v1220, %v1220
          %v1237 = vpack.c.b16 %v1221, %v1221
          %v1238 = vpack.c.b16 %v1222, %v1222
          %v1239 = vpack.c.b16 %v1223, %v1223
          %v1240 = vpack.c.b16 %v1224, %v1224
          %v1241 = vpack.c.b16 %v1225, %v1225
          %v1242 = vpack.c.b16 %v1226, %v1226
          %v1243 = vpack.c.b16 %v1227, %v1227
          %v1244 = vpack.c.b16 %v1228, %v1228
          %s1261 = sshra.s32 %s1196, 3
          %s1262 = sand.u32 %s1196, 7
          %s1263 = smul.addr %s1261, 4
          %s1264 = scalar_lea.vmem [#allocation3], %s1263
          %1265 = vst [vmem:[%s1264] sm:$0xf] %v1229
          %1266 = vst [vmem:[%s1264 + $0x4] sm:$0xf] %v1230
          %1267 = vst [vmem:[%s1264 + $0x8] sm:$0xf] %v1231
          %1268 = vst [vmem:[%s1264 + $0xc] sm:$0xf] %v1232
          %1269 = vst [vmem:[%s1264 + $0x10] sm:$0xf] %v1233
          %1270 = vst [vmem:[%s1264 + $0x14] sm:$0xf] %v1234
          %1271 = vst [vmem:[%s1264 + $0x18] sm:$0xf] %v1235
          %1272 = vst [vmem:[%s1264 + $0x1c] sm:$0xf] %v1236
          %1273 = vst [vmem:[%s1264 + $0x20] sm:$0xf] %v1237
          %1274 = vst [vmem:[%s1264 + $0x24] sm:$0xf] %v1238
          %1275 = vst [vmem:[%s1264 + $0x28] sm:$0xf] %v1239
          %1276 = vst [vmem:[%s1264 + $0x2c] sm:$0xf] %v1240
          %1277 = vst [vmem:[%s1264 + $0x30] sm:$0xf] %v1241
          %1278 = vst [vmem:[%s1264 + $0x34] sm:$0xf] %v1242
          %1279 = vst [vmem:[%s1264 + $0x38] sm:$0xf] %v1243
          %1280 = vst [vmem:[%s1264 + $0x3c] sm:$0xf] %v1244
          %1281 = vst [vmem:[%s401] sm:$0xff] %v1180
          %1282 = vst [vmem:[%s401 + $0x8] sm:$0xff] %v1181
          %1283 = vst [vmem:[%s401 + $0x10] sm:$0xff] %v1182
          %1284 = vst [vmem:[%s401 + $0x18] sm:$0xff] %v1183
          %1285 = vst [vmem:[%s401 + $0x20] sm:$0xff] %v1184
          %1286 = vst [vmem:[%s401 + $0x28] sm:$0xff] %v1185
          %1287 = vst [vmem:[%s401 + $0x30] sm:$0xff] %v1186
          %1288 = vst [vmem:[%s401 + $0x38] sm:$0xff] %v1187
          %1289 = vst [vmem:[%s401 + $0x40] sm:$0xff] %v1188
          %1290 = vst [vmem:[%s401 + $0x48] sm:$0xff] %v1189
          %1291 = vst [vmem:[%s401 + $0x50] sm:$0xff] %v1190
          %1292 = vst [vmem:[%s401 + $0x58] sm:$0xff] %v1191
          %1293 = vst [vmem:[%s401 + $0x60] sm:$0xff] %v1192
          %1294 = vst [vmem:[%s401 + $0x68] sm:$0xff] %v1193
          %1295 = vst [vmem:[%s401 + $0x70] sm:$0xff] %v1194
          %1296 = vst [vmem:[%s401 + $0x78] sm:$0xff] %v1195
        $region101: #{link_predictor_forward.2} parent=80 // pred_fallthru
          _
        %p1297 = pnand %p701, %p983
        %p1298 = pneg %p1297
        // Predicated region
        $region102: #{link_predictor_forward.2} parent=80 // pred_check
          _
        $region103: #{link_predictor_forward.2} parent=80 // pred_check_branch
          %1300 = sbr.rel (%p1297) target = $region105
        $region104: #{link_predictor_forward.2} parent=80 // pred_region
          %v1301 = vld [vmem:[#allocation2] sm:$0xff]
          %v1302 = vld [vmem:[#allocation2 + $0x8] sm:$0xff]
          %v1303 = vld [vmem:[#allocation2 + $0x10] sm:$0xff]
          %v1304 = vld [vmem:[#allocation2 + $0x18] sm:$0xff]
          %v1305 = vld [vmem:[#allocation2 + $0x20] sm:$0xff]
          %v1306 = vld [vmem:[#allocation2 + $0x28] sm:$0xff]
          %v1307 = vld [vmem:[#allocation2 + $0x30] sm:$0xff]
          %v1308 = vld [vmem:[#allocation2 + $0x38] sm:$0xff]
          %v1309 = vld [vmem:[#allocation2 + $0x40] sm:$0xff]
          %v1310 = vld [vmem:[#allocation2 + $0x48] sm:$0xff]
          %v1311 = vld [vmem:[#allocation2 + $0x50] sm:$0xff]
          %v1312 = vld [vmem:[#allocation2 + $0x58] sm:$0xff]
          %v1313 = vld [vmem:[#allocation2 + $0x60] sm:$0xff]
          %v1314 = vld [vmem:[#allocation2 + $0x68] sm:$0xff]
          %v1315 = vld [vmem:[#allocation2 + $0x70] sm:$0xff]
          %v1316 = vld [vmem:[#allocation2 + $0x78] sm:$0xff]
          %v1317 = vpack.c.bf16 %v1302, %v1301
          %v1318 = vpack.c.bf16 %v1304, %v1303
          %v1319 = vpack.c.bf16 %v1306, %v1305
          %v1320 = vpack.c.bf16 %v1308, %v1307
          %v1321 = vpack.c.bf16 %v1310, %v1309
          %v1322 = vpack.c.bf16 %v1312, %v1311
          %v1323 = vpack.c.bf16 %v1314, %v1313
          %v1324 = vpack.c.bf16 %v1316, %v1315
          %v1325 = vld [vmem:[%s4] sm:$0xf]
          %v1326 = vld [vmem:[%s4 + $0x4] sm:$0xf]
          %v1327 = vld [vmem:[%s4 + $0x8] sm:$0xf]
          %v1328 = vld [vmem:[%s4 + $0xc] sm:$0xf]
          %v1329 = vld [vmem:[%s4 + $0x10] sm:$0xf]
          %v1330 = vld [vmem:[%s4 + $0x14] sm:$0xf]
          %v1331 = vld [vmem:[%s4 + $0x18] sm:$0xf]
          %v1332 = vld [vmem:[%s4 + $0x1c] sm:$0xf]
          %v1333 = vld [vmem:[%s4 + $0x20] sm:$0xf]
          %v1334 = vld [vmem:[%s4 + $0x24] sm:$0xf]
          %v1335 = vld [vmem:[%s4 + $0x28] sm:$0xf]
          %v1336 = vld [vmem:[%s4 + $0x2c] sm:$0xf]
          %v1337 = vld [vmem:[%s4 + $0x30] sm:$0xf]
          %v1338 = vld [vmem:[%s4 + $0x34] sm:$0xf]
          %v1339 = vld [vmem:[%s4 + $0x38] sm:$0xf]
          %v1340 = vld [vmem:[%s4 + $0x3c] sm:$0xf]
          %v1341 = vld [vmem:[%s5] sm:$0x1]
          %v1343 = vlaneseq
          %v1344 = vshrl.u32 %v1343, 7
          %v1345 = vsub.s32 0, %v1344
          %v1346 = vrot.slane %v1341, %v1345
          %v1364 = vunpack.c.l.b16 %v1325
          %v1365 = vunpack.c.l.b16 %v1326
          %v1366 = vunpack.c.l.b16 %v1327
          %v1367 = vunpack.c.l.b16 %v1328
          %v1368 = vunpack.c.l.b16 %v1329
          %v1369 = vunpack.c.l.b16 %v1330
          %v1370 = vunpack.c.l.b16 %v1331
          %v1371 = vunpack.c.l.b16 %v1332
          %v1372 = vunpack.c.l.b16 %v1333
          %v1373 = vunpack.c.l.b16 %v1334
          %v1374 = vunpack.c.l.b16 %v1335
          %v1375 = vunpack.c.l.b16 %v1336
          %v1376 = vunpack.c.l.b16 %v1337
          %v1377 = vunpack.c.l.b16 %v1338
          %v1378 = vunpack.c.l.b16 %v1339
          %v1379 = vunpack.c.l.b16 %v1340
          %v1380 = vpack.c.b16 %v1365, %v1364
          %v1381 = vpack.c.b16 %v1367, %v1366
          %v1382 = vpack.c.b16 %v1369, %v1368
          %v1383 = vpack.c.b16 %v1371, %v1370
          %v1384 = vpack.c.b16 %v1373, %v1372
          %v1385 = vpack.c.b16 %v1375, %v1374
          %v1386 = vpack.c.b16 %v1377, %v1376
          %v1387 = vpack.c.b16 %v1379, %v1378
          %1396 = vmatprep.subr.bf16.mxu0 0
          %1397 = vmatpush1.bf16.msra.mxu0 %v1387
          %1398 = vmatprep.subr.bf16.mxu0 0
          %1399 = vmatpush1.bf16.msra.mxu0 %v1386
          %1400 = vmatprep.subr.bf16.mxu0 0
          %1401 = vmatpush1.bf16.msra.mxu0 %v1385
          %1402 = vmatprep.subr.bf16.mxu0 0
          %1403 = vmatpush1.bf16.msra.mxu0 %v1384
          %1404 = vmatprep.subr.bf16.mxu0 0
          %1405 = vmatpush1.bf16.msra.mxu0 %v1383
          %1406 = vmatprep.subr.bf16.mxu0 0
          %1407 = vmatpush1.bf16.msra.mxu0 %v1382
          %1408 = vmatprep.subr.bf16.mxu0 0
          %1409 = vmatpush1.bf16.msra.mxu0 %v1381
          %1410 = vmatprep.subr.bf16.mxu0 0
          %1411 = vmatpush1.bf16.msra.mxu0 %v1380
          %1412 = vmatprep.subr.bf16.mxu0 0
          %1413 = vmatpush2.bf16.msra.mxu0 0
          %1414 = vmatprep.subr.bf16.mxu0 0
          %1415 = vmatpush2.bf16.msra.mxu0 0
          %1416 = vmatprep.subr.bf16.mxu0 0
          %1417 = vmatpush2.bf16.msra.mxu0 0
          %1418 = vmatprep.subr.bf16.mxu0 0
          %1419 = vmatpush2.bf16.msra.mxu0 0
          %1420 = vmatprep.subr.bf16.mxu0 0
          %1421 = vmatpush2.bf16.msra.mxu0 0
          %1422 = vmatprep.subr.bf16.mxu0 0
          %1423 = vmatpush2.bf16.msra.mxu0 0
          %1424 = vmatprep.subr.bf16.mxu0 0
          %1425 = vmatpush2.bf16.msra.mxu0 0
          %1426 = vmatprep.subr.bf16.mxu0 0
          %1427 = vmatpush2.bf16.msra.mxu0 0
          %1428 = vmatprep.mubr.bf16.mxu0 0
          %1429 = vmatmul.mubr.bf16.gmra.mxu0 %v1317
          %v1430 = vpop.f32.mrf.mxu0
          %v1431 = vadd.f32 %v1346, %v1430
          %v1432 = vpop.f32.mrf.mxu0
          %v1433 = vpop.f32.mrf.mxu0
          %v1434 = vadd.f32 %v1346, %v1433
          %v1435 = vpop.f32.mrf.mxu0
          %1436 = vmatprep.mubr.bf16.mxu0 0
          %1437 = vmatmul.mubr.bf16.gmra.mxu0 %v1318
          %v1438 = vpop.f32.mrf.mxu0
          %v1439 = vadd.f32 %v1346, %v1438
          %v1440 = vpop.f32.mrf.mxu0
          %v1441 = vpop.f32.mrf.mxu0
          %v1442 = vadd.f32 %v1346, %v1441
          %v1443 = vpop.f32.mrf.mxu0
          %1444 = vmatprep.mubr.bf16.mxu0 0
          %1445 = vmatmul.mubr.bf16.gmra.mxu0 %v1319
          %v1446 = vpop.f32.mrf.mxu0
          %v1447 = vadd.f32 %v1346, %v1446
          %v1448 = vpop.f32.mrf.mxu0
          %v1449 = vpop.f32.mrf.mxu0
          %v1450 = vadd.f32 %v1346, %v1449
          %v1451 = vpop.f32.mrf.mxu0
          %1452 = vmatprep.mubr.bf16.mxu0 0
          %1453 = vmatmul.mubr.bf16.gmra.mxu0 %v1320
          %v1454 = vpop.f32.mrf.mxu0
          %v1455 = vadd.f32 %v1346, %v1454
          %v1456 = vpop.f32.mrf.mxu0
          %v1457 = vpop.f32.mrf.mxu0
          %v1458 = vadd.f32 %v1346, %v1457
          %v1459 = vpop.f32.mrf.mxu0
          %1460 = vmatprep.mubr.bf16.mxu0 0
          %1461 = vmatmul.mubr.bf16.gmra.mxu0 %v1321
          %v1462 = vpop.f32.mrf.mxu0
          %v1463 = vadd.f32 %v1346, %v1462
          %v1464 = vpop.f32.mrf.mxu0
          %v1465 = vpop.f32.mrf.mxu0
          %v1466 = vadd.f32 %v1346, %v1465
          %v1467 = vpop.f32.mrf.mxu0
          %1468 = vmatprep.mubr.bf16.mxu0 0
          %1469 = vmatmul.mubr.bf16.gmra.mxu0 %v1322
          %v1470 = vpop.f32.mrf.mxu0
          %v1471 = vadd.f32 %v1346, %v1470
          %v1472 = vpop.f32.mrf.mxu0
          %v1473 = vpop.f32.mrf.mxu0
          %v1474 = vadd.f32 %v1346, %v1473
          %v1475 = vpop.f32.mrf.mxu0
          %1476 = vmatprep.mubr.bf16.mxu0 0
          %1477 = vmatmul.mubr.bf16.gmra.mxu0 %v1323
          %v1478 = vpop.f32.mrf.mxu0
          %v1479 = vadd.f32 %v1346, %v1478
          %v1480 = vpop.f32.mrf.mxu0
          %v1481 = vpop.f32.mrf.mxu0
          %v1482 = vadd.f32 %v1346, %v1481
          %v1483 = vpop.f32.mrf.mxu0
          %1484 = vmatprep.mubr.bf16.mxu0 0
          %1485 = vmatmul.mubr.bf16.gmra.mxu0 %v1324
          %v1486 = vpop.f32.mrf.mxu0
          %v1487 = vadd.f32 %v1346, %v1486
          %v1488 = vpop.f32.mrf.mxu0
          %v1489 = vpop.f32.mrf.mxu0
          %v1490 = vadd.f32 %v1346, %v1489
          %v1491 = vpop.f32.mrf.mxu0
          %1492 = vdwg.mxu0
          %1493 = vst [vmem:[%s401] sm:$0xff] %v1431
          %1494 = vst [vmem:[%s401 + $0x8] sm:$0xff] %v1434
          %1495 = vst [vmem:[%s401 + $0x10] sm:$0xff] %v1439
          %1496 = vst [vmem:[%s401 + $0x18] sm:$0xff] %v1442
          %1497 = vst [vmem:[%s401 + $0x20] sm:$0xff] %v1447
          %1498 = vst [vmem:[%s401 + $0x28] sm:$0xff] %v1450
          %1499 = vst [vmem:[%s401 + $0x30] sm:$0xff] %v1455
          %1500 = vst [vmem:[%s401 + $0x38] sm:$0xff] %v1458
          %1501 = vst [vmem:[%s401 + $0x40] sm:$0xff] %v1463
          %1502 = vst [vmem:[%s401 + $0x48] sm:$0xff] %v1466
          %1503 = vst [vmem:[%s401 + $0x50] sm:$0xff] %v1471
          %1504 = vst [vmem:[%s401 + $0x58] sm:$0xff] %v1474
          %1505 = vst [vmem:[%s401 + $0x60] sm:$0xff] %v1479
          %1506 = vst [vmem:[%s401 + $0x68] sm:$0xff] %v1482
          %1507 = vst [vmem:[%s401 + $0x70] sm:$0xff] %v1487
          %1508 = vst [vmem:[%s401 + $0x78] sm:$0xff] %v1490
        $region105: #{link_predictor_forward.2} parent=80 // pred_fallthru
          _
        %s1509 = smul.u32 16, %s23
        %p1510 = scmp.lt.s32.totalorder %s1509, 31
        %s1511 = scalar_select %p1510, %s1509, 31
        %s1512 = smul.addr %s1511, 8
        %s1513 = scalar_lea.vmem %s6, %s1512
        // Predicated region
        $region106: #{link_predictor_forward.2} parent=80 // pred_check
          %p1514 = pneg %p192
        $region107: #{link_predictor_forward.2} parent=80 // pred_check_branch
          %1516 = sbr.rel (%p1514) target = $region109
        $region108: #{link_predictor_forward.2} parent=80 // pred_region
          %s1517 = smul.u32 16, %s23
        $region109: #{link_predictor_forward.2} parent=80 // pred_fallthru
          _
      $region81: #{link_predictor_forward.2} parent=5 // pred_fallthru
        _
      %p1518 = scmp.le.s32.totalorder 2, %s12
      // Predicated region
      $region110: #{link_predictor_forward.2} parent=5 // pred_check
        %p1519 = pneg %p1518
      $region111: #{link_predictor_forward.2} parent=5 // pred_check_branch
        %1521 = sbr.rel (%p1519) target = $region113
      $region112: #{link_predictor_forward.2} parent=5 // pred_region
        %s1522 = ssub.s32 %s12, 2
        // Predicated region
        $region114: #{link_predictor_forward.2} parent=112 // pred_check
          %p1523 = pneg %p198
        $region115: #{link_predictor_forward.2} parent=112 // pred_check_branch
          %1525 = sbr.rel (%p1523) target = $region117
        $region116: #{link_predictor_forward.2} parent=112 // pred_region
          %s1526 = smul.u32 16, %s26
          %p1527 = scmp.lt.s32.totalorder %s1526, 31
          %s1528 = scalar_select %p1527, %s1526, 31
          %s1529 = smul.addr %s1528, 8
          %s1530 = scalar_lea.vmem %s6, %s1529
        $region117: #{link_predictor_forward.2} parent=112 // pred_fallthru
          _
      $region113: #{link_predictor_forward.2} parent=5 // pred_fallthru
        _
    $region6: #{link_predictor_forward.2} parent=1 // loop_footer
      %s16 = sadd.s32 1, %s12
    $region7: #{link_predictor_forward.2} parent=1 // loop_footer_branch
      %11 = sbr.rel target = $region3
    $region8: #{link_predictor_forward.2} parent=1 // loop_exit
      _

// kernel: link_predictor_forward.3
$region0: #{link_predictor_forward.3}
  #allocation0 [shape = 'u32[]', space=smem, size = 0x4, offset = 0x4, fixed_abs, tag = 'smem constant byte address 0x4 - core index']
  #allocation1 [shape = 'u32[144,128]{1,0:T(1,128)}', space=vmem, size = 0x12000, scoped, tag = 'internal scratch']
  %s0 = inlined_call_operand.vmem [shape: s32[384,1], index: 0, kind: input, shape index: {}]
  %s1 = inlined_call_operand.vmem [shape: s32[384,1], index: 1, kind: input, shape index: {}]
  %s2 = inlined_call_operand.vmem [shape: bf16[256,128], index: 2, kind: input, shape index: {}]
  %s3 = inlined_call_operand.vmem [shape: bf16[128,256], index: 3, kind: input, shape index: {}]
  %s4 = inlined_call_operand.vmem [shape: bf16[128,256], index: 4, kind: input, shape index: {}]
  %s5 = inlined_call_operand.vmem [shape: f32[1,256], index: 5, kind: input, shape index: {}]
  %s6 = inlined_call_operand.vmem [shape: bf16[256,128], index: 6, kind: input, shape index: {}]
  %s7 = inlined_call_operand.vmem [shape: f32[1,128], index: 7, kind: input, shape index: {}]
  %s8 = inlined_call_operand.vmem [shape: f32[384,128], index: 8, kind: output, shape index: {}]
  %s9 = sld [smem:[#allocation0]]
  $region65: #{link_predictor_forward.3} parent=0
    _
  %s11 = ssub.s32 1, %s9
  %s12 = scalar_select 0, %s11, %s9
  loop: start=0, step=1, limit=5
  $region2: #{link_predictor_forward.3} parent=0 // loop_pre_header
    _
  $region3: #{link_predictor_forward.3} parent=0 // loop_header
    %s14 = sphi 0, %s18
    %p15 = scmp.ge.s32.totalorder %s14, 5
    %s24 = sphi 0, %s26
    %s27 = sphi 0, %s24
    %s28 = sphi 0, %s27
    %s44 = sphi 0, %s28
    %s50 = sphi 0, %s52
    %s53 = sphi 0, %s50
    %s54 = sphi 0, %s53
    %s70 = sphi 0, %s54
    %s74 = sphi 0, %s74
    %s76 = sphi 0, %s74
    %s77 = sphi 0, %s76
    %s91 = sphi 0, %s77
    %s95 = sphi 0, %s95
    %s97 = sphi 0, %s95
    %s98 = sphi 0, %s97
    %s112 = sphi 0, %s98
    %s116 = sphi 0, %s116
    %s118 = sphi 0, %s116
    %s119 = sphi 0, %s118
    %s133 = sphi 0, %s119
    %s137 = sphi 0, %s137
    %s139 = sphi 0, %s137
    %s140 = sphi 0, %s139
    %s154 = sphi 0, %s140
    %s158 = sphi 0, %s158
    %s160 = sphi 0, %s158
    %s161 = sphi 0, %s160
    %s175 = sphi 0, %s161
    %s179 = sphi 0, %s179
    %s181 = sphi 0, %s179
    %s182 = sphi 0, %s181
    %s196 = sphi 0, %s182
    %s202 = sphi 0, %s204
    %s205 = sphi 0, %s202
    %s206 = sphi 0, %s205
    %s222 = sphi 0, %s206
  $region4: #{link_predictor_forward.3} parent=0 // loop_header_branch
    %17 = sbr.rel (%p15) target = $region8
  $region5: #{link_predictor_forward.3} parent=0 // loop_body
    %s19 = ssub.s32 %s14, 1
    %s20 = ssub.s32 %s14, 2
    %s21 = sadd.s32 %s14, 1
    %s22 = ssub.s32 %s14, %s21
    %p23 = scmp.eq.s32.totalorder %s22, 0
    %s25 = sadd.s32 %s24, 1
    %s26 = scalar_select %p23, %s24, %s25
    %p29 = pneg %p23
    %p30 = scmp.eq.s32.totalorder %s14, 2
    %p31 = por %p29, %p30
    %p32 = scmp.ne.s32.totalorder %s24, %s27
    %p33 = scmp.eq.s32.totalorder %s14, 0
    %p34 = por %p32, %p33
    %p35 = scmp.ne.s32.totalorder %s24, %s27
    %p36 = scmp.eq.s32.totalorder %s19, 2
    %p37 = por %p35, %p36
    %p38 = scmp.ne.s32.totalorder %s27, %s28
    %p39 = scmp.eq.s32.totalorder %s19, 0
    %p40 = por %p38, %p39
    %p41 = scmp.ne.s32.totalorder %s27, %s28
    %p42 = scmp.eq.s32.totalorder %s20, 2
    %p43 = por %p41, %p42
    %p45 = scmp.ne.s32.totalorder %s28, %s44
    %p46 = scmp.eq.s32.totalorder %s20, 0
    %p47 = por %p45, %p46
    %s48 = ssub.s32 %s14, %s21
    %p49 = scmp.eq.s32.totalorder %s48, 0
    %s51 = sadd.s32 %s50, 1
    %s52 = scalar_select %p49, %s50, %s51
    %p55 = pneg %p49
    %p56 = scmp.eq.s32.totalorder %s14, 2
    %p57 = por %p55, %p56
    %p58 = scmp.ne.s32.totalorder %s50, %s53
    %p59 = scmp.eq.s32.totalorder %s14, 0
    %p60 = por %p58, %p59
    %p61 = scmp.ne.s32.totalorder %s50, %s53
    %p62 = scmp.eq.s32.totalorder %s19, 2
    %p63 = por %p61, %p62
    %p64 = scmp.ne.s32.totalorder %s53, %s54
    %p65 = scmp.eq.s32.totalorder %s19, 0
    %p66 = por %p64, %p65
    %p67 = scmp.ne.s32.totalorder %s53, %s54
    %p68 = scmp.eq.s32.totalorder %s20, 2
    %p69 = por %p67, %p68
    %p71 = scmp.ne.s32.totalorder %s54, %s70
    %p72 = scmp.eq.s32.totalorder %s20, 0
    %p73 = por %p71, %p72
    %s75 = sadd.s32 %s74, 1
    %p78 = scmp.eq.s32.totalorder %s14, 2
    %p79 = scmp.ne.s32.totalorder %s74, %s76
    %p80 = scmp.eq.s32.totalorder %s14, 0
    %p81 = por %p79, %p80
    %p82 = scmp.ne.s32.totalorder %s74, %s76
    %p83 = scmp.eq.s32.totalorder %s19, 2
    %p84 = por %p82, %p83
    %p85 = scmp.ne.s32.totalorder %s76, %s77
    %p86 = scmp.eq.s32.totalorder %s19, 0
    %p87 = por %p85, %p86
    %p88 = scmp.ne.s32.totalorder %s76, %s77
    %p89 = scmp.eq.s32.totalorder %s20, 2
    %p90 = por %p88, %p89
    %p92 = scmp.ne.s32.totalorder %s77, %s91
    %p93 = scmp.eq.s32.totalorder %s20, 0
    %p94 = por %p92, %p93
    %s96 = sadd.s32 %s95, 1
    %p99 = scmp.eq.s32.totalorder %s14, 2
    %p100 = scmp.ne.s32.totalorder %s95, %s97
    %p101 = scmp.eq.s32.totalorder %s14, 0
    %p102 = por %p100, %p101
    %p103 = scmp.ne.s32.totalorder %s95, %s97
    %p104 = scmp.eq.s32.totalorder %s19, 2
    %p105 = por %p103, %p104
    %p106 = scmp.ne.s32.totalorder %s97, %s98
    %p107 = scmp.eq.s32.totalorder %s19, 0
    %p108 = por %p106, %p107
    %p109 = scmp.ne.s32.totalorder %s97, %s98
    %p110 = scmp.eq.s32.totalorder %s20, 2
    %p111 = por %p109, %p110
    %p113 = scmp.ne.s32.totalorder %s98, %s112
    %p114 = scmp.eq.s32.totalorder %s20, 0
    %p115 = por %p113, %p114
    %s117 = sadd.s32 %s116, 1
    %p120 = scmp.eq.s32.totalorder %s14, 2
    %p121 = scmp.ne.s32.totalorder %s116, %s118
    %p122 = scmp.eq.s32.totalorder %s14, 0
    %p123 = por %p121, %p122
    %p124 = scmp.ne.s32.totalorder %s116, %s118
    %p125 = scmp.eq.s32.totalorder %s19, 2
    %p126 = por %p124, %p125
    %p127 = scmp.ne.s32.totalorder %s118, %s119
    %p128 = scmp.eq.s32.totalorder %s19, 0
    %p129 = por %p127, %p128
    %p130 = scmp.ne.s32.totalorder %s118, %s119
    %p131 = scmp.eq.s32.totalorder %s20, 2
    %p132 = por %p130, %p131
    %p134 = scmp.ne.s32.totalorder %s119, %s133
    %p135 = scmp.eq.s32.totalorder %s20, 0
    %p136 = por %p134, %p135
    %s138 = sadd.s32 %s137, 1
    %p141 = scmp.eq.s32.totalorder %s14, 2
    %p142 = scmp.ne.s32.totalorder %s137, %s139
    %p143 = scmp.eq.s32.totalorder %s14, 0
    %p144 = por %p142, %p143
    %p145 = scmp.ne.s32.totalorder %s137, %s139
    %p146 = scmp.eq.s32.totalorder %s19, 2
    %p147 = por %p145, %p146
    %p148 = scmp.ne.s32.totalorder %s139, %s140
    %p149 = scmp.eq.s32.totalorder %s19, 0
    %p150 = por %p148, %p149
    %p151 = scmp.ne.s32.totalorder %s139, %s140
    %p152 = scmp.eq.s32.totalorder %s20, 2
    %p153 = por %p151, %p152
    %p155 = scmp.ne.s32.totalorder %s140, %s154
    %p156 = scmp.eq.s32.totalorder %s20, 0
    %p157 = por %p155, %p156
    %s159 = sadd.s32 %s158, 1
    %p162 = scmp.eq.s32.totalorder %s14, 2
    %p163 = scmp.ne.s32.totalorder %s158, %s160
    %p164 = scmp.eq.s32.totalorder %s14, 0
    %p165 = por %p163, %p164
    %p166 = scmp.ne.s32.totalorder %s158, %s160
    %p167 = scmp.eq.s32.totalorder %s19, 2
    %p168 = por %p166, %p167
    %p169 = scmp.ne.s32.totalorder %s160, %s161
    %p170 = scmp.eq.s32.totalorder %s19, 0
    %p171 = por %p169, %p170
    %p172 = scmp.ne.s32.totalorder %s160, %s161
    %p173 = scmp.eq.s32.totalorder %s20, 2
    %p174 = por %p172, %p173
    %p176 = scmp.ne.s32.totalorder %s161, %s175
    %p177 = scmp.eq.s32.totalorder %s20, 0
    %p178 = por %p176, %p177
    %s180 = sadd.s32 %s179, 1
    %p183 = scmp.eq.s32.totalorder %s14, 2
    %p184 = scmp.ne.s32.totalorder %s179, %s181
    %p185 = scmp.eq.s32.totalorder %s14, 0
    %p186 = por %p184, %p185
    %p187 = scmp.ne.s32.totalorder %s179, %s181
    %p188 = scmp.eq.s32.totalorder %s19, 2
    %p189 = por %p187, %p188
    %p190 = scmp.ne.s32.totalorder %s181, %s182
    %p191 = scmp.eq.s32.totalorder %s19, 0
    %p192 = por %p190, %p191
    %p193 = scmp.ne.s32.totalorder %s181, %s182
    %p194 = scmp.eq.s32.totalorder %s20, 2
    %p195 = por %p193, %p194
    %p197 = scmp.ne.s32.totalorder %s182, %s196
    %p198 = scmp.eq.s32.totalorder %s20, 0
    %p199 = por %p197, %p198
    %s200 = ssub.s32 %s14, %s21
    %p201 = scmp.eq.s32.totalorder %s200, 0
    %s203 = sadd.s32 %s202, 1
    %s204 = scalar_select %p201, %s202, %s203
    %p207 = pneg %p201
    %p208 = scmp.eq.s32.totalorder %s14, 2
    %p209 = por %p207, %p208
    %p210 = scmp.ne.s32.totalorder %s202, %s205
    %p211 = scmp.eq.s32.totalorder %s14, 0
    %p212 = por %p210, %p211
    %p213 = scmp.ne.s32.totalorder %s202, %s205
    %p214 = scmp.eq.s32.totalorder %s19, 2
    %p215 = por %p213, %p214
    %p216 = scmp.ne.s32.totalorder %s205, %s206
    %p217 = scmp.eq.s32.totalorder %s19, 0
    %p218 = por %p216, %p217
    %p219 = scmp.ne.s32.totalorder %s205, %s206
    %p220 = scmp.eq.s32.totalorder %s20, 2
    %p221 = por %p219, %p220
    %p223 = scmp.ne.s32.totalorder %s206, %s222
    %p224 = scmp.eq.s32.totalorder %s20, 0
    %p225 = por %p223, %p224
    %p226 = scmp.le.s32.totalorder 1, %s14
    %p227 = scmp.lt.s32.totalorder %s14, 4
    %p228 = pnand %p226, %p227
    %p229 = pneg %p228
    // Predicated region
    $region9: #{link_predictor_forward.3} parent=5 // pred_check
      _
    $region10: #{link_predictor_forward.3} parent=5 // pred_check_branch
      %231 = sbr.rel (%p228) target = $region12
    $region11: #{link_predictor_forward.3} parent=5 // pred_region
      %s232 = ssub.s32 %s14, 1
      // Predicated region
      $region13: #{link_predictor_forward.3} parent=11 // pred_check
        %p233 = pneg %p87
      $region14: #{link_predictor_forward.3} parent=11 // pred_check_branch
        %235 = sbr.rel (%p233) target = $region16
      $region15: #{link_predictor_forward.3} parent=11 // pred_region
        _
      $region16: #{link_predictor_forward.3} parent=11 // pred_fallthru
        _
      // Predicated region
      $region17: #{link_predictor_forward.3} parent=11 // pred_check
        %p236 = pneg %p108
      $region18: #{link_predictor_forward.3} parent=11 // pred_check_branch
        %238 = sbr.rel (%p236) target = $region20
      $region19: #{link_predictor_forward.3} parent=11 // pred_region
        _
      $region20: #{link_predictor_forward.3} parent=11 // pred_fallthru
        _
      // Predicated region
      $region21: #{link_predictor_forward.3} parent=11 // pred_check
        %p239 = pneg %p129
      $region22: #{link_predictor_forward.3} parent=11 // pred_check_branch
        %241 = sbr.rel (%p239) target = $region24
      $region23: #{link_predictor_forward.3} parent=11 // pred_region
        _
      $region24: #{link_predictor_forward.3} parent=11 // pred_fallthru
        _
      // Predicated region
      $region25: #{link_predictor_forward.3} parent=11 // pred_check
        %p242 = pneg %p150
      $region26: #{link_predictor_forward.3} parent=11 // pred_check_branch
        %244 = sbr.rel (%p242) target = $region28
      $region27: #{link_predictor_forward.3} parent=11 // pred_region
        _
      $region28: #{link_predictor_forward.3} parent=11 // pred_fallthru
        _
      // Predicated region
      $region29: #{link_predictor_forward.3} parent=11 // pred_check
        %p245 = pneg %p171
      $region30: #{link_predictor_forward.3} parent=11 // pred_check_branch
        %247 = sbr.rel (%p245) target = $region32
      $region31: #{link_predictor_forward.3} parent=11 // pred_region
        _
      $region32: #{link_predictor_forward.3} parent=11 // pred_fallthru
        _
      // Predicated region
      $region33: #{link_predictor_forward.3} parent=11 // pred_check
        %p248 = pneg %p192
      $region34: #{link_predictor_forward.3} parent=11 // pred_check_branch
        %250 = sbr.rel (%p248) target = $region36
      $region35: #{link_predictor_forward.3} parent=11 // pred_region
        _
      $region36: #{link_predictor_forward.3} parent=11 // pred_fallthru
        _
    $region12: #{link_predictor_forward.3} parent=5 // pred_fallthru
      _
    %p251 = scmp.lt.s32.totalorder %s14, 3
    // Predicated region
    $region37: #{link_predictor_forward.3} parent=5 // pred_check
      %p252 = pneg %p251
    $region38: #{link_predictor_forward.3} parent=5 // pred_check_branch
      %254 = sbr.rel (%p252) target = $region40
    $region39: #{link_predictor_forward.3} parent=5 // pred_region
      // Predicated region
      $region41: #{link_predictor_forward.3} parent=39 // pred_check
        %p255 = pneg %p34
      $region42: #{link_predictor_forward.3} parent=39 // pred_check_branch
        %257 = sbr.rel (%p255) target = $region44
      $region43: #{link_predictor_forward.3} parent=39 // pred_region
        %s258 = smul.u32 16, %s14
        %p259 = scmp.lt.s32.totalorder %s258, 47
        %s260 = scalar_select %p259, %s258, 47
        %s261 = smul.addr %s260, 8
        %s262 = scalar_lea.vmem %s0, %s261
        %s263 = smul.u32 16, %s14
      $region44: #{link_predictor_forward.3} parent=39 // pred_fallthru
        _
      // Predicated region
      $region45: #{link_predictor_forward.3} parent=39 // pred_check
        %p264 = pneg %p60
      $region46: #{link_predictor_forward.3} parent=39 // pred_check_branch
        %266 = sbr.rel (%p264) target = $region48
      $region47: #{link_predictor_forward.3} parent=39 // pred_region
        %s267 = smul.u32 16, %s14
        %p268 = scmp.lt.s32.totalorder %s267, 47
        %s269 = scalar_select %p268, %s267, 47
        %s270 = smul.addr %s269, 8
        %s271 = scalar_lea.vmem %s1, %s270
        %s272 = smul.u32 16, %s14
      $region48: #{link_predictor_forward.3} parent=39 // pred_fallthru
        _
    $region40: #{link_predictor_forward.3} parent=5 // pred_fallthru
      _
    %p273 = scmp.le.s32.totalorder 1, %s14
    %p274 = scmp.lt.s32.totalorder %s14, 4
    %p275 = pnand %p273, %p274
    %p276 = pneg %p275
    // Predicated region
    $region49: #{link_predictor_forward.3} parent=5 // pred_check
      _
    $region50: #{link_predictor_forward.3} parent=5 // pred_check_branch
      %278 = sbr.rel (%p275) target = $region52
    $region51: #{link_predictor_forward.3} parent=5 // pred_region
      %s279 = ssub.s32 %s14, 1
      %s280 = smul.u32 16, %s19
      %p281 = scmp.lt.s32.totalorder %s280, 47
      %s282 = scalar_select %p281, %s280, 47
      %s283 = smul.addr %s282, 8
      %s284 = scalar_lea.vmem %s0, %s283
      %p285 = pneg %p40
      %p286 = pneg %p37
      %s287 = smul.u32 16, %s19
      %p288 = scmp.lt.s32.totalorder %s287, 47
      %s289 = scalar_select %p288, %s287, 47
      %s290 = smul.addr %s289, 8
      %s291 = scalar_lea.vmem %s1, %s290
      %p292 = pneg %p66
      %p293 = pneg %p63
      %p294 = pneg %p87
      %p295 = pneg %p84
      %p296 = pneg %p108
      %p297 = pneg %p105
      %p298 = pneg %p129
      %p299 = pneg %p126
      %p300 = pneg %p150
      %p301 = pneg %p147
      %p302 = pneg %p171
      %p303 = pneg %p168
      %p304 = pneg %p192
      %p305 = pneg %p189
      %p306 = pneg %p218
      %p307 = pneg %p215
      %s308 = smul.u32 16, %s19
      %p309 = scmp.lt.s32.totalorder %s308, 47
      %s310 = scalar_select %p309, %s308, 47
      %s311 = smul.addr %s310, 8
      %s312 = scalar_lea.vmem %s8, %s311
      %s313 = smul.u32 16, %s19
      %p314 = scmp.lt.s32.totalorder %s313, 47
      %s315 = scalar_select %p314, %s313, 47
      %s316 = smul.addr %s315, 8
      %s317 = scalar_lea.vmem %s0, %s316
      %s318 = smul.u32 16, %s19
      %s319 = smul.u32 16, %s19
      %p320 = scmp.lt.s32.totalorder %s319, 47
      %s321 = scalar_select %p320, %s319, 47
      %s322 = smul.addr %s321, 8
      %s323 = scalar_lea.vmem %s1, %s322
      %s324 = smul.u32 16, %s19
      %s325 = smul.u32 16, %s19
      %p326 = scmp.lt.s32.totalorder %s325, 47
      %s327 = scalar_select %p326, %s325, 47
      %s328 = smul.addr %s327, 8
      %s329 = scalar_lea.vmem %s8, %s328
      %s330 = smul.u32 16, %s19
      %v332 = vld [vmem:[%s2] sm:$0xf]
      %v333 = vld [vmem:[%s2 + $0x4] sm:$0xf]
      %v334 = vld [vmem:[%s2 + $0x8] sm:$0xf]
      %v335 = vld [vmem:[%s2 + $0xc] sm:$0xf]
      %v336 = vld [vmem:[%s2 + $0x10] sm:$0xf]
      %v337 = vld [vmem:[%s2 + $0x14] sm:$0xf]
      %v338 = vld [vmem:[%s2 + $0x18] sm:$0xf]
      %v339 = vld [vmem:[%s2 + $0x1c] sm:$0xf]
      %v340 = vld [vmem:[%s2 + $0x20] sm:$0xf]
      %v341 = vld [vmem:[%s2 + $0x24] sm:$0xf]
      %v342 = vld [vmem:[%s2 + $0x28] sm:$0xf]
      %v343 = vld [vmem:[%s2 + $0x2c] sm:$0xf]
      %v344 = vld [vmem:[%s2 + $0x30] sm:$0xf]
      %v345 = vld [vmem:[%s2 + $0x34] sm:$0xf]
      %v346 = vld [vmem:[%s2 + $0x38] sm:$0xf]
      %v347 = vld [vmem:[%s2 + $0x3c] sm:$0xf]
      %v348 = vld [vmem:[%s2 + $0x40] sm:$0xf]
      %v349 = vld [vmem:[%s2 + $0x44] sm:$0xf]
      %v350 = vld [vmem:[%s2 + $0x48] sm:$0xf]
      %v351 = vld [vmem:[%s2 + $0x4c] sm:$0xf]
      %v352 = vld [vmem:[%s2 + $0x50] sm:$0xf]
      %v353 = vld [vmem:[%s2 + $0x54] sm:$0xf]
      %v354 = vld [vmem:[%s2 + $0x58] sm:$0xf]
      %v355 = vld [vmem:[%s2 + $0x5c] sm:$0xf]
      %v356 = vld [vmem:[%s2 + $0x60] sm:$0xf]
      %v357 = vld [vmem:[%s2 + $0x64] sm:$0xf]
      %v358 = vld [vmem:[%s2 + $0x68] sm:$0xf]
      %v359 = vld [vmem:[%s2 + $0x6c] sm:$0xf]
      %v360 = vld [vmem:[%s2 + $0x70] sm:$0xf]
      %v361 = vld [vmem:[%s2 + $0x74] sm:$0xf]
      %v362 = vld [vmem:[%s2 + $0x78] sm:$0xf]
      %v363 = vld [vmem:[%s2 + $0x7c] sm:$0xf]
      %v364 = vlaneseq
      %v365 = vand.u32 %v364, 127
      %v366 = vadd.s32 %v365, 128
      %v367 = vld [vmem:[%s317] sm:$0xff]
      %v368 = vld [vmem:[%s317 + $0x8] sm:$0xff]
      %v369 = vld [vmem:[%s317 + $0x10] sm:$0xff]
      %v370 = vld [vmem:[%s317 + $0x18] sm:$0xff]
      %v371 = vld [vmem:[%s317 + $0x20] sm:$0xff]
      %v372 = vld [vmem:[%s317 + $0x28] sm:$0xff]
      %v373 = vld [vmem:[%s317 + $0x30] sm:$0xff]
      %v374 = vld [vmem:[%s317 + $0x38] sm:$0xff]
      %v375 = vld [vmem:[%s317 + $0x40] sm:$0xff]
      %v376 = vld [vmem:[%s317 + $0x48] sm:$0xff]
      %v377 = vld [vmem:[%s317 + $0x50] sm:$0xff]
      %v378 = vld [vmem:[%s317 + $0x58] sm:$0xff]
      %v379 = vld [vmem:[%s317 + $0x60] sm:$0xff]
      %v380 = vld [vmem:[%s317 + $0x68] sm:$0xff]
      %v381 = vld [vmem:[%s317 + $0x70] sm:$0xff]
      %v382 = vld [vmem:[%s317 + $0x78] sm:$0xff]
      %383 = vset.pattern.permute.xlu0 0
      %384 = vperm.xlu0 %383, %v367
      %v385 = vpop.permute.xlu0 %384
      %386 = vset.pattern.permute.xlu0 0
      %387 = vperm.xlu0 %386, %v368
      %v388 = vpop.permute.xlu0 %387
      %389 = vset.pattern.permute.xlu0 0
      %390 = vperm.xlu0 %389, %v369
      %v391 = vpop.permute.xlu0 %390
      %392 = vset.pattern.permute.xlu0 0
      %393 = vperm.xlu0 %392, %v370
      %v394 = vpop.permute.xlu0 %393
      %395 = vset.pattern.permute.xlu0 0
      %396 = vperm.xlu0 %395, %v371
      %v397 = vpop.permute.xlu0 %396
      %398 = vset.pattern.permute.xlu0 0
      %399 = vperm.xlu0 %398, %v372
      %v400 = vpop.permute.xlu0 %399
      %401 = vset.pattern.permute.xlu0 0
      %402 = vperm.xlu0 %401, %v373
      %v403 = vpop.permute.xlu0 %402
      %404 = vset.pattern.permute.xlu0 0
      %405 = vperm.xlu0 %404, %v374
      %v406 = vpop.permute.xlu0 %405
      %407 = vset.pattern.permute.xlu0 0
      %408 = vperm.xlu0 %407, %v375
      %v409 = vpop.permute.xlu0 %408
      %410 = vset.pattern.permute.xlu0 0
      %411 = vperm.xlu0 %410, %v376
      %v412 = vpop.permute.xlu0 %411
      %413 = vset.pattern.permute.xlu0 0
      %414 = vperm.xlu0 %413, %v377
      %v415 = vpop.permute.xlu0 %414
      %416 = vset.pattern.permute.xlu0 0
      %417 = vperm.xlu0 %416, %v378
      %v418 = vpop.permute.xlu0 %417
      %419 = vset.pattern.permute.xlu0 0
      %420 = vperm.xlu0 %419, %v379
      %v421 = vpop.permute.xlu0 %420
      %422 = vset.pattern.permute.xlu0 0
      %423 = vperm.xlu0 %422, %v380
      %v424 = vpop.permute.xlu0 %423
      %425 = vset.pattern.permute.xlu0 0
      %426 = vperm.xlu0 %425, %v381
      %v427 = vpop.permute.xlu0 %426
      %428 = vset.pattern.permute.xlu0 0
      %429 = vperm.xlu0 %428, %v382
      %v430 = vpop.permute.xlu0 %429
      %vm431 = vcmp.eq.s32.totalorder %v385, %v365
      %vm432 = vcmp.eq.s32.totalorder %v385, %v366
      %vm433 = vcmp.eq.s32.totalorder %v388, %v365
      %vm434 = vcmp.eq.s32.totalorder %v388, %v366
      %vm435 = vcmp.eq.s32.totalorder %v391, %v365
      %vm436 = vcmp.eq.s32.totalorder %v391, %v366
      %vm437 = vcmp.eq.s32.totalorder %v394, %v365
      %vm438 = vcmp.eq.s32.totalorder %v394, %v366
      %vm439 = vcmp.eq.s32.totalorder %v397, %v365
      %vm440 = vcmp.eq.s32.totalorder %v397, %v366
      %vm441 = vcmp.eq.s32.totalorder %v400, %v365
      %vm442 = vcmp.eq.s32.totalorder %v400, %v366
      %vm443 = vcmp.eq.s32.totalorder %v403, %v365
      %vm444 = vcmp.eq.s32.totalorder %v403, %v366
      %vm445 = vcmp.eq.s32.totalorder %v406, %v365
      %vm446 = vcmp.eq.s32.totalorder %v406, %v366
      %vm447 = vcmp.eq.s32.totalorder %v409, %v365
      %vm448 = vcmp.eq.s32.totalorder %v409, %v366
      %vm449 = vcmp.eq.s32.totalorder %v412, %v365
      %vm450 = vcmp.eq.s32.totalorder %v412, %v366
      %vm451 = vcmp.eq.s32.totalorder %v415, %v365
      %vm452 = vcmp.eq.s32.totalorder %v415, %v366
      %vm453 = vcmp.eq.s32.totalorder %v418, %v365
      %vm454 = vcmp.eq.s32.totalorder %v418, %v366
      %vm455 = vcmp.eq.s32.totalorder %v421, %v365
      %vm456 = vcmp.eq.s32.totalorder %v421, %v366
      %vm457 = vcmp.eq.s32.totalorder %v424, %v365
      %vm458 = vcmp.eq.s32.totalorder %v424, %v366
      %vm459 = vcmp.eq.s32.totalorder %v427, %v365
      %vm460 = vcmp.eq.s32.totalorder %v427, %v366
      %vm461 = vcmp.eq.s32.totalorder %v430, %v365
      %vm462 = vcmp.eq.s32.totalorder %v430, %v366
      %v463 = vsel %vm431, 1.0, 0.0
      %v464 = vsel %vm432, 1.0, 0.0
      %v465 = vsel %vm433, 1.0, 0.0
      %v466 = vsel %vm434, 1.0, 0.0
      %v467 = vsel %vm435, 1.0, 0.0
      %v468 = vsel %vm436, 1.0, 0.0
      %v469 = vsel %vm437, 1.0, 0.0
      %v470 = vsel %vm438, 1.0, 0.0
      %v471 = vsel %vm439, 1.0, 0.0
      %v472 = vsel %vm440, 1.0, 0.0
      %v473 = vsel %vm441, 1.0, 0.0
      %v474 = vsel %vm442, 1.0, 0.0
      %v475 = vsel %vm443, 1.0, 0.0
      %v476 = vsel %vm444, 1.0, 0.0
      %v477 = vsel %vm445, 1.0, 0.0
      %v478 = vsel %vm446, 1.0, 0.0
      %v479 = vsel %vm447, 1.0, 0.0
      %v480 = vsel %vm448, 1.0, 0.0
      %v481 = vsel %vm449, 1.0, 0.0
      %v482 = vsel %vm450, 1.0, 0.0
      %v483 = vsel %vm451, 1.0, 0.0
      %v484 = vsel %vm452, 1.0, 0.0
      %v485 = vsel %vm453, 1.0, 0.0
      %v486 = vsel %vm454, 1.0, 0.0
      %v487 = vsel %vm455, 1.0, 0.0
      %v488 = vsel %vm456, 1.0, 0.0
      %v489 = vsel %vm457, 1.0, 0.0
      %v490 = vsel %vm458, 1.0, 0.0
      %v491 = vsel %vm459, 1.0, 0.0
      %v492 = vsel %vm460, 1.0, 0.0
      %v493 = vsel %vm461, 1.0, 0.0
      %v494 = vsel %vm462, 1.0, 0.0
      %v495 = vpack.c.bf16 %v465, %v463
      %v496 = vpack.c.bf16 %v466, %v464
      %v497 = vpack.c.bf16 %v469, %v467
      %v498 = vpack.c.bf16 %v470, %v468
      %v499 = vpack.c.bf16 %v473, %v471
      %v500 = vpack.c.bf16 %v474, %v472
      %v501 = vpack.c.bf16 %v477, %v475
      %v502 = vpack.c.bf16 %v478, %v476
      %v503 = vpack.c.bf16 %v481, %v479
      %v504 = vpack.c.bf16 %v482, %v480
      %v505 = vpack.c.bf16 %v485, %v483
      %v506 = vpack.c.bf16 %v486, %v484
      %v507 = vpack.c.bf16 %v489, %v487
      %v508 = vpack.c.bf16 %v490, %v488
      %v509 = vpack.c.bf16 %v493, %v491
      %v510 = vpack.c.bf16 %v494, %v492
      %v511 = vld [vmem:[%s323] sm:$0xff]
      %v512 = vld [vmem:[%s323 + $0x8] sm:$0xff]
      %v513 = vld [vmem:[%s323 + $0x10] sm:$0xff]
      %v514 = vld [vmem:[%s323 + $0x18] sm:$0xff]
      %v515 = vld [vmem:[%s323 + $0x20] sm:$0xff]
      %v516 = vld [vmem:[%s323 + $0x28] sm:$0xff]
      %v517 = vld [vmem:[%s323 + $0x30] sm:$0xff]
      %v518 = vld [vmem:[%s323 + $0x38] sm:$0xff]
      %v519 = vld [vmem:[%s323 + $0x40] sm:$0xff]
      %v520 = vld [vmem:[%s323 + $0x48] sm:$0xff]
      %v521 = vld [vmem:[%s323 + $0x50] sm:$0xff]
      %v522 = vld [vmem:[%s323 + $0x58] sm:$0xff]
      %v523 = vld [vmem:[%s323 + $0x60] sm:$0xff]
      %v524 = vld [vmem:[%s323 + $0x68] sm:$0xff]
      %v525 = vld [vmem:[%s323 + $0x70] sm:$0xff]
      %v526 = vld [vmem:[%s323 + $0x78] sm:$0xff]
      %527 = vset.pattern.permute.xlu0 0
      %528 = vperm.xlu0 %527, %v511
      %v529 = vpop.permute.xlu0 %528
      %530 = vset.pattern.permute.xlu0 0
      %531 = vperm.xlu0 %530, %v512
      %v532 = vpop.permute.xlu0 %531
      %533 = vset.pattern.permute.xlu0 0
      %534 = vperm.xlu0 %533, %v513
      %v535 = vpop.permute.xlu0 %534
      %536 = vset.pattern.permute.xlu0 0
      %537 = vperm.xlu0 %536, %v514
      %v538 = vpop.permute.xlu0 %537
      %539 = vset.pattern.permute.xlu0 0
      %540 = vperm.xlu0 %539, %v515
      %v541 = vpop.permute.xlu0 %540
      %542 = vset.pattern.permute.xlu0 0
      %543 = vperm.xlu0 %542, %v516
      %v544 = vpop.permute.xlu0 %543
      %545 = vset.pattern.permute.xlu0 0
      %546 = vperm.xlu0 %545, %v517
      %v547 = vpop.permute.xlu0 %546
      %548 = vset.pattern.permute.xlu0 0
      %549 = vperm.xlu0 %548, %v518
      %v550 = vpop.permute.xlu0 %549
      %551 = vset.pattern.permute.xlu0 0
      %552 = vperm.xlu0 %551, %v519
      %v553 = vpop.permute.xlu0 %552
      %554 = vset.pattern.permute.xlu0 0
      %555 = vperm.xlu0 %554, %v520
      %v556 = vpop.permute.xlu0 %555
      %557 = vset.pattern.permute.xlu0 0
      %558 = vperm.xlu0 %557, %v521
      %v559 = vpop.permute.xlu0 %558
      %560 = vset.pattern.permute.xlu0 0
      %561 = vperm.xlu0 %560, %v522
      %v562 = vpop.permute.xlu0 %561
      %563 = vset.pattern.permute.xlu0 0
      %564 = vperm.xlu0 %563, %v523
      %v565 = vpop.permute.xlu0 %564
      %566 = vset.pattern.permute.xlu0 0
      %567 = vperm.xlu0 %566, %v524
      %v568 = vpop.permute.xlu0 %567
      %569 = vset.pattern.permute.xlu0 0
      %570 = vperm.xlu0 %569, %v525
      %v571 = vpop.permute.xlu0 %570
      %572 = vset.pattern.permute.xlu0 0
      %573 = vperm.xlu0 %572, %v526
      %v574 = vpop.permute.xlu0 %573
      %vm575 = vcmp.eq.s32.totalorder %v529, %v365
      %vm576 = vcmp.eq.s32.totalorder %v529, %v366
      %vm577 = vcmp.eq.s32.totalorder %v532, %v365
      %vm578 = vcmp.eq.s32.totalorder %v532, %v366
      %vm579 = vcmp.eq.s32.totalorder %v535, %v365
      %vm580 = vcmp.eq.s32.totalorder %v535, %v366
      %vm581 = vcmp.eq.s32.totalorder %v538, %v365
      %vm582 = vcmp.eq.s32.totalorder %v538, %v366
      %vm583 = vcmp.eq.s32.totalorder %v541, %v365
      %vm584 = vcmp.eq.s32.totalorder %v541, %v366
      %vm585 = vcmp.eq.s32.totalorder %v544, %v365
      %vm586 = vcmp.eq.s32.totalorder %v544, %v366
      %vm587 = vcmp.eq.s32.totalorder %v547, %v365
      %vm588 = vcmp.eq.s32.totalorder %v547, %v366
      %vm589 = vcmp.eq.s32.totalorder %v550, %v365
      %vm590 = vcmp.eq.s32.totalorder %v550, %v366
      %vm591 = vcmp.eq.s32.totalorder %v553, %v365
      %vm592 = vcmp.eq.s32.totalorder %v553, %v366
      %vm593 = vcmp.eq.s32.totalorder %v556, %v365
      %vm594 = vcmp.eq.s32.totalorder %v556, %v366
      %vm595 = vcmp.eq.s32.totalorder %v559, %v365
      %vm596 = vcmp.eq.s32.totalorder %v559, %v366
      %vm597 = vcmp.eq.s32.totalorder %v562, %v365
      %vm598 = vcmp.eq.s32.totalorder %v562, %v366
      %vm599 = vcmp.eq.s32.totalorder %v565, %v365
      %vm600 = vcmp.eq.s32.totalorder %v565, %v366
      %vm601 = vcmp.eq.s32.totalorder %v568, %v365
      %vm602 = vcmp.eq.s32.totalorder %v568, %v366
      %vm603 = vcmp.eq.s32.totalorder %v571, %v365
      %vm604 = vcmp.eq.s32.totalorder %v571, %v366
      %vm605 = vcmp.eq.s32.totalorder %v574, %v365
      %vm606 = vcmp.eq.s32.totalorder %v574, %v366
      %v607 = vsel %vm575, 1.0, 0.0
      %v608 = vsel %vm576, 1.0, 0.0
      %v609 = vsel %vm577, 1.0, 0.0
      %v610 = vsel %vm578, 1.0, 0.0
      %v611 = vsel %vm579, 1.0, 0.0
      %v612 = vsel %vm580, 1.0, 0.0
      %v613 = vsel %vm581, 1.0, 0.0
      %v614 = vsel %vm582, 1.0, 0.0
      %v615 = vsel %vm583, 1.0, 0.0
      %v616 = vsel %vm584, 1.0, 0.0
      %v617 = vsel %vm585, 1.0, 0.0
      %v618 = vsel %vm586, 1.0, 0.0
      %v619 = vsel %vm587, 1.0, 0.0
      %v620 = vsel %vm588, 1.0, 0.0
      %v621 = vsel %vm589, 1.0, 0.0
      %v622 = vsel %vm590, 1.0, 0.0
      %v623 = vsel %vm591, 1.0, 0.0
      %v624 = vsel %vm592, 1.0, 0.0
      %v625 = vsel %vm593, 1.0, 0.0
      %v626 = vsel %vm594, 1.0, 0.0
      %v627 = vsel %vm595, 1.0, 0.0
      %v628 = vsel %vm596, 1.0, 0.0
      %v629 = vsel %vm597, 1.0, 0.0
      %v630 = vsel %vm598, 1.0, 0.0
      %v631 = vsel %vm599, 1.0, 0.0
      %v632 = vsel %vm600, 1.0, 0.0
      %v633 = vsel %vm601, 1.0, 0.0
      %v634 = vsel %vm602, 1.0, 0.0
      %v635 = vsel %vm603, 1.0, 0.0
      %v636 = vsel %vm604, 1.0, 0.0
      %v637 = vsel %vm605, 1.0, 0.0
      %v638 = vsel %vm606, 1.0, 0.0
      %v639 = vpack.c.bf16 %v609, %v607
      %v640 = vpack.c.bf16 %v610, %v608
      %v641 = vpack.c.bf16 %v613, %v611
      %v642 = vpack.c.bf16 %v614, %v612
      %v643 = vpack.c.bf16 %v617, %v615
      %v644 = vpack.c.bf16 %v618, %v616
      %v645 = vpack.c.bf16 %v621, %v619
      %v646 = vpack.c.bf16 %v622, %v620
      %v647 = vpack.c.bf16 %v625, %v623
      %v648 = vpack.c.bf16 %v626, %v624
      %v649 = vpack.c.bf16 %v629, %v627
      %v650 = vpack.c.bf16 %v630, %v628
      %v651 = vpack.c.bf16 %v633, %v631
      %v652 = vpack.c.bf16 %v634, %v632
      %v653 = vpack.c.bf16 %v637, %v635
      %v654 = vpack.c.bf16 %v638, %v636
      %v687 = vunpack.c.l.b16 %v332
      %v688 = vunpack.c.l.b16 %v333
      %v689 = vunpack.c.l.b16 %v334
      %v690 = vunpack.c.l.b16 %v335
      %v691 = vunpack.c.l.b16 %v336
      %v692 = vunpack.c.l.b16 %v337
      %v693 = vunpack.c.l.b16 %v338
      %v694 = vunpack.c.l.b16 %v339
      %v695 = vunpack.c.l.b16 %v340
      %v696 = vunpack.c.l.b16 %v341
      %v697 = vunpack.c.l.b16 %v342
      %v698 = vunpack.c.l.b16 %v343
      %v699 = vunpack.c.l.b16 %v344
      %v700 = vunpack.c.l.b16 %v345
      %v701 = vunpack.c.l.b16 %v346
      %v702 = vunpack.c.l.b16 %v347
      %v703 = vunpack.c.l.b16 %v348
      %v704 = vunpack.c.l.b16 %v349
      %v705 = vunpack.c.l.b16 %v350
      %v706 = vunpack.c.l.b16 %v351
      %v707 = vunpack.c.l.b16 %v352
      %v708 = vunpack.c.l.b16 %v353
      %v709 = vunpack.c.l.b16 %v354
      %v710 = vunpack.c.l.b16 %v355
      %v711 = vunpack.c.l.b16 %v356
      %v712 = vunpack.c.l.b16 %v357
      %v713 = vunpack.c.l.b16 %v358
      %v714 = vunpack.c.l.b16 %v359
      %v715 = vunpack.c.l.b16 %v360
      %v716 = vunpack.c.l.b16 %v361
      %v717 = vunpack.c.l.b16 %v362
      %v718 = vunpack.c.l.b16 %v363
      %v719 = vpack.c.b16 %v688, %v687
      %v720 = vpack.c.b16 %v690, %v689
      %v721 = vpack.c.b16 %v692, %v691
      %v722 = vpack.c.b16 %v694, %v693
      %v723 = vpack.c.b16 %v696, %v695
      %v724 = vpack.c.b16 %v698, %v697
      %v725 = vpack.c.b16 %v700, %v699
      %v726 = vpack.c.b16 %v702, %v701
      %v727 = vpack.c.b16 %v704, %v703
      %v728 = vpack.c.b16 %v706, %v705
      %v729 = vpack.c.b16 %v708, %v707
      %v730 = vpack.c.b16 %v710, %v709
      %v731 = vpack.c.b16 %v712, %v711
      %v732 = vpack.c.b16 %v714, %v713
      %v733 = vpack.c.b16 %v716, %v715
      %v734 = vpack.c.b16 %v718, %v717
      %751 = vmatprep.subr.bf16.mxu0 0
      %752 = vmatpush1.bf16.msra.mxu0 %v726
      %753 = vmatprep.subr.bf16.mxu0 0
      %754 = vmatpush1.bf16.msra.mxu0 %v725
      %755 = vmatprep.subr.bf16.mxu0 0
      %756 = vmatpush1.bf16.msra.mxu0 %v724
      %757 = vmatprep.subr.bf16.mxu0 0
      %758 = vmatpush1.bf16.msra.mxu0 %v723
      %759 = vmatprep.subr.bf16.mxu0 0
      %760 = vmatpush1.bf16.msra.mxu0 %v722
      %761 = vmatprep.subr.bf16.mxu0 0
      %762 = vmatpush1.bf16.msra.mxu0 %v721
      %763 = vmatprep.subr.bf16.mxu0 0
      %764 = vmatpush1.bf16.msra.mxu0 %v720
      %765 = vmatprep.subr.bf16.mxu0 0
      %766 = vmatpush1.bf16.msra.mxu0 %v719
      %767 = vmatprep.subr.bf16.mxu0 0
      %768 = vmatpush2.bf16.msra.mxu0 %v734
      %769 = vmatprep.subr.bf16.mxu0 0
      %770 = vmatpush2.bf16.msra.mxu0 %v733
      %771 = vmatprep.subr.bf16.mxu0 0
      %772 = vmatpush2.bf16.msra.mxu0 %v732
      %773 = vmatprep.subr.bf16.mxu0 0
      %774 = vmatpush2.bf16.msra.mxu0 %v731
      %775 = vmatprep.subr.bf16.mxu0 0
      %776 = vmatpush2.bf16.msra.mxu0 %v730
      %777 = vmatprep.subr.bf16.mxu0 0
      %778 = vmatpush2.bf16.msra.mxu0 %v729
      %779 = vmatprep.subr.bf16.mxu0 0
      %780 = vmatpush2.bf16.msra.mxu0 %v728
      %781 = vmatprep.subr.bf16.mxu0 0
      %782 = vmatpush2.bf16.msra.mxu0 %v727
      %783 = vmatprep.mubr.bf16.mxu0 %v496
      %784 = vmatmul.mubr.bf16.gmra.mxu0 %v495
      %v785 = vpop.f32.mrf.mxu0
      %v786 = vadd.f32 0.0, %v785
      %v787 = vpop.f32.mrf.mxu0
      %v788 = vpop.f32.mrf.mxu0
      %v789 = vadd.f32 0.0, %v788
      %v790 = vpop.f32.mrf.mxu0
      %791 = vmatprep.mubr.bf16.mxu0 %v498
      %792 = vmatmul.mubr.bf16.gmra.mxu0 %v497
      %v793 = vpop.f32.mrf.mxu0
      %v794 = vadd.f32 0.0, %v793
      %v795 = vpop.f32.mrf.mxu0
      %v796 = vpop.f32.mrf.mxu0
      %v797 = vadd.f32 0.0, %v796
      %v798 = vpop.f32.mrf.mxu0
      %799 = vmatprep.mubr.bf16.mxu0 %v500
      %800 = vmatmul.mubr.bf16.gmra.mxu0 %v499
      %v801 = vpop.f32.mrf.mxu0
      %v802 = vadd.f32 0.0, %v801
      %v803 = vpop.f32.mrf.mxu0
      %v804 = vpop.f32.mrf.mxu0
      %v805 = vadd.f32 0.0, %v804
      %v806 = vpop.f32.mrf.mxu0
      %807 = vmatprep.mubr.bf16.mxu0 %v502
      %808 = vmatmul.mubr.bf16.gmra.mxu0 %v501
      %v809 = vpop.f32.mrf.mxu0
      %v810 = vadd.f32 0.0, %v809
      %v811 = vpop.f32.mrf.mxu0
      %v812 = vpop.f32.mrf.mxu0
      %v813 = vadd.f32 0.0, %v812
      %v814 = vpop.f32.mrf.mxu0
      %815 = vmatprep.mubr.bf16.mxu0 %v504
      %816 = vmatmul.mubr.bf16.gmra.mxu0 %v503
      %v817 = vpop.f32.mrf.mxu0
      %v818 = vadd.f32 0.0, %v817
      %v819 = vpop.f32.mrf.mxu0
      %v820 = vpop.f32.mrf.mxu0
      %v821 = vadd.f32 0.0, %v820
      %v822 = vpop.f32.mrf.mxu0
      %823 = vmatprep.mubr.bf16.mxu0 %v506
      %824 = vmatmul.mubr.bf16.gmra.mxu0 %v505
      %v825 = vpop.f32.mrf.mxu0
      %v826 = vadd.f32 0.0, %v825
      %v827 = vpop.f32.mrf.mxu0
      %v828 = vpop.f32.mrf.mxu0
      %v829 = vadd.f32 0.0, %v828
      %v830 = vpop.f32.mrf.mxu0
      %831 = vmatprep.mubr.bf16.mxu0 %v508
      %832 = vmatmul.mubr.bf16.gmra.mxu0 %v507
      %v833 = vpop.f32.mrf.mxu0
      %v834 = vadd.f32 0.0, %v833
      %v835 = vpop.f32.mrf.mxu0
      %v836 = vpop.f32.mrf.mxu0
      %v837 = vadd.f32 0.0, %v836
      %v838 = vpop.f32.mrf.mxu0
      %839 = vmatprep.mubr.bf16.mxu0 %v510
      %840 = vmatmul.mubr.bf16.gmra.mxu0 %v509
      %v841 = vpop.f32.mrf.mxu0
      %v842 = vadd.f32 0.0, %v841
      %v843 = vpop.f32.mrf.mxu0
      %v844 = vpop.f32.mrf.mxu0
      %v845 = vadd.f32 0.0, %v844
      %v846 = vpop.f32.mrf.mxu0
      %847 = vdwg.mxu0
      %848 = vmatprep.subr.bf16.mxu0 0
      %849 = vmatpush1.bf16.msra.mxu0 %v726
      %850 = vmatprep.subr.bf16.mxu0 0
      %851 = vmatpush1.bf16.msra.mxu0 %v725
      %852 = vmatprep.subr.bf16.mxu0 0
      %853 = vmatpush1.bf16.msra.mxu0 %v724
      %854 = vmatprep.subr.bf16.mxu0 0
      %855 = vmatpush1.bf16.msra.mxu0 %v723
      %856 = vmatprep.subr.bf16.mxu0 0
      %857 = vmatpush1.bf16.msra.mxu0 %v722
      %858 = vmatprep.subr.bf16.mxu0 0
      %859 = vmatpush1.bf16.msra.mxu0 %v721
      %860 = vmatprep.subr.bf16.mxu0 0
      %861 = vmatpush1.bf16.msra.mxu0 %v720
      %862 = vmatprep.subr.bf16.mxu0 0
      %863 = vmatpush1.bf16.msra.mxu0 %v719
      %864 = vmatprep.subr.bf16.mxu0 0
      %865 = vmatpush2.bf16.msra.mxu0 %v734
      %866 = vmatprep.subr.bf16.mxu0 0
      %867 = vmatpush2.bf16.msra.mxu0 %v733
      %868 = vmatprep.subr.bf16.mxu0 0
      %869 = vmatpush2.bf16.msra.mxu0 %v732
      %870 = vmatprep.subr.bf16.mxu0 0
      %871 = vmatpush2.bf16.msra.mxu0 %v731
      %872 = vmatprep.subr.bf16.mxu0 0
      %873 = vmatpush2.bf16.msra.mxu0 %v730
      %874 = vmatprep.subr.bf16.mxu0 0
      %875 = vmatpush2.bf16.msra.mxu0 %v729
      %876 = vmatprep.subr.bf16.mxu0 0
      %877 = vmatpush2.bf16.msra.mxu0 %v728
      %878 = vmatprep.subr.bf16.mxu0 0
      %879 = vmatpush2.bf16.msra.mxu0 %v727
      %880 = vmatprep.mubr.bf16.mxu0 %v640
      %881 = vmatmul.mubr.bf16.gmra.mxu0 %v639
      %v882 = vpop.f32.mrf.mxu0
      %v883 = vadd.f32 0.0, %v882
      %v884 = vpop.f32.mrf.mxu0
      %v885 = vpop.f32.mrf.mxu0
      %v886 = vadd.f32 0.0, %v885
      %v887 = vpop.f32.mrf.mxu0
      %888 = vmatprep.mubr.bf16.mxu0 %v642
      %889 = vmatmul.mubr.bf16.gmra.mxu0 %v641
      %v890 = vpop.f32.mrf.mxu0
      %v891 = vadd.f32 0.0, %v890
      %v892 = vpop.f32.mrf.mxu0
      %v893 = vpop.f32.mrf.mxu0
      %v894 = vadd.f32 0.0, %v893
      %v895 = vpop.f32.mrf.mxu0
      %896 = vmatprep.mubr.bf16.mxu0 %v644
      %897 = vmatmul.mubr.bf16.gmra.mxu0 %v643
      %v898 = vpop.f32.mrf.mxu0
      %v899 = vadd.f32 0.0, %v898
      %v900 = vpop.f32.mrf.mxu0
      %v901 = vpop.f32.mrf.mxu0
      %v902 = vadd.f32 0.0, %v901
      %v903 = vpop.f32.mrf.mxu0
      %904 = vmatprep.mubr.bf16.mxu0 %v646
      %905 = vmatmul.mubr.bf16.gmra.mxu0 %v645
      %v906 = vpop.f32.mrf.mxu0
      %v907 = vadd.f32 0.0, %v906
      %v908 = vpop.f32.mrf.mxu0
      %v909 = vpop.f32.mrf.mxu0
      %v910 = vadd.f32 0.0, %v909
      %v911 = vpop.f32.mrf.mxu0
      %912 = vmatprep.mubr.bf16.mxu0 %v648
      %913 = vmatmul.mubr.bf16.gmra.mxu0 %v647
      %v914 = vpop.f32.mrf.mxu0
      %v915 = vadd.f32 0.0, %v914
      %v916 = vpop.f32.mrf.mxu0
      %v917 = vpop.f32.mrf.mxu0
      %v918 = vadd.f32 0.0, %v917
      %v919 = vpop.f32.mrf.mxu0
      %920 = vmatprep.mubr.bf16.mxu0 %v650
      %921 = vmatmul.mubr.bf16.gmra.mxu0 %v649
      %v922 = vpop.f32.mrf.mxu0
      %v923 = vadd.f32 0.0, %v922
      %v924 = vpop.f32.mrf.mxu0
      %v925 = vpop.f32.mrf.mxu0
      %v926 = vadd.f32 0.0, %v925
      %v927 = vpop.f32.mrf.mxu0
      %928 = vmatprep.mubr.bf16.mxu0 %v652
      %929 = vmatmul.mubr.bf16.gmra.mxu0 %v651
      %v930 = vpop.f32.mrf.mxu0
      %v931 = vadd.f32 0.0, %v930
      %v932 = vpop.f32.mrf.mxu0
      %v933 = vpop.f32.mrf.mxu0
      %v934 = vadd.f32 0.0, %v933
      %v935 = vpop.f32.mrf.mxu0
      %936 = vmatprep.mubr.bf16.mxu0 %v654
      %937 = vmatmul.mubr.bf16.gmra.mxu0 %v653
      %v938 = vpop.f32.mrf.mxu0
      %v939 = vadd.f32 0.0, %v938
      %v940 = vpop.f32.mrf.mxu0
      %v941 = vpop.f32.mrf.mxu0
      %v942 = vadd.f32 0.0, %v941
      %v943 = vpop.f32.mrf.mxu0
      %944 = vdwg.mxu0
      %v945 = vpack.c.bf16 %v789, %v786
      %v946 = vpack.c.bf16 %v797, %v794
      %v947 = vpack.c.bf16 %v805, %v802
      %v948 = vpack.c.bf16 %v813, %v810
      %v949 = vpack.c.bf16 %v821, %v818
      %v950 = vpack.c.bf16 %v829, %v826
      %v951 = vpack.c.bf16 %v837, %v834
      %v952 = vpack.c.bf16 %v845, %v842
      %v953 = vld [vmem:[%s3] sm:$0xff]
      %v954 = vld [vmem:[%s3 + $0x8] sm:$0xff]
      %v955 = vld [vmem:[%s3 + $0x10] sm:$0xff]
      %v956 = vld [vmem:[%s3 + $0x18] sm:$0xff]
      %v957 = vld [vmem:[%s3 + $0x20] sm:$0xff]
      %v958 = vld [vmem:[%s3 + $0x28] sm:$0xff]
      %v959 = vld [vmem:[%s3 + $0x30] sm:$0xff]
      %v960 = vld [vmem:[%s3 + $0x38] sm:$0xff]
      %v961 = vld [vmem:[%s3 + $0x40] sm:$0xff]
      %v962 = vld [vmem:[%s3 + $0x48] sm:$0xff]
      %v963 = vld [vmem:[%s3 + $0x50] sm:$0xff]
      %v964 = vld [vmem:[%s3 + $0x58] sm:$0xff]
      %v965 = vld [vmem:[%s3 + $0x60] sm:$0xff]
      %v966 = vld [vmem:[%s3 + $0x68] sm:$0xff]
      %v967 = vld [vmem:[%s3 + $0x70] sm:$0xff]
      %v968 = vld [vmem:[%s3 + $0x78] sm:$0xff]
      %v969 = vpack.c.bf16 %v886, %v883
      %v970 = vpack.c.bf16 %v894, %v891
      %v971 = vpack.c.bf16 %v902, %v899
      %v972 = vpack.c.bf16 %v910, %v907
      %v973 = vpack.c.bf16 %v918, %v915
      %v974 = vpack.c.bf16 %v926, %v923
      %v975 = vpack.c.bf16 %v934, %v931
      %v976 = vpack.c.bf16 %v942, %v939
      %v977 = vld [vmem:[%s4] sm:$0xff]
      %v978 = vld [vmem:[%s4 + $0x8] sm:$0xff]
      %v979 = vld [vmem:[%s4 + $0x10] sm:$0xff]
      %v980 = vld [vmem:[%s4 + $0x18] sm:$0xff]
      %v981 = vld [vmem:[%s4 + $0x20] sm:$0xff]
      %v982 = vld [vmem:[%s4 + $0x28] sm:$0xff]
      %v983 = vld [vmem:[%s4 + $0x30] sm:$0xff]
      %v984 = vld [vmem:[%s4 + $0x38] sm:$0xff]
      %v985 = vld [vmem:[%s4 + $0x40] sm:$0xff]
      %v986 = vld [vmem:[%s4 + $0x48] sm:$0xff]
      %v987 = vld [vmem:[%s4 + $0x50] sm:$0xff]
      %v988 = vld [vmem:[%s4 + $0x58] sm:$0xff]
      %v989 = vld [vmem:[%s4 + $0x60] sm:$0xff]
      %v990 = vld [vmem:[%s4 + $0x68] sm:$0xff]
      %v991 = vld [vmem:[%s4 + $0x70] sm:$0xff]
      %v992 = vld [vmem:[%s4 + $0x78] sm:$0xff]
      %v1009 = vunpack.c.l.b16 %v977
      %v1010 = vunpack.c.h.b16 %v977
      %v1011 = vunpack.c.l.b16 %v978
      %v1012 = vunpack.c.h.b16 %v978
      %v1013 = vunpack.c.l.b16 %v979
      %v1014 = vunpack.c.h.b16 %v979
      %v1015 = vunpack.c.l.b16 %v980
      %v1016 = vunpack.c.h.b16 %v980
      %v1017 = vunpack.c.l.b16 %v981
      %v1018 = vunpack.c.h.b16 %v981
      %v1019 = vunpack.c.l.b16 %v982
      %v1020 = vunpack.c.h.b16 %v982
      %v1021 = vunpack.c.l.b16 %v983
      %v1022 = vunpack.c.h.b16 %v983
      %v1023 = vunpack.c.l.b16 %v984
      %v1024 = vunpack.c.h.b16 %v984
      %v1025 = vunpack.c.l.b16 %v985
      %v1026 = vunpack.c.h.b16 %v985
      %v1027 = vunpack.c.l.b16 %v986
      %v1028 = vunpack.c.h.b16 %v986
      %v1029 = vunpack.c.l.b16 %v987
      %v1030 = vunpack.c.h.b16 %v987
      %v1031 = vunpack.c.l.b16 %v988
      %v1032 = vunpack.c.h.b16 %v988
      %v1033 = vunpack.c.l.b16 %v989
      %v1034 = vunpack.c.h.b16 %v989
      %v1035 = vunpack.c.l.b16 %v990
      %v1036 = vunpack.c.h.b16 %v990
      %v1037 = vunpack.c.l.b16 %v991
      %v1038 = vunpack.c.h.b16 %v991
      %v1039 = vunpack.c.l.b16 %v992
      %v1040 = vunpack.c.h.b16 %v992
      %v1041 = vpack.c.b16 %v1011, %v1009
      %v1042 = vpack.c.b16 %v1012, %v1010
      %v1043 = vpack.c.b16 %v1015, %v1013
      %v1044 = vpack.c.b16 %v1016, %v1014
      %v1045 = vpack.c.b16 %v1019, %v1017
      %v1046 = vpack.c.b16 %v1020, %v1018
      %v1047 = vpack.c.b16 %v1023, %v1021
      %v1048 = vpack.c.b16 %v1024, %v1022
      %v1049 = vpack.c.b16 %v1027, %v1025
      %v1050 = vpack.c.b16 %v1028, %v1026
      %v1051 = vpack.c.b16 %v1031, %v1029
      %v1052 = vpack.c.b16 %v1032, %v1030
      %v1053 = vpack.c.b16 %v1035, %v1033
      %v1054 = vpack.c.b16 %v1036, %v1034
      %v1055 = vpack.c.b16 %v1039, %v1037
      %v1056 = vpack.c.b16 %v1040, %v1038
      %1073 = vmatprep.subr.bf16.mxu0 %v1056
      %1074 = vmatpush1.bf16.msra.mxu0 %v1055
      %1075 = vmatprep.subr.bf16.mxu0 %v1054
      %1076 = vmatpush1.bf16.msra.mxu0 %v1053
      %1077 = vmatprep.subr.bf16.mxu0 %v1052
      %1078 = vmatpush1.bf16.msra.mxu0 %v1051
      %1079 = vmatprep.subr.bf16.mxu0 %v1050
      %1080 = vmatpush1.bf16.msra.mxu0 %v1049
      %1081 = vmatprep.subr.bf16.mxu0 %v1048
      %1082 = vmatpush1.bf16.msra.mxu0 %v1047
      %1083 = vmatprep.subr.bf16.mxu0 %v1046
      %1084 = vmatpush1.bf16.msra.mxu0 %v1045
      %1085 = vmatprep.subr.bf16.mxu0 %v1044
      %1086 = vmatpush1.bf16.msra.mxu0 %v1043
      %1087 = vmatprep.subr.bf16.mxu0 %v1042
      %1088 = vmatpush1.bf16.msra.mxu0 %v1041
      %1089 = vmatprep.subr.bf16.mxu0 0
      %1090 = vmatpush2.bf16.msra.mxu0 0
      %1091 = vmatprep.subr.bf16.mxu0 0
      %1092 = vmatpush2.bf16.msra.mxu0 0
      %1093 = vmatprep.subr.bf16.mxu0 0
      %1094 = vmatpush2.bf16.msra.mxu0 0
      %1095 = vmatprep.subr.bf16.mxu0 0
      %1096 = vmatpush2.bf16.msra.mxu0 0
      %1097 = vmatprep.subr.bf16.mxu0 0
      %1098 = vmatpush2.bf16.msra.mxu0 0
      %1099 = vmatprep.subr.bf16.mxu0 0
      %1100 = vmatpush2.bf16.msra.mxu0 0
      %1101 = vmatprep.subr.bf16.mxu0 0
      %1102 = vmatpush2.bf16.msra.mxu0 0
      %1103 = vmatprep.subr.bf16.mxu0 0
      %1104 = vmatpush2.bf16.msra.mxu0 0
      %1105 = vmatprep.mubr.bf16.mxu0 0
      %1106 = vmatmul.mubr.bf16.gmra.mxu0 %v969
      %v1107 = vpop.f32.mrf.mxu0
      %v1108 = vadd.f32 0.0, %v1107
      %v1109 = vpop.f32.mrf.mxu0
      %v1110 = vadd.f32 0.0, %v1109
      %v1111 = vpop.f32.mrf.mxu0
      %v1112 = vadd.f32 0.0, %v1111
      %v1113 = vpop.f32.mrf.mxu0
      %v1114 = vadd.f32 0.0, %v1113
      %1115 = vmatprep.mubr.bf16.mxu0 0
      %1116 = vmatmul.mubr.bf16.gmra.mxu0 %v970
      %v1117 = vpop.f32.mrf.mxu0
      %v1118 = vadd.f32 0.0, %v1117
      %v1119 = vpop.f32.mrf.mxu0
      %v1120 = vadd.f32 0.0, %v1119
      %v1121 = vpop.f32.mrf.mxu0
      %v1122 = vadd.f32 0.0, %v1121
      %v1123 = vpop.f32.mrf.mxu0
      %v1124 = vadd.f32 0.0, %v1123
      %1125 = vmatprep.mubr.bf16.mxu0 0
      %1126 = vmatmul.mubr.bf16.gmra.mxu0 %v971
      %v1127 = vpop.f32.mrf.mxu0
      %v1128 = vadd.f32 0.0, %v1127
      %v1129 = vpop.f32.mrf.mxu0
      %v1130 = vadd.f32 0.0, %v1129
      %v1131 = vpop.f32.mrf.mxu0
      %v1132 = vadd.f32 0.0, %v1131
      %v1133 = vpop.f32.mrf.mxu0
      %v1134 = vadd.f32 0.0, %v1133
      %1135 = vmatprep.mubr.bf16.mxu0 0
      %1136 = vmatmul.mubr.bf16.gmra.mxu0 %v972
      %v1137 = vpop.f32.mrf.mxu0
      %v1138 = vadd.f32 0.0, %v1137
      %v1139 = vpop.f32.mrf.mxu0
      %v1140 = vadd.f32 0.0, %v1139
      %v1141 = vpop.f32.mrf.mxu0
      %v1142 = vadd.f32 0.0, %v1141
      %v1143 = vpop.f32.mrf.mxu0
      %v1144 = vadd.f32 0.0, %v1143
      %1145 = vmatprep.mubr.bf16.mxu0 0
      %1146 = vmatmul.mubr.bf16.gmra.mxu0 %v973
      %v1147 = vpop.f32.mrf.mxu0
      %v1148 = vadd.f32 0.0, %v1147
      %v1149 = vpop.f32.mrf.mxu0
      %v1150 = vadd.f32 0.0, %v1149
      %v1151 = vpop.f32.mrf.mxu0
      %v1152 = vadd.f32 0.0, %v1151
      %v1153 = vpop.f32.mrf.mxu0
      %v1154 = vadd.f32 0.0, %v1153
      %1155 = vmatprep.mubr.bf16.mxu0 0
      %1156 = vmatmul.mubr.bf16.gmra.mxu0 %v974
      %v1157 = vpop.f32.mrf.mxu0
      %v1158 = vadd.f32 0.0, %v1157
      %v1159 = vpop.f32.mrf.mxu0
      %v1160 = vadd.f32 0.0, %v1159
      %v1161 = vpop.f32.mrf.mxu0
      %v1162 = vadd.f32 0.0, %v1161
      %v1163 = vpop.f32.mrf.mxu0
      %v1164 = vadd.f32 0.0, %v1163
      %1165 = vmatprep.mubr.bf16.mxu0 0
      %1166 = vmatmul.mubr.bf16.gmra.mxu0 %v975
      %v1167 = vpop.f32.mrf.mxu0
      %v1168 = vadd.f32 0.0, %v1167
      %v1169 = vpop.f32.mrf.mxu0
      %v1170 = vadd.f32 0.0, %v1169
      %v1171 = vpop.f32.mrf.mxu0
      %v1172 = vadd.f32 0.0, %v1171
      %v1173 = vpop.f32.mrf.mxu0
      %v1174 = vadd.f32 0.0, %v1173
      %1175 = vmatprep.mubr.bf16.mxu0 0
      %1176 = vmatmul.mubr.bf16.gmra.mxu0 %v976
      %v1177 = vpop.f32.mrf.mxu0
      %v1178 = vadd.f32 0.0, %v1177
      %v1179 = vpop.f32.mrf.mxu0
      %v1180 = vadd.f32 0.0, %v1179
      %v1181 = vpop.f32.mrf.mxu0
      %v1182 = vadd.f32 0.0, %v1181
      %v1183 = vpop.f32.mrf.mxu0
      %v1184 = vadd.f32 0.0, %v1183
      %1185 = vdwg.mxu0
      %v1202 = vunpack.c.l.b16 %v953
      %v1203 = vunpack.c.h.b16 %v953
      %v1204 = vunpack.c.l.b16 %v954
      %v1205 = vunpack.c.h.b16 %v954
      %v1206 = vunpack.c.l.b16 %v955
      %v1207 = vunpack.c.h.b16 %v955
      %v1208 = vunpack.c.l.b16 %v956
      %v1209 = vunpack.c.h.b16 %v956
      %v1210 = vunpack.c.l.b16 %v957
      %v1211 = vunpack.c.h.b16 %v957
      %v1212 = vunpack.c.l.b16 %v958
      %v1213 = vunpack.c.h.b16 %v958
      %v1214 = vunpack.c.l.b16 %v959
      %v1215 = vunpack.c.h.b16 %v959
      %v1216 = vunpack.c.l.b16 %v960
      %v1217 = vunpack.c.h.b16 %v960
      %v1218 = vunpack.c.l.b16 %v961
      %v1219 = vunpack.c.h.b16 %v961
      %v1220 = vunpack.c.l.b16 %v962
      %v1221 = vunpack.c.h.b16 %v962
      %v1222 = vunpack.c.l.b16 %v963
      %v1223 = vunpack.c.h.b16 %v963
      %v1224 = vunpack.c.l.b16 %v964
      %v1225 = vunpack.c.h.b16 %v964
      %v1226 = vunpack.c.l.b16 %v965
      %v1227 = vunpack.c.h.b16 %v965
      %v1228 = vunpack.c.l.b16 %v966
      %v1229 = vunpack.c.h.b16 %v966
      %v1230 = vunpack.c.l.b16 %v967
      %v1231 = vunpack.c.h.b16 %v967
      %v1232 = vunpack.c.l.b16 %v968
      %v1233 = vunpack.c.h.b16 %v968
      %v1234 = vpack.c.b16 %v1204, %v1202
      %v1235 = vpack.c.b16 %v1205, %v1203
      %v1236 = vpack.c.b16 %v1208, %v1206
      %v1237 = vpack.c.b16 %v1209, %v1207
      %v1238 = vpack.c.b16 %v1212, %v1210
      %v1239 = vpack.c.b16 %v1213, %v1211
      %v1240 = vpack.c.b16 %v1216, %v1214
      %v1241 = vpack.c.b16 %v1217, %v1215
      %v1242 = vpack.c.b16 %v1220, %v1218
      %v1243 = vpack.c.b16 %v1221, %v1219
      %v1244 = vpack.c.b16 %v1224, %v1222
      %v1245 = vpack.c.b16 %v1225, %v1223
      %v1246 = vpack.c.b16 %v1228, %v1226
      %v1247 = vpack.c.b16 %v1229, %v1227
      %v1248 = vpack.c.b16 %v1232, %v1230
      %v1249 = vpack.c.b16 %v1233, %v1231
      %1266 = vmatprep.subr.bf16.mxu0 %v1249
      %1267 = vmatpush1.bf16.msra.mxu0 %v1248
      %1268 = vmatprep.subr.bf16.mxu0 %v1247
      %1269 = vmatpush1.bf16.msra.mxu0 %v1246
      %1270 = vmatprep.subr.bf16.mxu0 %v1245
      %1271 = vmatpush1.bf16.msra.mxu0 %v1244
      %1272 = vmatprep.subr.bf16.mxu0 %v1243
      %1273 = vmatpush1.bf16.msra.mxu0 %v1242
      %1274 = vmatprep.subr.bf16.mxu0 %v1241
      %1275 = vmatpush1.bf16.msra.mxu0 %v1240
      %1276 = vmatprep.subr.bf16.mxu0 %v1239
      %1277 = vmatpush1.bf16.msra.mxu0 %v1238
      %1278 = vmatprep.subr.bf16.mxu0 %v1237
      %1279 = vmatpush1.bf16.msra.mxu0 %v1236
      %1280 = vmatprep.subr.bf16.mxu0 %v1235
      %1281 = vmatpush1.bf16.msra.mxu0 %v1234
      %1282 = vmatprep.subr.bf16.mxu0 0
      %1283 = vmatpush2.bf16.msra.mxu0 0
      %1284 = vmatprep.subr.bf16.mxu0 0
      %1285 = vmatpush2.bf16.msra.mxu0 0
      %1286 = vmatprep.subr.bf16.mxu0 0
      %1287 = vmatpush2.bf16.msra.mxu0 0
      %1288 = vmatprep.subr.bf16.mxu0 0
      %1289 = vmatpush2.bf16.msra.mxu0 0
      %1290 = vmatprep.subr.bf16.mxu0 0
      %1291 = vmatpush2.bf16.msra.mxu0 0
      %1292 = vmatprep.subr.bf16.mxu0 0
      %1293 = vmatpush2.bf16.msra.mxu0 0
      %1294 = vmatprep.subr.bf16.mxu0 0
      %1295 = vmatpush2.bf16.msra.mxu0 0
      %1296 = vmatprep.subr.bf16.mxu0 0
      %1297 = vmatpush2.bf16.msra.mxu0 0
      %1298 = vmatprep.mubr.bf16.mxu0 0
      %1299 = vmatmul.mubr.bf16.gmra.mxu0 %v945
      %v1300 = vpop.f32.mrf.mxu0
      %v1301 = vadd.f32 %v1108, %v1300
      %v1302 = vpop.f32.mrf.mxu0
      %v1303 = vadd.f32 %v1110, %v1302
      %v1304 = vpop.f32.mrf.mxu0
      %v1305 = vadd.f32 %v1112, %v1304
      %v1306 = vpop.f32.mrf.mxu0
      %v1307 = vadd.f32 %v1114, %v1306
      %1308 = vmatprep.mubr.bf16.mxu0 0
      %1309 = vmatmul.mubr.bf16.gmra.mxu0 %v946
      %v1310 = vpop.f32.mrf.mxu0
      %v1311 = vadd.f32 %v1118, %v1310
      %v1312 = vpop.f32.mrf.mxu0
      %v1313 = vadd.f32 %v1120, %v1312
      %v1314 = vpop.f32.mrf.mxu0
      %v1315 = vadd.f32 %v1122, %v1314
      %v1316 = vpop.f32.mrf.mxu0
      %v1317 = vadd.f32 %v1124, %v1316
      %1318 = vmatprep.mubr.bf16.mxu0 0
      %1319 = vmatmul.mubr.bf16.gmra.mxu0 %v947
      %v1320 = vpop.f32.mrf.mxu0
      %v1321 = vadd.f32 %v1128, %v1320
      %v1322 = vpop.f32.mrf.mxu0
      %v1323 = vadd.f32 %v1130, %v1322
      %v1324 = vpop.f32.mrf.mxu0
      %v1325 = vadd.f32 %v1132, %v1324
      %v1326 = vpop.f32.mrf.mxu0
      %v1327 = vadd.f32 %v1134, %v1326
      %1328 = vmatprep.mubr.bf16.mxu0 0
      %1329 = vmatmul.mubr.bf16.gmra.mxu0 %v948
      %v1330 = vpop.f32.mrf.mxu0
      %v1331 = vadd.f32 %v1138, %v1330
      %v1332 = vpop.f32.mrf.mxu0
      %v1333 = vadd.f32 %v1140, %v1332
      %v1334 = vpop.f32.mrf.mxu0
      %v1335 = vadd.f32 %v1142, %v1334
      %v1336 = vpop.f32.mrf.mxu0
      %v1337 = vadd.f32 %v1144, %v1336
      %1338 = vmatprep.mubr.bf16.mxu0 0
      %1339 = vmatmul.mubr.bf16.gmra.mxu0 %v949
      %v1340 = vpop.f32.mrf.mxu0
      %v1341 = vadd.f32 %v1148, %v1340
      %v1342 = vpop.f32.mrf.mxu0
      %v1343 = vadd.f32 %v1150, %v1342
      %v1344 = vpop.f32.mrf.mxu0
      %v1345 = vadd.f32 %v1152, %v1344
      %v1346 = vpop.f32.mrf.mxu0
      %v1347 = vadd.f32 %v1154, %v1346
      %1348 = vmatprep.mubr.bf16.mxu0 0
      %1349 = vmatmul.mubr.bf16.gmra.mxu0 %v950
      %v1350 = vpop.f32.mrf.mxu0
      %v1351 = vadd.f32 %v1158, %v1350
      %v1352 = vpop.f32.mrf.mxu0
      %v1353 = vadd.f32 %v1160, %v1352
      %v1354 = vpop.f32.mrf.mxu0
      %v1355 = vadd.f32 %v1162, %v1354
      %v1356 = vpop.f32.mrf.mxu0
      %v1357 = vadd.f32 %v1164, %v1356
      %1358 = vmatprep.mubr.bf16.mxu0 0
      %1359 = vmatmul.mubr.bf16.gmra.mxu0 %v951
      %v1360 = vpop.f32.mrf.mxu0
      %v1361 = vadd.f32 %v1168, %v1360
      %v1362 = vpop.f32.mrf.mxu0
      %v1363 = vadd.f32 %v1170, %v1362
      %v1364 = vpop.f32.mrf.mxu0
      %v1365 = vadd.f32 %v1172, %v1364
      %v1366 = vpop.f32.mrf.mxu0
      %v1367 = vadd.f32 %v1174, %v1366
      %1368 = vmatprep.mubr.bf16.mxu0 0
      %1369 = vmatmul.mubr.bf16.gmra.mxu0 %v952
      %v1370 = vpop.f32.mrf.mxu0
      %v1371 = vadd.f32 %v1178, %v1370
      %v1372 = vpop.f32.mrf.mxu0
      %v1373 = vadd.f32 %v1180, %v1372
      %v1374 = vpop.f32.mrf.mxu0
      %v1375 = vadd.f32 %v1182, %v1374
      %v1376 = vpop.f32.mrf.mxu0
      %v1377 = vadd.f32 %v1184, %v1376
      %1378 = vdwg.mxu0
      %v1379 = vld [vmem:[%s5] sm:$0x3]
      %v1381 = vlaneseq
      %v1382 = vshrl.u32 %v1381, 7
      %v1383 = vsub.s32 0, %v1382
      %v1384 = vrot.slane %v1379, %v1383
      %v1385 = vlaneseq
      %v1386 = vshrl.u32 %v1385, 7
      %v1387 = vsub.s32 1, %v1386
      %v1388 = vrot.slane %v1379, %v1387
      %v1391 = vadd.f32 %v1301, %v1384
      %v1392 = vadd.f32 %v1303, %v1388
      %v1393 = vadd.f32 %v1305, %v1384
      %v1394 = vadd.f32 %v1307, %v1388
      %v1395 = vadd.f32 %v1311, %v1384
      %v1396 = vadd.f32 %v1313, %v1388
      %v1397 = vadd.f32 %v1315, %v1384
      %v1398 = vadd.f32 %v1317, %v1388
      %v1399 = vadd.f32 %v1321, %v1384
      %v1400 = vadd.f32 %v1323, %v1388
      %v1401 = vadd.f32 %v1325, %v1384
      %v1402 = vadd.f32 %v1327, %v1388
      %v1403 = vadd.f32 %v1331, %v1384
      %v1404 = vadd.f32 %v1333, %v1388
      %v1405 = vadd.f32 %v1335, %v1384
      %v1406 = vadd.f32 %v1337, %v1388
      %v1407 = vadd.f32 %v1341, %v1384
      %v1408 = vadd.f32 %v1343, %v1388
      %v1409 = vadd.f32 %v1345, %v1384
      %v1410 = vadd.f32 %v1347, %v1388
      %v1411 = vadd.f32 %v1351, %v1384
      %v1412 = vadd.f32 %v1353, %v1388
      %v1413 = vadd.f32 %v1355, %v1384
      %v1414 = vadd.f32 %v1357, %v1388
      %v1415 = vadd.f32 %v1361, %v1384
      %v1416 = vadd.f32 %v1363, %v1388
      %v1417 = vadd.f32 %v1365, %v1384
      %v1418 = vadd.f32 %v1367, %v1388
      %v1419 = vadd.f32 %v1371, %v1384
      %v1420 = vadd.f32 %v1373, %v1388
      %v1421 = vadd.f32 %v1375, %v1384
      %v1422 = vadd.f32 %v1377, %v1388
      %v1423 = vmax.f32 %v1391, 0.0
      %v1424 = vmax.f32 %v1392, 0.0
      %v1425 = vmax.f32 %v1393, 0.0
      %v1426 = vmax.f32 %v1394, 0.0
      %v1427 = vmax.f32 %v1395, 0.0
      %v1428 = vmax.f32 %v1396, 0.0
      %v1429 = vmax.f32 %v1397, 0.0
      %v1430 = vmax.f32 %v1398, 0.0
      %v1431 = vmax.f32 %v1399, 0.0
      %v1432 = vmax.f32 %v1400, 0.0
      %v1433 = vmax.f32 %v1401, 0.0
      %v1434 = vmax.f32 %v1402, 0.0
      %v1435 = vmax.f32 %v1403, 0.0
      %v1436 = vmax.f32 %v1404, 0.0
      %v1437 = vmax.f32 %v1405, 0.0
      %v1438 = vmax.f32 %v1406, 0.0
      %v1439 = vmax.f32 %v1407, 0.0
      %v1440 = vmax.f32 %v1408, 0.0
      %v1441 = vmax.f32 %v1409, 0.0
      %v1442 = vmax.f32 %v1410, 0.0
      %v1443 = vmax.f32 %v1411, 0.0
      %v1444 = vmax.f32 %v1412, 0.0
      %v1445 = vmax.f32 %v1413, 0.0
      %v1446 = vmax.f32 %v1414, 0.0
      %v1447 = vmax.f32 %v1415, 0.0
      %v1448 = vmax.f32 %v1416, 0.0
      %v1449 = vmax.f32 %v1417, 0.0
      %v1450 = vmax.f32 %v1418, 0.0
      %v1451 = vmax.f32 %v1419, 0.0
      %v1452 = vmax.f32 %v1420, 0.0
      %v1453 = vmax.f32 %v1421, 0.0
      %v1454 = vmax.f32 %v1422, 0.0
      %v1455 = vadd.f32 %v1423, %v786
      %v1456 = vadd.f32 %v1425, %v789
      %v1457 = vadd.f32 %v1427, %v794
      %v1458 = vadd.f32 %v1429, %v797
      %v1459 = vadd.f32 %v1431, %v802
      %v1460 = vadd.f32 %v1433, %v805
      %v1461 = vadd.f32 %v1435, %v810
      %v1462 = vadd.f32 %v1437, %v813
      %v1463 = vadd.f32 %v1439, %v818
      %v1464 = vadd.f32 %v1441, %v821
      %v1465 = vadd.f32 %v1443, %v826
      %v1466 = vadd.f32 %v1445, %v829
      %v1467 = vadd.f32 %v1447, %v834
      %v1468 = vadd.f32 %v1449, %v837
      %v1469 = vadd.f32 %v1451, %v842
      %v1470 = vadd.f32 %v1453, %v845
      %v1471 = vmax.f32 %v1455, 0.0
      %v1472 = vmax.f32 %v1456, 0.0
      %v1473 = vmax.f32 %v1457, 0.0
      %v1474 = vmax.f32 %v1458, 0.0
      %v1475 = vmax.f32 %v1459, 0.0
      %v1476 = vmax.f32 %v1460, 0.0
      %v1477 = vmax.f32 %v1461, 0.0
      %v1478 = vmax.f32 %v1462, 0.0
      %v1479 = vmax.f32 %v1463, 0.0
      %v1480 = vmax.f32 %v1464, 0.0
      %v1481 = vmax.f32 %v1465, 0.0
      %v1482 = vmax.f32 %v1466, 0.0
      %v1483 = vmax.f32 %v1467, 0.0
      %v1484 = vmax.f32 %v1468, 0.0
      %v1485 = vmax.f32 %v1469, 0.0
      %v1486 = vmax.f32 %v1470, 0.0
      %v1487 = vadd.f32 %v1424, %v883
      %v1488 = vadd.f32 %v1426, %v886
      %v1489 = vadd.f32 %v1428, %v891
      %v1490 = vadd.f32 %v1430, %v894
      %v1491 = vadd.f32 %v1432, %v899
      %v1492 = vadd.f32 %v1434, %v902
      %v1493 = vadd.f32 %v1436, %v907
      %v1494 = vadd.f32 %v1438, %v910
      %v1495 = vadd.f32 %v1440, %v915
      %v1496 = vadd.f32 %v1442, %v918
      %v1497 = vadd.f32 %v1444, %v923
      %v1498 = vadd.f32 %v1446, %v926
      %v1499 = vadd.f32 %v1448, %v931
      %v1500 = vadd.f32 %v1450, %v934
      %v1501 = vadd.f32 %v1452, %v939
      %v1502 = vadd.f32 %v1454, %v942
      %v1503 = vmax.f32 %v1487, 0.0
      %v1504 = vmax.f32 %v1488, 0.0
      %v1505 = vmax.f32 %v1489, 0.0
      %v1506 = vmax.f32 %v1490, 0.0
      %v1507 = vmax.f32 %v1491, 0.0
      %v1508 = vmax.f32 %v1492, 0.0
      %v1509 = vmax.f32 %v1493, 0.0
      %v1510 = vmax.f32 %v1494, 0.0
      %v1511 = vmax.f32 %v1495, 0.0
      %v1512 = vmax.f32 %v1496, 0.0
      %v1513 = vmax.f32 %v1497, 0.0
      %v1514 = vmax.f32 %v1498, 0.0
      %v1515 = vmax.f32 %v1499, 0.0
      %v1516 = vmax.f32 %v1500, 0.0
      %v1517 = vmax.f32 %v1501, 0.0
      %v1518 = vmax.f32 %v1502, 0.0
      %v1519 = vld [vmem:[%s6] sm:$0xf]
      %v1520 = vld [vmem:[%s6 + $0x4] sm:$0xf]
      %v1521 = vld [vmem:[%s6 + $0x8] sm:$0xf]
      %v1522 = vld [vmem:[%s6 + $0xc] sm:$0xf]
      %v1523 = vld [vmem:[%s6 + $0x10] sm:$0xf]
      %v1524 = vld [vmem:[%s6 + $0x14] sm:$0xf]
      %v1525 = vld [vmem:[%s6 + $0x18] sm:$0xf]
      %v1526 = vld [vmem:[%s6 + $0x1c] sm:$0xf]
      %v1527 = vld [vmem:[%s6 + $0x20] sm:$0xf]
      %v1528 = vld [vmem:[%s6 + $0x24] sm:$0xf]
      %v1529 = vld [vmem:[%s6 + $0x28] sm:$0xf]
      %v1530 = vld [vmem:[%s6 + $0x2c] sm:$0xf]
      %v1531 = vld [vmem:[%s6 + $0x30] sm:$0xf]
      %v1532 = vld [vmem:[%s6 + $0x34] sm:$0xf]
      %v1533 = vld [vmem:[%s6 + $0x38] sm:$0xf]
      %v1534 = vld [vmem:[%s6 + $0x3c] sm:$0xf]
      %v1535 = vld [vmem:[%s6 + $0x40] sm:$0xf]
      %v1536 = vld [vmem:[%s6 + $0x44] sm:$0xf]
      %v1537 = vld [vmem:[%s6 + $0x48] sm:$0xf]
      %v1538 = vld [vmem:[%s6 + $0x4c] sm:$0xf]
      %v1539 = vld [vmem:[%s6 + $0x50] sm:$0xf]
      %v1540 = vld [vmem:[%s6 + $0x54] sm:$0xf]
      %v1541 = vld [vmem:[%s6 + $0x58] sm:$0xf]
      %v1542 = vld [vmem:[%s6 + $0x5c] sm:$0xf]
      %v1543 = vld [vmem:[%s6 + $0x60] sm:$0xf]
      %v1544 = vld [vmem:[%s6 + $0x64] sm:$0xf]
      %v1545 = vld [vmem:[%s6 + $0x68] sm:$0xf]
      %v1546 = vld [vmem:[%s6 + $0x6c] sm:$0xf]
      %v1547 = vld [vmem:[%s6 + $0x70] sm:$0xf]
      %v1548 = vld [vmem:[%s6 + $0x74] sm:$0xf]
      %v1549 = vld [vmem:[%s6 + $0x78] sm:$0xf]
      %v1550 = vld [vmem:[%s6 + $0x7c] sm:$0xf]
      %v1551 = vpack.c.bf16 %v1472, %v1471
      %v1552 = vpack.c.bf16 %v1474, %v1473
      %v1553 = vpack.c.bf16 %v1476, %v1475
      %v1554 = vpack.c.bf16 %v1478, %v1477
      %v1555 = vpack.c.bf16 %v1480, %v1479
      %v1556 = vpack.c.bf16 %v1482, %v1481
      %v1557 = vpack.c.bf16 %v1484, %v1483
      %v1558 = vpack.c.bf16 %v1486, %v1485
      %v1559 = vpack.c.bf16 %v1504, %v1503
      %v1560 = vpack.c.bf16 %v1506, %v1505
      %v1561 = vpack.c.bf16 %v1508, %v1507
      %v1562 = vpack.c.bf16 %v1510, %v1509
      %v1563 = vpack.c.bf16 %v1512, %v1511
      %v1564 = vpack.c.bf16 %v1514, %v1513
      %v1565 = vpack.c.bf16 %v1516, %v1515
      %v1566 = vpack.c.bf16 %v1518, %v1517
      %v1583 = vunpack.c.l.b16 %v1535
      %v1584 = vunpack.c.l.b16 %v1536
      %v1585 = vunpack.c.l.b16 %v1537
      %v1586 = vunpack.c.l.b16 %v1538
      %v1587 = vunpack.c.l.b16 %v1539
      %v1588 = vunpack.c.l.b16 %v1540
      %v1589 = vunpack.c.l.b16 %v1541
      %v1590 = vunpack.c.l.b16 %v1542
      %v1591 = vunpack.c.l.b16 %v1543
      %v1592 = vunpack.c.l.b16 %v1544
      %v1593 = vunpack.c.l.b16 %v1545
      %v1594 = vunpack.c.l.b16 %v1546
      %v1595 = vunpack.c.l.b16 %v1547
      %v1596 = vunpack.c.l.b16 %v1548
      %v1597 = vunpack.c.l.b16 %v1549
      %v1598 = vunpack.c.l.b16 %v1550
      %v1599 = vpack.c.b16 %v1584, %v1583
      %v1600 = vpack.c.b16 %v1586, %v1585
      %v1601 = vpack.c.b16 %v1588, %v1587
      %v1602 = vpack.c.b16 %v1590, %v1589
      %v1603 = vpack.c.b16 %v1592, %v1591
      %v1604 = vpack.c.b16 %v1594, %v1593
      %v1605 = vpack.c.b16 %v1596, %v1595
      %v1606 = vpack.c.b16 %v1598, %v1597
      %1615 = vmatprep.subr.bf16.mxu0 0
      %1616 = vmatpush1.bf16.msra.mxu0 %v1606
      %1617 = vmatprep.subr.bf16.mxu0 0
      %1618 = vmatpush1.bf16.msra.mxu0 %v1605
      %1619 = vmatprep.subr.bf16.mxu0 0
      %1620 = vmatpush1.bf16.msra.mxu0 %v1604
      %1621 = vmatprep.subr.bf16.mxu0 0
      %1622 = vmatpush1.bf16.msra.mxu0 %v1603
      %1623 = vmatprep.subr.bf16.mxu0 0
      %1624 = vmatpush1.bf16.msra.mxu0 %v1602
      %1625 = vmatprep.subr.bf16.mxu0 0
      %1626 = vmatpush1.bf16.msra.mxu0 %v1601
      %1627 = vmatprep.subr.bf16.mxu0 0
      %1628 = vmatpush1.bf16.msra.mxu0 %v1600
      %1629 = vmatprep.subr.bf16.mxu0 0
      %1630 = vmatpush1.bf16.msra.mxu0 %v1599
      %1631 = vmatprep.subr.bf16.mxu0 0
      %1632 = vmatpush2.bf16.msra.mxu0 0
      %1633 = vmatprep.subr.bf16.mxu0 0
      %1634 = vmatpush2.bf16.msra.mxu0 0
      %1635 = vmatprep.subr.bf16.mxu0 0
      %1636 = vmatpush2.bf16.msra.mxu0 0
      %1637 = vmatprep.subr.bf16.mxu0 0
      %1638 = vmatpush2.bf16.msra.mxu0 0
      %1639 = vmatprep.subr.bf16.mxu0 0
      %1640 = vmatpush2.bf16.msra.mxu0 0
      %1641 = vmatprep.subr.bf16.mxu0 0
      %1642 = vmatpush2.bf16.msra.mxu0 0
      %1643 = vmatprep.subr.bf16.mxu0 0
      %1644 = vmatpush2.bf16.msra.mxu0 0
      %1645 = vmatprep.subr.bf16.mxu0 0
      %1646 = vmatpush2.bf16.msra.mxu0 0
      %1647 = vmatprep.mubr.bf16.mxu0 0
      %1648 = vmatmul.mubr.bf16.gmra.mxu0 %v1559
      %v1649 = vpop.f32.mrf.mxu0
      %v1650 = vadd.f32 0.0, %v1649
      %v1651 = vpop.f32.mrf.mxu0
      %v1652 = vpop.f32.mrf.mxu0
      %v1653 = vadd.f32 0.0, %v1652
      %v1654 = vpop.f32.mrf.mxu0
      %1655 = vmatprep.mubr.bf16.mxu0 0
      %1656 = vmatmul.mubr.bf16.gmra.mxu0 %v1560
      %v1657 = vpop.f32.mrf.mxu0
      %v1658 = vadd.f32 0.0, %v1657
      %v1659 = vpop.f32.mrf.mxu0
      %v1660 = vpop.f32.mrf.mxu0
      %v1661 = vadd.f32 0.0, %v1660
      %v1662 = vpop.f32.mrf.mxu0
      %1663 = vmatprep.mubr.bf16.mxu0 0
      %1664 = vmatmul.mubr.bf16.gmra.mxu0 %v1561
      %v1665 = vpop.f32.mrf.mxu0
      %v1666 = vadd.f32 0.0, %v1665
      %v1667 = vpop.f32.mrf.mxu0
      %v1668 = vpop.f32.mrf.mxu0
      %v1669 = vadd.f32 0.0, %v1668
      %v1670 = vpop.f32.mrf.mxu0
      %1671 = vmatprep.mubr.bf16.mxu0 0
      %1672 = vmatmul.mubr.bf16.gmra.mxu0 %v1562
      %v1673 = vpop.f32.mrf.mxu0
      %v1674 = vadd.f32 0.0, %v1673
      %v1675 = vpop.f32.mrf.mxu0
      %v1676 = vpop.f32.mrf.mxu0
      %v1677 = vadd.f32 0.0, %v1676
      %v1678 = vpop.f32.mrf.mxu0
      %1679 = vmatprep.mubr.bf16.mxu0 0
      %1680 = vmatmul.mubr.bf16.gmra.mxu0 %v1563
      %v1681 = vpop.f32.mrf.mxu0
      %v1682 = vadd.f32 0.0, %v1681
      %v1683 = vpop.f32.mrf.mxu0
      %v1684 = vpop.f32.mrf.mxu0
      %v1685 = vadd.f32 0.0, %v1684
      %v1686 = vpop.f32.mrf.mxu0
      %1687 = vmatprep.mubr.bf16.mxu0 0
      %1688 = vmatmul.mubr.bf16.gmra.mxu0 %v1564
      %v1689 = vpop.f32.mrf.mxu0
      %v1690 = vadd.f32 0.0, %v1689
      %v1691 = vpop.f32.mrf.mxu0
      %v1692 = vpop.f32.mrf.mxu0
      %v1693 = vadd.f32 0.0, %v1692
      %v1694 = vpop.f32.mrf.mxu0
      %1695 = vmatprep.mubr.bf16.mxu0 0
      %1696 = vmatmul.mubr.bf16.gmra.mxu0 %v1565
      %v1697 = vpop.f32.mrf.mxu0
      %v1698 = vadd.f32 0.0, %v1697
      %v1699 = vpop.f32.mrf.mxu0
      %v1700 = vpop.f32.mrf.mxu0
      %v1701 = vadd.f32 0.0, %v1700
      %v1702 = vpop.f32.mrf.mxu0
      %1703 = vmatprep.mubr.bf16.mxu0 0
      %1704 = vmatmul.mubr.bf16.gmra.mxu0 %v1566
      %v1705 = vpop.f32.mrf.mxu0
      %v1706 = vadd.f32 0.0, %v1705
      %v1707 = vpop.f32.mrf.mxu0
      %v1708 = vpop.f32.mrf.mxu0
      %v1709 = vadd.f32 0.0, %v1708
      %v1710 = vpop.f32.mrf.mxu0
      %1711 = vdwg.mxu0
      %v1728 = vunpack.c.l.b16 %v1519
      %v1729 = vunpack.c.l.b16 %v1520
      %v1730 = vunpack.c.l.b16 %v1521
      %v1731 = vunpack.c.l.b16 %v1522
      %v1732 = vunpack.c.l.b16 %v1523
      %v1733 = vunpack.c.l.b16 %v1524
      %v1734 = vunpack.c.l.b16 %v1525
      %v1735 = vunpack.c.l.b16 %v1526
      %v1736 = vunpack.c.l.b16 %v1527
      %v1737 = vunpack.c.l.b16 %v1528
      %v1738 = vunpack.c.l.b16 %v1529
      %v1739 = vunpack.c.l.b16 %v1530
      %v1740 = vunpack.c.l.b16 %v1531
      %v1741 = vunpack.c.l.b16 %v1532
      %v1742 = vunpack.c.l.b16 %v1533
      %v1743 = vunpack.c.l.b16 %v1534
      %v1744 = vpack.c.b16 %v1729, %v1728
      %v1745 = vpack.c.b16 %v1731, %v1730
      %v1746 = vpack.c.b16 %v1733, %v1732
      %v1747 = vpack.c.b16 %v1735, %v1734
      %v1748 = vpack.c.b16 %v1737, %v1736
      %v1749 = vpack.c.b16 %v1739, %v1738
      %v1750 = vpack.c.b16 %v1741, %v1740
      %v1751 = vpack.c.b16 %v1743, %v1742
      %1760 = vmatprep.subr.bf16.mxu0 0
      %1761 = vmatpush1.bf16.msra.mxu0 %v1751
      %1762 = vmatprep.subr.bf16.mxu0 0
      %1763 = vmatpush1.bf16.msra.mxu0 %v1750
      %1764 = vmatprep.subr.bf16.mxu0 0
      %1765 = vmatpush1.bf16.msra.mxu0 %v1749
      %1766 = vmatprep.subr.bf16.mxu0 0
      %1767 = vmatpush1.bf16.msra.mxu0 %v1748
      %1768 = vmatprep.subr.bf16.mxu0 0
      %1769 = vmatpush1.bf16.msra.mxu0 %v1747
      %1770 = vmatprep.subr.bf16.mxu0 0
      %1771 = vmatpush1.bf16.msra.mxu0 %v1746
      %1772 = vmatprep.subr.bf16.mxu0 0
      %1773 = vmatpush1.bf16.msra.mxu0 %v1745
      %1774 = vmatprep.subr.bf16.mxu0 0
      %1775 = vmatpush1.bf16.msra.mxu0 %v1744
      %1776 = vmatprep.subr.bf16.mxu0 0
      %1777 = vmatpush2.bf16.msra.mxu0 0
      %1778 = vmatprep.subr.bf16.mxu0 0
      %1779 = vmatpush2.bf16.msra.mxu0 0
      %1780 = vmatprep.subr.bf16.mxu0 0
      %1781 = vmatpush2.bf16.msra.mxu0 0
      %1782 = vmatprep.subr.bf16.mxu0 0
      %1783 = vmatpush2.bf16.msra.mxu0 0
      %1784 = vmatprep.subr.bf16.mxu0 0
      %1785 = vmatpush2.bf16.msra.mxu0 0
      %1786 = vmatprep.subr.bf16.mxu0 0
      %1787 = vmatpush2.bf16.msra.mxu0 0
      %1788 = vmatprep.subr.bf16.mxu0 0
      %1789 = vmatpush2.bf16.msra.mxu0 0
      %1790 = vmatprep.subr.bf16.mxu0 0
      %1791 = vmatpush2.bf16.msra.mxu0 0
      %1792 = vmatprep.mubr.bf16.mxu0 0
      %1793 = vmatmul.mubr.bf16.gmra.mxu0 %v1551
      %v1794 = vpop.f32.mrf.mxu0
      %v1795 = vadd.f32 %v1650, %v1794
      %v1796 = vpop.f32.mrf.mxu0
      %v1797 = vpop.f32.mrf.mxu0
      %v1798 = vadd.f32 %v1653, %v1797
      %v1799 = vpop.f32.mrf.mxu0
      %1800 = vmatprep.mubr.bf16.mxu0 0
      %1801 = vmatmul.mubr.bf16.gmra.mxu0 %v1552
      %v1802 = vpop.f32.mrf.mxu0
      %v1803 = vadd.f32 %v1658, %v1802
      %v1804 = vpop.f32.mrf.mxu0
      %v1805 = vpop.f32.mrf.mxu0
      %v1806 = vadd.f32 %v1661, %v1805
      %v1807 = vpop.f32.mrf.mxu0
      %1808 = vmatprep.mubr.bf16.mxu0 0
      %1809 = vmatmul.mubr.bf16.gmra.mxu0 %v1553
      %v1810 = vpop.f32.mrf.mxu0
      %v1811 = vadd.f32 %v1666, %v1810
      %v1812 = vpop.f32.mrf.mxu0
      %v1813 = vpop.f32.mrf.mxu0
      %v1814 = vadd.f32 %v1669, %v1813
      %v1815 = vpop.f32.mrf.mxu0
      %1816 = vmatprep.mubr.bf16.mxu0 0
      %1817 = vmatmul.mubr.bf16.gmra.mxu0 %v1554
      %v1818 = vpop.f32.mrf.mxu0
      %v1819 = vadd.f32 %v1674, %v1818
      %v1820 = vpop.f32.mrf.mxu0
      %v1821 = vpop.f32.mrf.mxu0
      %v1822 = vadd.f32 %v1677, %v1821
      %v1823 = vpop.f32.mrf.mxu0
      %1824 = vmatprep.mubr.bf16.mxu0 0
      %1825 = vmatmul.mubr.bf16.gmra.mxu0 %v1555
      %v1826 = vpop.f32.mrf.mxu0
      %v1827 = vadd.f32 %v1682, %v1826
      %v1828 = vpop.f32.mrf.mxu0
      %v1829 = vpop.f32.mrf.mxu0
      %v1830 = vadd.f32 %v1685, %v1829
      %v1831 = vpop.f32.mrf.mxu0
      %1832 = vmatprep.mubr.bf16.mxu0 0
      %1833 = vmatmul.mubr.bf16.gmra.mxu0 %v1556
      %v1834 = vpop.f32.mrf.mxu0
      %v1835 = vadd.f32 %v1690, %v1834
      %v1836 = vpop.f32.mrf.mxu0
      %v1837 = vpop.f32.mrf.mxu0
      %v1838 = vadd.f32 %v1693, %v1837
      %v1839 = vpop.f32.mrf.mxu0
      %1840 = vmatprep.mubr.bf16.mxu0 0
      %1841 = vmatmul.mubr.bf16.gmra.mxu0 %v1557
      %v1842 = vpop.f32.mrf.mxu0
      %v1843 = vadd.f32 %v1698, %v1842
      %v1844 = vpop.f32.mrf.mxu0
      %v1845 = vpop.f32.mrf.mxu0
      %v1846 = vadd.f32 %v1701, %v1845
      %v1847 = vpop.f32.mrf.mxu0
      %1848 = vmatprep.mubr.bf16.mxu0 0
      %1849 = vmatmul.mubr.bf16.gmra.mxu0 %v1558
      %v1850 = vpop.f32.mrf.mxu0
      %v1851 = vadd.f32 %v1706, %v1850
      %v1852 = vpop.f32.mrf.mxu0
      %v1853 = vpop.f32.mrf.mxu0
      %v1854 = vadd.f32 %v1709, %v1853
      %v1855 = vpop.f32.mrf.mxu0
      %1856 = vdwg.mxu0
      %v1857 = vld [vmem:[%s7] sm:$0x1]
      %v1859 = vlaneseq
      %v1860 = vshrl.u32 %v1859, 7
      %v1861 = vsub.s32 0, %v1860
      %v1862 = vrot.slane %v1857, %v1861
      %v1864 = vadd.f32 %v1795, %v1862
      %v1865 = vadd.f32 %v1798, %v1862
      %v1866 = vadd.f32 %v1803, %v1862
      %v1867 = vadd.f32 %v1806, %v1862
      %v1868 = vadd.f32 %v1811, %v1862
      %v1869 = vadd.f32 %v1814, %v1862
      %v1870 = vadd.f32 %v1819, %v1862
      %v1871 = vadd.f32 %v1822, %v1862
      %v1872 = vadd.f32 %v1827, %v1862
      %v1873 = vadd.f32 %v1830, %v1862
      %v1874 = vadd.f32 %v1835, %v1862
      %v1875 = vadd.f32 %v1838, %v1862
      %v1876 = vadd.f32 %v1843, %v1862
      %v1877 = vadd.f32 %v1846, %v1862
      %v1878 = vadd.f32 %v1851, %v1862
      %v1879 = vadd.f32 %v1854, %v1862
      %v1880 = vxor.u32 %v1864, 2147483648
      %v1881 = vxor.u32 %v1865, 2147483648
      %v1882 = vxor.u32 %v1866, 2147483648
      %v1883 = vxor.u32 %v1867, 2147483648
      %v1884 = vxor.u32 %v1868, 2147483648
      %v1885 = vxor.u32 %v1869, 2147483648
      %v1886 = vxor.u32 %v1870, 2147483648
      %v1887 = vxor.u32 %v1871, 2147483648
      %v1888 = vxor.u32 %v1872, 2147483648
      %v1889 = vxor.u32 %v1873, 2147483648
      %v1890 = vxor.u32 %v1874, 2147483648
      %v1891 = vxor.u32 %v1875, 2147483648
      %v1892 = vxor.u32 %v1876, 2147483648
      %v1893 = vxor.u32 %v1877, 2147483648
      %v1894 = vxor.u32 %v1878, 2147483648
      %v1895 = vxor.u32 %v1879, 2147483648
      %v1896 = vmul.f32 %v1880, 1.442695
      %v1897 = vpow.pop %v1896
      %v1898 = vmul.f32 %v1881, 1.442695
      %v1899 = vpow.pop %v1898
      %v1900 = vmul.f32 %v1882, 1.442695
      %v1901 = vpow.pop %v1900
      %v1902 = vmul.f32 %v1883, 1.442695
      %v1903 = vpow.pop %v1902
      %v1904 = vmul.f32 %v1884, 1.442695
      %v1905 = vpow.pop %v1904
      %v1906 = vmul.f32 %v1885, 1.442695
      %v1907 = vpow.pop %v1906
      %v1908 = vmul.f32 %v1886, 1.442695
      %v1909 = vpow.pop %v1908
      %v1910 = vmul.f32 %v1887, 1.442695
      %v1911 = vpow.pop %v1910
      %v1912 = vmul.f32 %v1888, 1.442695
      %v1913 = vpow.pop %v1912
      %v1914 = vmul.f32 %v1889, 1.442695
      %v1915 = vpow.pop %v1914
      %v1916 = vmul.f32 %v1890, 1.442695
      %v1917 = vpow.pop %v1916
      %v1918 = vmul.f32 %v1891, 1.442695
      %v1919 = vpow.pop %v1918
      %v1920 = vmul.f32 %v1892, 1.442695
      %v1921 = vpow.pop %v1920
      %v1922 = vmul.f32 %v1893, 1.442695
      %v1923 = vpow.pop %v1922
      %v1924 = vmul.f32 %v1894, 1.442695
      %v1925 = vpow.pop %v1924
      %v1926 = vmul.f32 %v1895, 1.442695
      %v1927 = vpow.pop %v1926
      %v1928 = vadd.f32 %v1897, 1.0
      %v1929 = vadd.f32 %v1899, 1.0
      %v1930 = vadd.f32 %v1901, 1.0
      %v1931 = vadd.f32 %v1903, 1.0
      %v1932 = vadd.f32 %v1905, 1.0
      %v1933 = vadd.f32 %v1907, 1.0
      %v1934 = vadd.f32 %v1909, 1.0
      %v1935 = vadd.f32 %v1911, 1.0
      %v1936 = vadd.f32 %v1913, 1.0
      %v1937 = vadd.f32 %v1915, 1.0
      %v1938 = vadd.f32 %v1917, 1.0
      %v1939 = vadd.f32 %v1919, 1.0
      %v1940 = vadd.f32 %v1921, 1.0
      %v1941 = vadd.f32 %v1923, 1.0
      %v1942 = vadd.f32 %v1925, 1.0
      %v1943 = vadd.f32 %v1927, 1.0
      %v1944 = vrcp.pop %v1928
      %v1945 = vmul.f32 1.0, %v1944
      %v1946 = vrcp.pop %v1929
      %v1947 = vmul.f32 1.0, %v1946
      %v1948 = vrcp.pop %v1930
      %v1949 = vmul.f32 1.0, %v1948
      %v1950 = vrcp.pop %v1931
      %v1951 = vmul.f32 1.0, %v1950
      %v1952 = vrcp.pop %v1932
      %v1953 = vmul.f32 1.0, %v1952
      %v1954 = vrcp.pop %v1933
      %v1955 = vmul.f32 1.0, %v1954
      %v1956 = vrcp.pop %v1934
      %v1957 = vmul.f32 1.0, %v1956
      %v1958 = vrcp.pop %v1935
      %v1959 = vmul.f32 1.0, %v1958
      %v1960 = vrcp.pop %v1936
      %v1961 = vmul.f32 1.0, %v1960
      %v1962 = vrcp.pop %v1937
      %v1963 = vmul.f32 1.0, %v1962
      %v1964 = vrcp.pop %v1938
      %v1965 = vmul.f32 1.0, %v1964
      %v1966 = vrcp.pop %v1939
      %v1967 = vmul.f32 1.0, %v1966
      %v1968 = vrcp.pop %v1940
      %v1969 = vmul.f32 1.0, %v1968
      %v1970 = vrcp.pop %v1941
      %v1971 = vmul.f32 1.0, %v1970
      %v1972 = vrcp.pop %v1942
      %v1973 = vmul.f32 1.0, %v1972
      %v1974 = vrcp.pop %v1943
      %v1975 = vmul.f32 1.0, %v1974
      %1976 = vst [vmem:[%s329] sm:$0xff] %v1945
      %1977 = vst [vmem:[%s329 + $0x8] sm:$0xff] %v1947
      %1978 = vst [vmem:[%s329 + $0x10] sm:$0xff] %v1949
      %1979 = vst [vmem:[%s329 + $0x18] sm:$0xff] %v1951
      %1980 = vst [vmem:[%s329 + $0x20] sm:$0xff] %v1953
      %1981 = vst [vmem:[%s329 + $0x28] sm:$0xff] %v1955
      %1982 = vst [vmem:[%s329 + $0x30] sm:$0xff] %v1957
      %1983 = vst [vmem:[%s329 + $0x38] sm:$0xff] %v1959
      %1984 = vst [vmem:[%s329 + $0x40] sm:$0xff] %v1961
      %1985 = vst [vmem:[%s329 + $0x48] sm:$0xff] %v1963
      %1986 = vst [vmem:[%s329 + $0x50] sm:$0xff] %v1965
      %1987 = vst [vmem:[%s329 + $0x58] sm:$0xff] %v1967
      %1988 = vst [vmem:[%s329 + $0x60] sm:$0xff] %v1969
      %1989 = vst [vmem:[%s329 + $0x68] sm:$0xff] %v1971
      %1990 = vst [vmem:[%s329 + $0x70] sm:$0xff] %v1973
      %1991 = vst [vmem:[%s329 + $0x78] sm:$0xff] %v1975
      %s1992 = smul.u32 16, %s19
      %p1993 = scmp.lt.s32.totalorder %s1992, 47
      %s1994 = scalar_select %p1993, %s1992, 47
      %s1995 = smul.addr %s1994, 8
      %s1996 = scalar_lea.vmem %s8, %s1995
      // Predicated region
      $region53: #{link_predictor_forward.3} parent=51 // pred_check
        %p1997 = pneg %p215
      $region54: #{link_predictor_forward.3} parent=51 // pred_check_branch
        %1999 = sbr.rel (%p1997) target = $region56
      $region55: #{link_predictor_forward.3} parent=51 // pred_region
        %s2000 = smul.u32 16, %s19
      $region56: #{link_predictor_forward.3} parent=51 // pred_fallthru
        _
    $region52: #{link_predictor_forward.3} parent=5 // pred_fallthru
      _
    %p2001 = scmp.le.s32.totalorder 2, %s14
    // Predicated region
    $region57: #{link_predictor_forward.3} parent=5 // pred_check
      %p2002 = pneg %p2001
    $region58: #{link_predictor_forward.3} parent=5 // pred_check_branch
      %2004 = sbr.rel (%p2002) target = $region60
    $region59: #{link_predictor_forward.3} parent=5 // pred_region
      %s2005 = ssub.s32 %s14, 2
      // Predicated region
      $region61: #{link_predictor_forward.3} parent=59 // pred_check
        %p2006 = pneg %p221
      $region62: #{link_predictor_forward.3} parent=59 // pred_check_branch
        %2008 = sbr.rel (%p2006) target = $region64
      $region63: #{link_predictor_forward.3} parent=59 // pred_region
        %s2009 = smul.u32 16, %s20
        %p2010 = scmp.lt.s32.totalorder %s2009, 47
        %s2011 = scalar_select %p2010, %s2009, 47
        %s2012 = smul.addr %s2011, 8
        %s2013 = scalar_lea.vmem %s8, %s2012
      $region64: #{link_predictor_forward.3} parent=59 // pred_fallthru
        _
    $region60: #{link_predictor_forward.3} parent=5 // pred_fallthru
      _
  $region6: #{link_predictor_forward.3} parent=0 // loop_footer
    %s18 = sadd.s32 1, %s14
  $region7: #{link_predictor_forward.3} parent=0 // loop_footer_branch
    %13 = sbr.rel target = $region3
  $region8: #{link_predictor_forward.3} parent=0 // loop_exit
    _

</llo_original>
